<compile_context>
chip_gen: v7x
topology: tpu7x:2x2x1
jax: 0.10.0
libtpu: 0.0.40
codegen_flags: <defaults>
</compile_context>

<pallas_src>
import functools

import jax
import jax.numpy as jnp
from jax import lax
from jax.experimental import pallas as pl
from jax.experimental.pallas import tpu as pltpu

_EPS = 1e-5  # InstanceNorm1d eps (MatNet uses affine=True)


def _instance_norm(x, gamma, beta):
    # x: (Bt, N, E). PyTorch InstanceNorm1d on (B, E, N): normalize over the
    # problem axis N per (batch, channel), biased variance, per-channel affine.
    mean = jnp.mean(x, axis=1, keepdims=True)
    cent = x - mean
    var = jnp.mean(cent * cent, axis=1, keepdims=True)
    return cent * lax.rsqrt(var + _EPS) * gamma + beta


def encoding_block_kernel(
    # data blocks (VMEM)
    row_ref, col_ref, cost_ref,
    # weights (VMEM; matmul weights are bf16, bias/norm params f32)
    wq_ref, wk_ref, wv_ref, wcomb_ref, bcomb_ref,
    g1_ref, be1_ref, w1_ref, b1_ref, w2_ref, b2_ref, g2_ref, be2_ref,
    # mixed-score MLP scalars (SMEM)
    m1w0_ref, m1w1_ref, m1b_ref, m2w_ref, m2b_ref,
    # output
    out_ref,
    *, head_num, qkv_dim, ms_hidden_dim, inv_sqrt_qkv_dim, transpose_cost):
    bt, n_row, e_dim = row_ref.shape
    n_col = col_ref.shape[1]
    H, D, M = head_num, qkv_dim, ms_hidden_dim

    row = row_ref[...]                        # (Bt, R, E) f32
    col = col_ref[...]                        # (Bt, C, E) f32
    cost = cost_ref[...]
    if transpose_cost:
        # TODO(synk): transpose per column tile once the flash-style column
        # tiling lands, to avoid a second (Bt, R, C) VMEM copy at large C.
        cost = jnp.swapaxes(cost, 1, 2)       # -> (Bt, R, C)

    row2 = row.reshape(bt * n_row, e_dim)     # (Bt*R, E)
    col2 = col.reshape(bt * n_col, e_dim)     # (Bt*C, E)
    cost2 = cost.reshape(bt * n_row, n_col)   # (Bt*R, C)

    # QKV projections: bf16 operands, f32 MXU accumulation (bias-free Linear).
    row_bf = row2.astype(jnp.bfloat16)
    col_bf = col2.astype(jnp.bfloat16)
    q = jnp.dot(row_bf, wq_ref[...], preferred_element_type=jnp.float32)  # (Bt*R, H*D)
    k = jnp.dot(col_bf, wk_ref[...], preferred_element_type=jnp.float32)  # (Bt*C, H*D)
    v = jnp.dot(col_bf, wv_ref[...], preferred_element_type=jnp.float32)  # (Bt*C, H*D)

    wcomb = wcomb_ref[...]                    # (H*D, E) bf16
    mho = jnp.zeros((bt * n_row, e_dim), jnp.float32)

    # Per-head mixed-score attention; short unrolled loop over heads.
    for h in range(H):
        lo, hi = h * D, (h + 1) * D
        qh = q[:, lo:hi].reshape(bt, n_row, D)
        kh = k[:, lo:hi].reshape(bt, n_col, D)
        vh = v[:, lo:hi].reshape(bt, n_col, D)

        dp = jnp.einsum('brd,bcd->brc', qh, kh,
                        preferred_element_type=jnp.float32)              # (Bt,R,C)
        dp2 = dp.reshape(bt * n_row, n_col) * inv_sqrt_qkv_dim            # (Bt*R,C)

        # Mixed-score MLP (2 -> M -> 1), accumulated over M:
        #   mixed = b2 + sum_m relu(dp*w0[m] + cost*w1[m] + b1[m]) * w2[m]
        # (SMEM scalar params; no (M, Bt*R, C) intermediate, no VMEM padding.)
        mixed = jnp.zeros_like(dp2)
        for m in range(M):
            pre = dp2 * m1w0_ref[h, m] + cost2 * m1w1_ref[h, m] + m1b_ref[h, m]
            mixed = mixed + jnp.maximum(pre, 0.0) * m2w_ref[h, m]
        mixed = mixed + m2b_ref[h]                                        # (Bt*R,C)

        # Softmax over columns; normalize AFTER the PV matmul (C -> D wide).
        mx = jnp.max(mixed, axis=-1, keepdims=True)
        ex = jnp.exp(mixed - mx)                                          # (Bt*R,C)
        denom = jnp.sum(ex, axis=-1, keepdims=True)                       # (Bt*R,1)
        oh = jnp.einsum('brc,bcd->brd', ex.reshape(bt, n_row, n_col), vh,
                        preferred_element_type=jnp.float32)               # (Bt,R,D)
        oh2 = oh.reshape(bt * n_row, D) * pl.reciprocal(denom, approx=True)

        # Fold multi_head_combine into the head loop (no (Bt*R, H*D) scratch).
        mho = mho + jnp.dot(oh2.astype(jnp.bfloat16), wcomb[lo:hi, :],
                            preferred_element_type=jnp.float32)           # (Bt*R,E)

    mho = mho + bcomb_ref[...]

    # Add & instance-norm 1
    out1 = _instance_norm(row + mho.reshape(bt, n_row, e_dim),
                          g1_ref[...], be1_ref[...])                      # (Bt,R,E)

    # Feed-forward: W2(relu(W1(x))) -- bf16 operands, f32 accumulation.
    hdn = jnp.maximum(
        jnp.dot(out1.reshape(bt * n_row, e_dim).astype(jnp.bfloat16), w1_ref[...],
                preferred_element_type=jnp.float32) + b1_ref[...], 0.0)   # (Bt*R,F)
    ff = jnp.dot(hdn.astype(jnp.bfloat16), w2_ref[...],
                 preferred_element_type=jnp.float32) + b2_ref[...]        # (Bt*R,E)

    # Add & instance-norm 2
    out_ref[...] = _instance_norm(out1 + ff.reshape(bt, n_row, e_dim),
                                  g2_ref[...], be2_ref[...])


# Kernel argument order for the weight inputs.
_VMEM_KEYS = ("WqT", "WkT", "WvT", "WcombT", "bcomb",
              "gamma1", "beta1", "W1T", "b1", "W2T", "b2", "gamma2", "beta2")
_BF16_KEYS = frozenset({"WqT", "WkT", "WvT", "WcombT", "W1T", "W2T"})
_SMEM_KEYS = ("m1w0", "m1w1", "m1b", "m2w", "m2b")


def _full_spec(arr):
    zeros = (0,) * arr.ndim
    return pl.BlockSpec(arr.shape, lambda b, _z=zeros: _z)


def _vmem_bytes_estimate(block_b, R, C, E, HD, F, transpose_cost):
    f32, bf16 = 4, 2
    # pipelined data blocks (row, col, cost, out), double-buffered
    data = 2 * block_b * (R * E + C * E + R * C + R * E) * f32
    # grid-invariant weights (still double-buffered by the pipeline; TODO Buffered(1))
    weights = 2 * ((3 * E * HD + HD * E + E * F + F * E) * bf16
                   + (6 * E + F + E) * f32)
    # rough transient live set inside one invocation
    live = block_b * (R * HD + 2 * C * HD          # q, k, v
                      + 4 * R * C                   # dp / mixed / exp (+ slack)
                      + 3 * R * E + R * F) * f32    # mho / out1 / ff / hidden
    if transpose_cost:
        live += block_b * R * C * f32               # transposed cost copy
    return data + weights + live


def _pick_block_b(B, R, C, E, HD, F, transpose_cost, budget_bytes):
    if R % 8 != 0 or C % 8 != 0:
        return 1  # (Bt, N, E) -> (Bt*N, E) flattening not sublane aligned
    for b in range(min(B, 8), 0, -1):
        if B % b != 0:
            continue
        if B >= 2 and B // b < 2:
            continue  # keep >= 2 grid steps so v7x's second TensorCore has work
        if _vmem_bytes_estimate(b, R, C, E, HD, F, transpose_cost) <= budget_bytes:
            return b
    return 1


def _cost_estimate(B, R, C, E, H, D, M, F):
    HD = H * D
    matmul_flops = 2 * B * (R * E * HD + 2 * C * E * HD   # QKV projections
                            + 2 * H * R * C * D           # QK^T and PV
                            + R * HD * E                  # multi-head combine
                            + R * E * F + R * F * E)      # feed-forward
    vpu_flops = B * H * R * C * (7 * M + 6) + 12 * B * R * E
    transcendentals = B * H * R * C + 2 * B * E           # exp + rsqrt
    bytes_accessed = (4 * (2 * B * R * E + B * C * E + B * R * C)
                      + 2 * (3 * E * HD + HD * E + E * F + F * E)
                      + 4 * (6 * E + F + E + 4 * H * M + H))
    return pl.CostEstimate(flops=int(matmul_flops + vpu_flops),
                           transcendentals=int(transcendentals),
                           bytes_accessed=int(bytes_accessed))


def encoding_block(row_emb, col_emb, cost_mat, params, *, head_num, qkv_dim,
                   transpose_cost=False, block_b=None,
                   vmem_budget_bytes=32 * 1024 * 1024):
    B, R, E = row_emb.shape
    C = col_emb.shape[1]
    HD = head_num * qkv_dim
    F = params["W1T"].shape[1]
    M = params["m1w0"].shape[1]

    if block_b is None:
        block_b = _pick_block_b(B, R, C, E, HD, F, transpose_cost,
                                vmem_budget_bytes)
    assert B % block_b == 0

    kernel = functools.partial(
        encoding_block_kernel,
        head_num=head_num, qkv_dim=qkv_dim, ms_hidden_dim=M,
        inv_sqrt_qkv_dim=1.0 / (float(qkv_dim) ** 0.5),
        transpose_cost=transpose_cost)

    # Matmul weights stored/streamed as bf16 (halves their DMA); rest f32.
    vmem_weights = [params[k].astype(jnp.bfloat16) if k in _BF16_KEYS
                    else params[k] for k in _VMEM_KEYS]
    smem_params = [params[k] for k in _SMEM_KEYS]

    cost_block = (block_b,) + cost_mat.shape[1:]
    in_specs = (
        [pl.BlockSpec((block_b, R, E), lambda b: (b, 0, 0)),
         pl.BlockSpec((block_b, C, E), lambda b: (b, 0, 0)),
         pl.BlockSpec(cost_block, lambda b: (b, 0, 0))]
        # Grid-invariant weights: full-array VMEM blocks (constant block index
        # -> DMA'd once).  TODO(synk): pipeline_mode=pl.Buffered(1) to halve
        # their VMEM footprint once single-buffering is required.
        + [_full_spec(w) for w in vmem_weights]
        # Mixed-score MLP scalars straight into SMEM (no (8,128) tile padding).
        + [pl.BlockSpec(memory_space=pltpu.MemorySpace.SMEM)
           for _ in smem_params]
    )

    return pl.pallas_call(
        kernel,
        out_shape=jax.ShapeDtypeStruct((B, R, E), jnp.float32),
        grid=(B // block_b,),
        in_specs=in_specs,
        out_specs=pl.BlockSpec((block_b, R, E), lambda b: (b, 0, 0)),
        compiler_params=pltpu.CompilerParams(
            dimension_semantics=("parallel",),
            vmem_limit_bytes=int(vmem_budget_bytes)),
        cost_estimate=_cost_estimate(B, R, C, E, head_num, qkv_dim, M, F),
    )(row_emb, col_emb, cost_mat, *vmem_weights, *smem_params)


def encoder_layer(row_emb, col_emb, cost_mat, row_params, col_params, *,
                  head_num, qkv_dim):
    kw = dict(head_num=head_num, qkv_dim=qkv_dim)
    row_out = encoding_block(row_emb, col_emb, cost_mat, row_params,
                             transpose_cost=False, **kw)
    # Same (untransposed) cost matrix; the transpose happens on the VMEM tile
    # inside the kernel -- no extra HBM array / round trip.
    col_out = encoding_block(col_emb, row_emb, cost_mat, col_params,
                             transpose_cost=True, **kw)
    return row_out, col_out


def init_encoding_block_params(key, *, embedding_dim, head_num, qkv_dim,
                               ms_hidden_dim, ff_hidden_dim):
    E, H, D, M, F = embedding_dim, head_num, qkv_dim, ms_hidden_dim, ff_hidden_dim
    HD = H * D
    ks = jax.random.split(key, 16)

    def u(k, shape, bound):
        return jax.random.uniform(k, shape, jnp.float32, -bound, bound)

    lin = lambda k, fan_in, shape: u(k, shape, 1.0 / (fan_in ** 0.5))
    mix1_init = (1.0 / 2.0) ** 0.5
    mix2_init = (1.0 / 16.0) ** 0.5

    return {
        # nn.Linear weights stored pre-transposed: (in_features, out_features)
        "WqT": lin(ks[0], E, (E, HD)),
        "WkT": lin(ks[1], E, (E, HD)),
        "WvT": lin(ks[2], E, (E, HD)),
        "WcombT": lin(ks[3], HD, (HD, E)),
        "bcomb": lin(ks[4], HD, (1, E)),
        "gamma1": jnp.ones((1, E), jnp.float32),
        "beta1": jnp.zeros((1, E), jnp.float32),
        "W1T": lin(ks[5], E, (E, F)),
        "b1": lin(ks[6], E, (1, F)),
        "W2T": lin(ks[7], F, (F, E)),
        "b2": lin(ks[8], F, (1, E)),
        "gamma2": jnp.ones((1, E), jnp.float32),
        "beta2": jnp.zeros((1, E), jnp.float32),
        # MixedScore_MultiHeadAttention per-head 2->M->1 MLP params, stored as
        # compact (H, M)/(H,) scalars (kernel reads them from SMEM).
        "m1w0": u(ks[9], (H, M), mix1_init),    # mix1_weight[:, 0, :]
        "m1w1": u(ks[10], (H, M), mix1_init),   # mix1_weight[:, 1, :]
        "m1b": u(ks[11], (H, M), mix1_init),
        "m2w": u(ks[12], (H, M), mix2_init),    # mix2_weight[:, :, 0]
        "m2b": u(ks[13], (H,), mix2_init),
    }


def encoding_block_reference(row_emb, col_emb, cost_mat, p, *, head_num,
                             qkv_dim, matmul_dtype=jnp.float32):
    # Pure-JAX forward matching the PyTorch EncodingBlock semantics.
    # matmul_dtype=bf16 mirrors the kernel's matmul-operand casting exactly.
    B, R, E = row_emb.shape
    C = col_emb.shape[1]
    H, D = head_num, qkv_dim

    def mm(a, b):
        return jnp.dot(a.astype(matmul_dtype), b.astype(matmul_dtype),
                       preferred_element_type=jnp.float32)

    q = mm(row_emb.reshape(B * R, E), p["WqT"]).reshape(B, R, H, D).transpose(0, 2, 1, 3)
    k = mm(col_emb.reshape(B * C, E), p["WkT"]).reshape(B, C, H, D).transpose(0, 2, 1, 3)
    v = mm(col_emb.reshape(B * C, E), p["WvT"]).reshape(B, C, H, D).transpose(0, 2, 1, 3)

    dp = jnp.einsum('bhrd,bhcd->bhrc', q, k) / (float(D) ** 0.5)
    w0, w1, b1m, w2, b2m = p["m1w0"], p["m1w1"], p["m1b"], p["m2w"], p["m2b"]
    pre = (dp[..., None] * w0[None, :, None, None, :]
           + cost_mat[:, None, :, :, None] * w1[None, :, None, None, :]
           + b1m[None, :, None, None, :])
    mixed = (jnp.sum(jax.nn.relu(pre) * w2[None, :, None, None, :], axis=-1)
             + b2m[None, :, None, None])
    attn = jax.nn.softmax(mixed, axis=-1)
    oh = jnp.einsum('bhrc,bhcd->bhrd', attn, v)
    out_concat = oh.transpose(0, 2, 1, 3).reshape(B * R, H * D)
    mho = mm(out_concat, p["WcombT"]) + p["bcomb"]

    def inorm(x, g, b):
        m = x.mean(axis=1, keepdims=True)
        vr = ((x - m) ** 2).mean(axis=1, keepdims=True)
        return (x - m) / jnp.sqrt(vr + _EPS) * g + b

    out1 = inorm(row_emb + mho.reshape(B, R, E), p["gamma1"], p["beta1"])
    hdn = jax.nn.relu(mm(out1.reshape(B * R, E), p["W1T"]) + p["b1"])
    ff = mm(hdn, p["W2T"]) + p["b2"]
    return inorm(out1 + ff.reshape(B, R, E), p["gamma2"], p["beta2"])


if __name__ == "__main__":
    # Small, forward-consistent shapes (R, C sublane-aligned for batch packing).
    B, R, C = 2, 8, 16
    E, H, D, M, F = 32, 4, 8, 16, 64   # embedding, heads, qkv_dim, ms_hidden, ff_hidden

    key = jax.random.PRNGKey(0)
    k_row, k_col, k_cost, k_p1, k_p2 = jax.random.split(key, 5)

    row_emb = jax.random.normal(k_row, (B, R, E), jnp.float32)
    col_emb = jax.random.normal(k_col, (B, C, E), jnp.float32)
    cost_mat = jax.random.uniform(k_cost, (B, R, C), jnp.float32)

    hp = dict(embedding_dim=E, head_num=H, qkv_dim=D,
              ms_hidden_dim=M, ff_hidden_dim=F)
    row_params = init_encoding_block_params(k_p1, **hp)
    col_params = init_encoding_block_params(k_p2, **hp)

    row_out, col_out = encoder_layer(row_emb, col_emb, cost_mat,
                                     row_params, col_params,
                                     head_num=H, qkv_dim=D)
    jax.block_until_ready((row_out, col_out))
    assert row_out.shape == (B, R, E) and col_out.shape == (B, C, E)

    cost_T = jnp.transpose(cost_mat, (0, 2, 1))

    # 1) Tight check: reference with identical bf16 matmul-operand casting
    #    (differences: accumulation order, approx reciprocal ~1e-3 rel).
    row_ref_bf = encoding_block_reference(row_emb, col_emb, cost_mat, row_params,
                                          head_num=H, qkv_dim=D,
                                          matmul_dtype=jnp.bfloat16)
    col_ref_bf = encoding_block_reference(col_emb, row_emb, cost_T, col_params,
                                          head_num=H, qkv_dim=D,
                                          matmul_dtype=jnp.bfloat16)
    err_bf = max(float(jnp.max(jnp.abs(row_out - row_ref_bf))),
                 float(jnp.max(jnp.abs(col_out - col_ref_bf))))
    assert err_bf < 2e-2, f"mismatch vs bf16-mirrored reference: {err_bf}"

    # 2) Semantic check vs the pure-f32 module math; the residual here is
    #    dominated by bf16 matmul-operand rounding, not kernel logic.
    row_ref = encoding_block_reference(row_emb, col_emb, cost_mat, row_params,
                                       head_num=H, qkv_dim=D)
    col_ref = encoding_block_reference(col_emb, row_emb, cost_T, col_params,
                                       head_num=H, qkv_dim=D)
    err_f32 = max(float(jnp.max(jnp.abs(row_out - row_ref))),
                  float(jnp.max(jnp.abs(col_out - col_ref))))
    assert err_f32 < 1e-1, f"mismatch vs f32 reference: {err_f32}"

    print("KERNEL_OK")
</pallas_src>

<mosaic_0001>
module attributes {stable_mosaic.version = 11 : i64} {
  func.func @encoding_block_kernel(%arg0: i32, %arg1: memref<1x8x32xf32, #tpu.memory_space<vmem>>, %arg2: memref<1x16x32xf32, #tpu.memory_space<vmem>>, %arg3: memref<1x8x16xf32, #tpu.memory_space<vmem>>, %arg4: memref<32x32xbf16, #tpu.memory_space<vmem>>, %arg5: memref<32x32xbf16, #tpu.memory_space<vmem>>, %arg6: memref<32x32xbf16, #tpu.memory_space<vmem>>, %arg7: memref<32x32xbf16, #tpu.memory_space<vmem>>, %arg8: memref<1x32xf32, #tpu.memory_space<vmem>>, %arg9: memref<1x32xf32, #tpu.memory_space<vmem>>, %arg10: memref<1x32xf32, #tpu.memory_space<vmem>>, %arg11: memref<32x64xbf16, #tpu.memory_space<vmem>>, %arg12: memref<1x64xf32, #tpu.memory_space<vmem>>, %arg13: memref<64x32xbf16, #tpu.memory_space<vmem>>, %arg14: memref<1x32xf32, #tpu.memory_space<vmem>>, %arg15: memref<1x32xf32, #tpu.memory_space<vmem>>, %arg16: memref<1x32xf32, #tpu.memory_space<vmem>>, %arg17: memref<4x16xf32, #tpu.memory_space<smem>>, %arg18: memref<4x16xf32, #tpu.memory_space<smem>>, %arg19: memref<4x16xf32, #tpu.memory_space<smem>>, %arg20: memref<4x16xf32, #tpu.memory_space<smem>>, %arg21: memref<4xf32, #tpu.memory_space<smem>>, %arg22: memref<1x8x32xf32, #tpu.memory_space<vmem>>) attributes {dimension_semantics = [#tpu.dimension_semantics<parallel>], iteration_bounds = array<i64: 2>, scalar_prefetch = 0 : i64, scratch_operands = 0 : i64, tpu.core_type = #tpu.core_type<tc>, window_params = [{transform_indices = @transform_0, window_bounds = array<i64: 1, 8, 32>}, {transform_indices = @transform_1, window_bounds = array<i64: 1, 16, 32>}, {transform_indices = @transform_2, window_bounds = array<i64: 1, 8, 16>}, {pipeline_mode = #tpu.pipeline_mode<synchronous>, transform_indices = @transform_3, window_bounds = array<i64: 32, 32>}, {pipeline_mode = #tpu.pipeline_mode<synchronous>, transform_indices = @transform_4, window_bounds = array<i64: 32, 32>}, {pipeline_mode = #tpu.pipeline_mode<synchronous>, transform_indices = @transform_5, window_bounds = array<i64: 32, 32>}, {pipeline_mode = #tpu.pipeline_mode<synchronous>, transform_indices = @transform_6, window_bounds = array<i64: 32, 32>}, {pipeline_mode = #tpu.pipeline_mode<synchronous>, transform_indices = @transform_7, window_bounds = array<i64: 1, 32>}, {pipeline_mode = #tpu.pipeline_mode<synchronous>, transform_indices = @transform_8, window_bounds = array<i64: 1, 32>}, {pipeline_mode = #tpu.pipeline_mode<synchronous>, transform_indices = @transform_9, window_bounds = array<i64: 1, 32>}, {pipeline_mode = #tpu.pipeline_mode<synchronous>, transform_indices = @transform_10, window_bounds = array<i64: 32, 64>}, {pipeline_mode = #tpu.pipeline_mode<synchronous>, transform_indices = @transform_11, window_bounds = array<i64: 1, 64>}, {pipeline_mode = #tpu.pipeline_mode<synchronous>, transform_indices = @transform_12, window_bounds = array<i64: 64, 32>}, {pipeline_mode = #tpu.pipeline_mode<synchronous>, transform_indices = @transform_13, window_bounds = array<i64: 1, 32>}, {pipeline_mode = #tpu.pipeline_mode<synchronous>, transform_indices = @transform_14, window_bounds = array<i64: 1, 32>}, {pipeline_mode = #tpu.pipeline_mode<synchronous>, transform_indices = @transform_15, window_bounds = array<i64: 1, 32>}, {transform_indices = @transform_16, window_bounds = array<i64: 4, 16>}, {transform_indices = @transform_17, window_bounds = array<i64: 4, 16>}, {transform_indices = @transform_18, window_bounds = array<i64: 4, 16>}, {transform_indices = @transform_19, window_bounds = array<i64: 4, 16>}, {transform_indices = @transform_20, window_bounds = array<i64: 4>}, {transform_indices = @transform_21, window_bounds = array<i64: 1, 8, 32>}]} {
    %c0 = arith.constant 0 : index
    %c0_0 = arith.constant 0 : index
    %c0_1 = arith.constant 0 : index
    %0 = vector.load %arg1[%c0, %c0_0, %c0_1] : memref<1x8x32xf32, #tpu.memory_space<vmem>>, vector<1x8x32xf32>
    %c0_2 = arith.constant 0 : index
    %c0_3 = arith.constant 0 : index
    %c0_4 = arith.constant 0 : index
    %1 = vector.load %arg2[%c0_2, %c0_3, %c0_4] : memref<1x16x32xf32, #tpu.memory_space<vmem>>, vector<1x16x32xf32>
    %c0_5 = arith.constant 0 : index
    %c0_6 = arith.constant 0 : index
    %c0_7 = arith.constant 0 : index
    %2 = vector.load %arg3[%c0_5, %c0_6, %c0_7] : memref<1x8x16xf32, #tpu.memory_space<vmem>>, vector<1x8x16xf32>
    %3 = vector.shape_cast %0 : vector<1x8x32xf32> to vector<8x32xf32>
    %4 = vector.shape_cast %1 : vector<1x16x32xf32> to vector<16x32xf32>
    %5 = vector.shape_cast %2 : vector<1x8x16xf32> to vector<8x16xf32>
    %6 = arith.truncf %3 : vector<8x32xf32> to vector<8x32xbf16>
    %7 = arith.truncf %4 : vector<16x32xf32> to vector<16x32xbf16>
    %c0_8 = arith.constant 0 : index
    %c0_9 = arith.constant 0 : index
    %8 = vector.load %arg4[%c0_8, %c0_9] : memref<32x32xbf16, #tpu.memory_space<vmem>>, vector<32x32xbf16>
    %cst = arith.constant dense<0.000000e+00> : vector<8x32xf32>
    %9 = tpu.matmul %6, %8, %cst {dimension_numbers = #tpu.dot_dimension_numbers<[1], [0], [0], [1], [0, 0, 1, 1], [], []>} : vector<8x32xbf16>, vector<32x32xbf16>, vector<8x32xf32> -> vector<8x32xf32>
    %c0_10 = arith.constant 0 : index
    %c0_11 = arith.constant 0 : index
    %10 = vector.load %arg5[%c0_10, %c0_11] : memref<32x32xbf16, #tpu.memory_space<vmem>>, vector<32x32xbf16>
    %cst_12 = arith.constant dense<0.000000e+00> : vector<16x32xf32>
    %11 = tpu.matmul %7, %10, %cst_12 {dimension_numbers = #tpu.dot_dimension_numbers<[1], [0], [0], [1], [0, 0, 1, 1], [], []>} : vector<16x32xbf16>, vector<32x32xbf16>, vector<16x32xf32> -> vector<16x32xf32>
    %c0_13 = arith.constant 0 : index
    %c0_14 = arith.constant 0 : index
    %12 = vector.load %arg6[%c0_13, %c0_14] : memref<32x32xbf16, #tpu.memory_space<vmem>>, vector<32x32xbf16>
    %cst_15 = arith.constant dense<0.000000e+00> : vector<16x32xf32>
    %13 = tpu.matmul %7, %12, %cst_15 {dimension_numbers = #tpu.dot_dimension_numbers<[1], [0], [0], [1], [0, 0, 1, 1], [], []>} : vector<16x32xbf16>, vector<32x32xbf16>, vector<16x32xf32> -> vector<16x32xf32>
    %c0_16 = arith.constant 0 : index
    %c0_17 = arith.constant 0 : index
    %14 = vector.load %arg7[%c0_16, %c0_17] : memref<32x32xbf16, #tpu.memory_space<vmem>>, vector<32x32xbf16>
    %cst_18 = arith.constant 0.000000e+00 : f32
    %15 = vector.broadcast %cst_18 : f32 to vector<8x32xf32>
    %16 = vector.extract_strided_slice %9 {offsets = [0, 0], sizes = [8, 8], strides = [1, 1]} : vector<8x32xf32> to vector<8x8xf32>
    %17 = vector.shape_cast %16 : vector<8x8xf32> to vector<1x8x8xf32>
    %18 = vector.extract_strided_slice %11 {offsets = [0, 0], sizes = [16, 8], strides = [1, 1]} : vector<16x32xf32> to vector<16x8xf32>
    %19 = vector.shape_cast %18 : vector<16x8xf32> to vector<1x16x8xf32>
    %20 = vector.extract_strided_slice %13 {offsets = [0, 0], sizes = [16, 8], strides = [1, 1]} : vector<16x32xf32> to vector<16x8xf32>
    %21 = vector.shape_cast %20 : vector<16x8xf32> to vector<1x16x8xf32>
    "tpu.trace_start"() <{level = 10 : i32, message = "brd,bcd->brc"}> : () -> ()
    %cst_19 = arith.constant dense<0.000000e+00> : vector<1x8x16xf32>
    %22 = tpu.matmul %17, %19, %cst_19 {dimension_numbers = #tpu.dot_dimension_numbers<[2], [2], [1], [1], [0, 0, 0, 1, 1, 1], [0], [0]>} : vector<1x8x8xf32>, vector<1x16x8xf32>, vector<1x8x16xf32> -> vector<1x8x16xf32>
    "tpu.trace_stop"() : () -> ()
    %23 = vector.shape_cast %22 : vector<1x8x16xf32> to vector<8x16xf32>
    %cst_20 = arith.constant 0.353553385 : f32
    %24 = vector.broadcast %cst_20 : f32 to vector<8x16xf32>
    %25 = arith.mulf %23, %24 : vector<8x16xf32>
    %cst_21 = arith.constant 0.000000e+00 : f32
    %26 = vector.broadcast %cst_21 : f32 to vector<8x16xf32>
    %c0_22 = arith.constant 0 : index
    %c0_23 = arith.constant 0 : index
    %27 = memref.load %arg17[%c0_22, %c0_23] : memref<4x16xf32, #tpu.memory_space<smem>>
    %28 = vector.broadcast %27 : f32 to vector<8x16xf32>
    %29 = arith.mulf %25, %28 : vector<8x16xf32>
    %c0_24 = arith.constant 0 : index
    %c0_25 = arith.constant 0 : index
    %30 = memref.load %arg18[%c0_24, %c0_25] : memref<4x16xf32, #tpu.memory_space<smem>>
    %31 = vector.broadcast %30 : f32 to vector<8x16xf32>
    %32 = arith.mulf %5, %31 : vector<8x16xf32>
    %33 = arith.addf %29, %32 : vector<8x16xf32>
    %c0_26 = arith.constant 0 : index
    %c0_27 = arith.constant 0 : index
    %34 = memref.load %arg19[%c0_26, %c0_27] : memref<4x16xf32, #tpu.memory_space<smem>>
    %35 = vector.broadcast %34 : f32 to vector<8x16xf32>
    %36 = arith.addf %33, %35 : vector<8x16xf32>
    %cst_28 = arith.constant 0.000000e+00 : f32
    %37 = vector.broadcast %cst_28 : f32 to vector<8x16xf32>
    %38 = arith.maximumf %36, %37 : vector<8x16xf32>
    %c0_29 = arith.constant 0 : index
    %c0_30 = arith.constant 0 : index
    %39 = memref.load %arg20[%c0_29, %c0_30] : memref<4x16xf32, #tpu.memory_space<smem>>
    %40 = vector.broadcast %39 : f32 to vector<8x16xf32>
    %41 = arith.mulf %38, %40 : vector<8x16xf32>
    %42 = arith.addf %26, %41 : vector<8x16xf32>
    %c0_31 = arith.constant 0 : index
    %c1 = arith.constant 1 : index
    %43 = memref.load %arg17[%c0_31, %c1] : memref<4x16xf32, #tpu.memory_space<smem>>
    %44 = vector.broadcast %43 : f32 to vector<8x16xf32>
    %45 = arith.mulf %25, %44 : vector<8x16xf32>
    %c0_32 = arith.constant 0 : index
    %c1_33 = arith.constant 1 : index
    %46 = memref.load %arg18[%c0_32, %c1_33] : memref<4x16xf32, #tpu.memory_space<smem>>
    %47 = vector.broadcast %46 : f32 to vector<8x16xf32>
    %48 = arith.mulf %5, %47 : vector<8x16xf32>
    %49 = arith.addf %45, %48 : vector<8x16xf32>
    %c0_34 = arith.constant 0 : index
    %c1_35 = arith.constant 1 : index
    %50 = memref.load %arg19[%c0_34, %c1_35] : memref<4x16xf32, #tpu.memory_space<smem>>
    %51 = vector.broadcast %50 : f32 to vector<8x16xf32>
    %52 = arith.addf %49, %51 : vector<8x16xf32>
    %cst_36 = arith.constant 0.000000e+00 : f32
    %53 = vector.broadcast %cst_36 : f32 to vector<8x16xf32>
    %54 = arith.maximumf %52, %53 : vector<8x16xf32>
    %c0_37 = arith.constant 0 : index
    %c1_38 = arith.constant 1 : index
    %55 = memref.load %arg20[%c0_37, %c1_38] : memref<4x16xf32, #tpu.memory_space<smem>>
    %56 = vector.broadcast %55 : f32 to vector<8x16xf32>
    %57 = arith.mulf %54, %56 : vector<8x16xf32>
    %58 = arith.addf %42, %57 : vector<8x16xf32>
    %c0_39 = arith.constant 0 : index
    %c2 = arith.constant 2 : index
    %59 = memref.load %arg17[%c0_39, %c2] : memref<4x16xf32, #tpu.memory_space<smem>>
    %60 = vector.broadcast %59 : f32 to vector<8x16xf32>
    %61 = arith.mulf %25, %60 : vector<8x16xf32>
    %c0_40 = arith.constant 0 : index
    %c2_41 = arith.constant 2 : index
    %62 = memref.load %arg18[%c0_40, %c2_41] : memref<4x16xf32, #tpu.memory_space<smem>>
    %63 = vector.broadcast %62 : f32 to vector<8x16xf32>
    %64 = arith.mulf %5, %63 : vector<8x16xf32>
    %65 = arith.addf %61, %64 : vector<8x16xf32>
    %c0_42 = arith.constant 0 : index
    %c2_43 = arith.constant 2 : index
    %66 = memref.load %arg19[%c0_42, %c2_43] : memref<4x16xf32, #tpu.memory_space<smem>>
    %67 = vector.broadcast %66 : f32 to vector<8x16xf32>
    %68 = arith.addf %65, %67 : vector<8x16xf32>
    %cst_44 = arith.constant 0.000000e+00 : f32
    %69 = vector.broadcast %cst_44 : f32 to vector<8x16xf32>
    %70 = arith.maximumf %68, %69 : vector<8x16xf32>
    %c0_45 = arith.constant 0 : index
    %c2_46 = arith.constant 2 : index
    %71 = memref.load %arg20[%c0_45, %c2_46] : memref<4x16xf32, #tpu.memory_space<smem>>
    %72 = vector.broadcast %71 : f32 to vector<8x16xf32>
    %73 = arith.mulf %70, %72 : vector<8x16xf32>
    %74 = arith.addf %58, %73 : vector<8x16xf32>
    %c0_47 = arith.constant 0 : index
    %c3 = arith.constant 3 : index
    %75 = memref.load %arg17[%c0_47, %c3] : memref<4x16xf32, #tpu.memory_space<smem>>
    %76 = vector.broadcast %75 : f32 to vector<8x16xf32>
    %77 = arith.mulf %25, %76 : vector<8x16xf32>
    %c0_48 = arith.constant 0 : index
    %c3_49 = arith.constant 3 : index
    %78 = memref.load %arg18[%c0_48, %c3_49] : memref<4x16xf32, #tpu.memory_space<smem>>
    %79 = vector.broadcast %78 : f32 to vector<8x16xf32>
    %80 = arith.mulf %5, %79 : vector<8x16xf32>
    %81 = arith.addf %77, %80 : vector<8x16xf32>
    %c0_50 = arith.constant 0 : index
    %c3_51 = arith.constant 3 : index
    %82 = memref.load %arg19[%c0_50, %c3_51] : memref<4x16xf32, #tpu.memory_space<smem>>
    %83 = vector.broadcast %82 : f32 to vector<8x16xf32>
    %84 = arith.addf %81, %83 : vector<8x16xf32>
    %cst_52 = arith.constant 0.000000e+00 : f32
    %85 = vector.broadcast %cst_52 : f32 to vector<8x16xf32>
    %86 = arith.maximumf %84, %85 : vector<8x16xf32>
    %c0_53 = arith.constant 0 : index
    %c3_54 = arith.constant 3 : index
    %87 = memref.load %arg20[%c0_53, %c3_54] : memref<4x16xf32, #tpu.memory_space<smem>>
    %88 = vector.broadcast %87 : f32 to vector<8x16xf32>
    %89 = arith.mulf %86, %88 : vector<8x16xf32>
    %90 = arith.addf %74, %89 : vector<8x16xf32>
    %c0_55 = arith.constant 0 : index
    %c4 = arith.constant 4 : index
    %91 = memref.load %arg17[%c0_55, %c4] : memref<4x16xf32, #tpu.memory_space<smem>>
    %92 = vector.broadcast %91 : f32 to vector<8x16xf32>
    %93 = arith.mulf %25, %92 : vector<8x16xf32>
    %c0_56 = arith.constant 0 : index
    %c4_57 = arith.constant 4 : index
    %94 = memref.load %arg18[%c0_56, %c4_57] : memref<4x16xf32, #tpu.memory_space<smem>>
    %95 = vector.broadcast %94 : f32 to vector<8x16xf32>
    %96 = arith.mulf %5, %95 : vector<8x16xf32>
    %97 = arith.addf %93, %96 : vector<8x16xf32>
    %c0_58 = arith.constant 0 : index
    %c4_59 = arith.constant 4 : index
    %98 = memref.load %arg19[%c0_58, %c4_59] : memref<4x16xf32, #tpu.memory_space<smem>>
    %99 = vector.broadcast %98 : f32 to vector<8x16xf32>
    %100 = arith.addf %97, %99 : vector<8x16xf32>
    %cst_60 = arith.constant 0.000000e+00 : f32
    %101 = vector.broadcast %cst_60 : f32 to vector<8x16xf32>
    %102 = arith.maximumf %100, %101 : vector<8x16xf32>
    %c0_61 = arith.constant 0 : index
    %c4_62 = arith.constant 4 : index
    %103 = memref.load %arg20[%c0_61, %c4_62] : memref<4x16xf32, #tpu.memory_space<smem>>
    %104 = vector.broadcast %103 : f32 to vector<8x16xf32>
    %105 = arith.mulf %102, %104 : vector<8x16xf32>
    %106 = arith.addf %90, %105 : vector<8x16xf32>
    %c0_63 = arith.constant 0 : index
    %c5 = arith.constant 5 : index
    %107 = memref.load %arg17[%c0_63, %c5] : memref<4x16xf32, #tpu.memory_space<smem>>
    %108 = vector.broadcast %107 : f32 to vector<8x16xf32>
    %109 = arith.mulf %25, %108 : vector<8x16xf32>
    %c0_64 = arith.constant 0 : index
    %c5_65 = arith.constant 5 : index
    %110 = memref.load %arg18[%c0_64, %c5_65] : memref<4x16xf32, #tpu.memory_space<smem>>
    %111 = vector.broadcast %110 : f32 to vector<8x16xf32>
    %112 = arith.mulf %5, %111 : vector<8x16xf32>
    %113 = arith.addf %109, %112 : vector<8x16xf32>
    %c0_66 = arith.constant 0 : index
    %c5_67 = arith.constant 5 : index
    %114 = memref.load %arg19[%c0_66, %c5_67] : memref<4x16xf32, #tpu.memory_space<smem>>
    %115 = vector.broadcast %114 : f32 to vector<8x16xf32>
    %116 = arith.addf %113, %115 : vector<8x16xf32>
    %cst_68 = arith.constant 0.000000e+00 : f32
    %117 = vector.broadcast %cst_68 : f32 to vector<8x16xf32>
    %118 = arith.maximumf %116, %117 : vector<8x16xf32>
    %c0_69 = arith.constant 0 : index
    %c5_70 = arith.constant 5 : index
    %119 = memref.load %arg20[%c0_69, %c5_70] : memref<4x16xf32, #tpu.memory_space<smem>>
    %120 = vector.broadcast %119 : f32 to vector<8x16xf32>
    %121 = arith.mulf %118, %120 : vector<8x16xf32>
    %122 = arith.addf %106, %121 : vector<8x16xf32>
    %c0_71 = arith.constant 0 : index
    %c6 = arith.constant 6 : index
    %123 = memref.load %arg17[%c0_71, %c6] : memref<4x16xf32, #tpu.memory_space<smem>>
    %124 = vector.broadcast %123 : f32 to vector<8x16xf32>
    %125 = arith.mulf %25, %124 : vector<8x16xf32>
    %c0_72 = arith.constant 0 : index
    %c6_73 = arith.constant 6 : index
    %126 = memref.load %arg18[%c0_72, %c6_73] : memref<4x16xf32, #tpu.memory_space<smem>>
    %127 = vector.broadcast %126 : f32 to vector<8x16xf32>
    %128 = arith.mulf %5, %127 : vector<8x16xf32>
    %129 = arith.addf %125, %128 : vector<8x16xf32>
    %c0_74 = arith.constant 0 : index
    %c6_75 = arith.constant 6 : index
    %130 = memref.load %arg19[%c0_74, %c6_75] : memref<4x16xf32, #tpu.memory_space<smem>>
    %131 = vector.broadcast %130 : f32 to vector<8x16xf32>
    %132 = arith.addf %129, %131 : vector<8x16xf32>
    %cst_76 = arith.constant 0.000000e+00 : f32
    %133 = vector.broadcast %cst_76 : f32 to vector<8x16xf32>
    %134 = arith.maximumf %132, %133 : vector<8x16xf32>
    %c0_77 = arith.constant 0 : index
    %c6_78 = arith.constant 6 : index
    %135 = memref.load %arg20[%c0_77, %c6_78] : memref<4x16xf32, #tpu.memory_space<smem>>
    %136 = vector.broadcast %135 : f32 to vector<8x16xf32>
    %137 = arith.mulf %134, %136 : vector<8x16xf32>
    %138 = arith.addf %122, %137 : vector<8x16xf32>
    %c0_79 = arith.constant 0 : index
    %c7 = arith.constant 7 : index
    %139 = memref.load %arg17[%c0_79, %c7] : memref<4x16xf32, #tpu.memory_space<smem>>
    %140 = vector.broadcast %139 : f32 to vector<8x16xf32>
    %141 = arith.mulf %25, %140 : vector<8x16xf32>
    %c0_80 = arith.constant 0 : index
    %c7_81 = arith.constant 7 : index
    %142 = memref.load %arg18[%c0_80, %c7_81] : memref<4x16xf32, #tpu.memory_space<smem>>
    %143 = vector.broadcast %142 : f32 to vector<8x16xf32>
    %144 = arith.mulf %5, %143 : vector<8x16xf32>
    %145 = arith.addf %141, %144 : vector<8x16xf32>
    %c0_82 = arith.constant 0 : index
    %c7_83 = arith.constant 7 : index
    %146 = memref.load %arg19[%c0_82, %c7_83] : memref<4x16xf32, #tpu.memory_space<smem>>
    %147 = vector.broadcast %146 : f32 to vector<8x16xf32>
    %148 = arith.addf %145, %147 : vector<8x16xf32>
    %cst_84 = arith.constant 0.000000e+00 : f32
    %149 = vector.broadcast %cst_84 : f32 to vector<8x16xf32>
    %150 = arith.maximumf %148, %149 : vector<8x16xf32>
    %c0_85 = arith.constant 0 : index
    %c7_86 = arith.constant 7 : index
    %151 = memref.load %arg20[%c0_85, %c7_86] : memref<4x16xf32, #tpu.memory_space<smem>>
    %152 = vector.broadcast %151 : f32 to vector<8x16xf32>
    %153 = arith.mulf %150, %152 : vector<8x16xf32>
    %154 = arith.addf %138, %153 : vector<8x16xf32>
    %c0_87 = arith.constant 0 : index
    %c8 = arith.constant 8 : index
    %155 = memref.load %arg17[%c0_87, %c8] : memref<4x16xf32, #tpu.memory_space<smem>>
    %156 = vector.broadcast %155 : f32 to vector<8x16xf32>
    %157 = arith.mulf %25, %156 : vector<8x16xf32>
    %c0_88 = arith.constant 0 : index
    %c8_89 = arith.constant 8 : index
    %158 = memref.load %arg18[%c0_88, %c8_89] : memref<4x16xf32, #tpu.memory_space<smem>>
    %159 = vector.broadcast %158 : f32 to vector<8x16xf32>
    %160 = arith.mulf %5, %159 : vector<8x16xf32>
    %161 = arith.addf %157, %160 : vector<8x16xf32>
    %c0_90 = arith.constant 0 : index
    %c8_91 = arith.constant 8 : index
    %162 = memref.load %arg19[%c0_90, %c8_91] : memref<4x16xf32, #tpu.memory_space<smem>>
    %163 = vector.broadcast %162 : f32 to vector<8x16xf32>
    %164 = arith.addf %161, %163 : vector<8x16xf32>
    %cst_92 = arith.constant 0.000000e+00 : f32
    %165 = vector.broadcast %cst_92 : f32 to vector<8x16xf32>
    %166 = arith.maximumf %164, %165 : vector<8x16xf32>
    %c0_93 = arith.constant 0 : index
    %c8_94 = arith.constant 8 : index
    %167 = memref.load %arg20[%c0_93, %c8_94] : memref<4x16xf32, #tpu.memory_space<smem>>
    %168 = vector.broadcast %167 : f32 to vector<8x16xf32>
    %169 = arith.mulf %166, %168 : vector<8x16xf32>
    %170 = arith.addf %154, %169 : vector<8x16xf32>
    %c0_95 = arith.constant 0 : index
    %c9 = arith.constant 9 : index
    %171 = memref.load %arg17[%c0_95, %c9] : memref<4x16xf32, #tpu.memory_space<smem>>
    %172 = vector.broadcast %171 : f32 to vector<8x16xf32>
    %173 = arith.mulf %25, %172 : vector<8x16xf32>
    %c0_96 = arith.constant 0 : index
    %c9_97 = arith.constant 9 : index
    %174 = memref.load %arg18[%c0_96, %c9_97] : memref<4x16xf32, #tpu.memory_space<smem>>
    %175 = vector.broadcast %174 : f32 to vector<8x16xf32>
    %176 = arith.mulf %5, %175 : vector<8x16xf32>
    %177 = arith.addf %173, %176 : vector<8x16xf32>
    %c0_98 = arith.constant 0 : index
    %c9_99 = arith.constant 9 : index
    %178 = memref.load %arg19[%c0_98, %c9_99] : memref<4x16xf32, #tpu.memory_space<smem>>
    %179 = vector.broadcast %178 : f32 to vector<8x16xf32>
    %180 = arith.addf %177, %179 : vector<8x16xf32>
    %cst_100 = arith.constant 0.000000e+00 : f32
    %181 = vector.broadcast %cst_100 : f32 to vector<8x16xf32>
    %182 = arith.maximumf %180, %181 : vector<8x16xf32>
    %c0_101 = arith.constant 0 : index
    %c9_102 = arith.constant 9 : index
    %183 = memref.load %arg20[%c0_101, %c9_102] : memref<4x16xf32, #tpu.memory_space<smem>>
    %184 = vector.broadcast %183 : f32 to vector<8x16xf32>
    %185 = arith.mulf %182, %184 : vector<8x16xf32>
    %186 = arith.addf %170, %185 : vector<8x16xf32>
    %c0_103 = arith.constant 0 : index
    %c10 = arith.constant 10 : index
    %187 = memref.load %arg17[%c0_103, %c10] : memref<4x16xf32, #tpu.memory_space<smem>>
    %188 = vector.broadcast %187 : f32 to vector<8x16xf32>
    %189 = arith.mulf %25, %188 : vector<8x16xf32>
    %c0_104 = arith.constant 0 : index
    %c10_105 = arith.constant 10 : index
    %190 = memref.load %arg18[%c0_104, %c10_105] : memref<4x16xf32, #tpu.memory_space<smem>>
    %191 = vector.broadcast %190 : f32 to vector<8x16xf32>
    %192 = arith.mulf %5, %191 : vector<8x16xf32>
    %193 = arith.addf %189, %192 : vector<8x16xf32>
    %c0_106 = arith.constant 0 : index
    %c10_107 = arith.constant 10 : index
    %194 = memref.load %arg19[%c0_106, %c10_107] : memref<4x16xf32, #tpu.memory_space<smem>>
    %195 = vector.broadcast %194 : f32 to vector<8x16xf32>
    %196 = arith.addf %193, %195 : vector<8x16xf32>
    %cst_108 = arith.constant 0.000000e+00 : f32
    %197 = vector.broadcast %cst_108 : f32 to vector<8x16xf32>
    %198 = arith.maximumf %196, %197 : vector<8x16xf32>
    %c0_109 = arith.constant 0 : index
    %c10_110 = arith.constant 10 : index
    %199 = memref.load %arg20[%c0_109, %c10_110] : memref<4x16xf32, #tpu.memory_space<smem>>
    %200 = vector.broadcast %199 : f32 to vector<8x16xf32>
    %201 = arith.mulf %198, %200 : vector<8x16xf32>
    %202 = arith.addf %186, %201 : vector<8x16xf32>
    %c0_111 = arith.constant 0 : index
    %c11 = arith.constant 11 : index
    %203 = memref.load %arg17[%c0_111, %c11] : memref<4x16xf32, #tpu.memory_space<smem>>
    %204 = vector.broadcast %203 : f32 to vector<8x16xf32>
    %205 = arith.mulf %25, %204 : vector<8x16xf32>
    %c0_112 = arith.constant 0 : index
    %c11_113 = arith.constant 11 : index
    %206 = memref.load %arg18[%c0_112, %c11_113] : memref<4x16xf32, #tpu.memory_space<smem>>
    %207 = vector.broadcast %206 : f32 to vector<8x16xf32>
    %208 = arith.mulf %5, %207 : vector<8x16xf32>
    %209 = arith.addf %205, %208 : vector<8x16xf32>
    %c0_114 = arith.constant 0 : index
    %c11_115 = arith.constant 11 : index
    %210 = memref.load %arg19[%c0_114, %c11_115] : memref<4x16xf32, #tpu.memory_space<smem>>
    %211 = vector.broadcast %210 : f32 to vector<8x16xf32>
    %212 = arith.addf %209, %211 : vector<8x16xf32>
    %cst_116 = arith.constant 0.000000e+00 : f32
    %213 = vector.broadcast %cst_116 : f32 to vector<8x16xf32>
    %214 = arith.maximumf %212, %213 : vector<8x16xf32>
    %c0_117 = arith.constant 0 : index
    %c11_118 = arith.constant 11 : index
    %215 = memref.load %arg20[%c0_117, %c11_118] : memref<4x16xf32, #tpu.memory_space<smem>>
    %216 = vector.broadcast %215 : f32 to vector<8x16xf32>
    %217 = arith.mulf %214, %216 : vector<8x16xf32>
    %218 = arith.addf %202, %217 : vector<8x16xf32>
    %c0_119 = arith.constant 0 : index
    %c12 = arith.constant 12 : index
    %219 = memref.load %arg17[%c0_119, %c12] : memref<4x16xf32, #tpu.memory_space<smem>>
    %220 = vector.broadcast %219 : f32 to vector<8x16xf32>
    %221 = arith.mulf %25, %220 : vector<8x16xf32>
    %c0_120 = arith.constant 0 : index
    %c12_121 = arith.constant 12 : index
    %222 = memref.load %arg18[%c0_120, %c12_121] : memref<4x16xf32, #tpu.memory_space<smem>>
    %223 = vector.broadcast %222 : f32 to vector<8x16xf32>
    %224 = arith.mulf %5, %223 : vector<8x16xf32>
    %225 = arith.addf %221, %224 : vector<8x16xf32>
    %c0_122 = arith.constant 0 : index
    %c12_123 = arith.constant 12 : index
    %226 = memref.load %arg19[%c0_122, %c12_123] : memref<4x16xf32, #tpu.memory_space<smem>>
    %227 = vector.broadcast %226 : f32 to vector<8x16xf32>
    %228 = arith.addf %225, %227 : vector<8x16xf32>
    %cst_124 = arith.constant 0.000000e+00 : f32
    %229 = vector.broadcast %cst_124 : f32 to vector<8x16xf32>
    %230 = arith.maximumf %228, %229 : vector<8x16xf32>
    %c0_125 = arith.constant 0 : index
    %c12_126 = arith.constant 12 : index
    %231 = memref.load %arg20[%c0_125, %c12_126] : memref<4x16xf32, #tpu.memory_space<smem>>
    %232 = vector.broadcast %231 : f32 to vector<8x16xf32>
    %233 = arith.mulf %230, %232 : vector<8x16xf32>
    %234 = arith.addf %218, %233 : vector<8x16xf32>
    %c0_127 = arith.constant 0 : index
    %c13 = arith.constant 13 : index
    %235 = memref.load %arg17[%c0_127, %c13] : memref<4x16xf32, #tpu.memory_space<smem>>
    %236 = vector.broadcast %235 : f32 to vector<8x16xf32>
    %237 = arith.mulf %25, %236 : vector<8x16xf32>
    %c0_128 = arith.constant 0 : index
    %c13_129 = arith.constant 13 : index
    %238 = memref.load %arg18[%c0_128, %c13_129] : memref<4x16xf32, #tpu.memory_space<smem>>
    %239 = vector.broadcast %238 : f32 to vector<8x16xf32>
    %240 = arith.mulf %5, %239 : vector<8x16xf32>
    %241 = arith.addf %237, %240 : vector<8x16xf32>
    %c0_130 = arith.constant 0 : index
    %c13_131 = arith.constant 13 : index
    %242 = memref.load %arg19[%c0_130, %c13_131] : memref<4x16xf32, #tpu.memory_space<smem>>
    %243 = vector.broadcast %242 : f32 to vector<8x16xf32>
    %244 = arith.addf %241, %243 : vector<8x16xf32>
    %cst_132 = arith.constant 0.000000e+00 : f32
    %245 = vector.broadcast %cst_132 : f32 to vector<8x16xf32>
    %246 = arith.maximumf %244, %245 : vector<8x16xf32>
    %c0_133 = arith.constant 0 : index
    %c13_134 = arith.constant 13 : index
    %247 = memref.load %arg20[%c0_133, %c13_134] : memref<4x16xf32, #tpu.memory_space<smem>>
    %248 = vector.broadcast %247 : f32 to vector<8x16xf32>
    %249 = arith.mulf %246, %248 : vector<8x16xf32>
    %250 = arith.addf %234, %249 : vector<8x16xf32>
    %c0_135 = arith.constant 0 : index
    %c14 = arith.constant 14 : index
    %251 = memref.load %arg17[%c0_135, %c14] : memref<4x16xf32, #tpu.memory_space<smem>>
    %252 = vector.broadcast %251 : f32 to vector<8x16xf32>
    %253 = arith.mulf %25, %252 : vector<8x16xf32>
    %c0_136 = arith.constant 0 : index
    %c14_137 = arith.constant 14 : index
    %254 = memref.load %arg18[%c0_136, %c14_137] : memref<4x16xf32, #tpu.memory_space<smem>>
    %255 = vector.broadcast %254 : f32 to vector<8x16xf32>
    %256 = arith.mulf %5, %255 : vector<8x16xf32>
    %257 = arith.addf %253, %256 : vector<8x16xf32>
    %c0_138 = arith.constant 0 : index
    %c14_139 = arith.constant 14 : index
    %258 = memref.load %arg19[%c0_138, %c14_139] : memref<4x16xf32, #tpu.memory_space<smem>>
    %259 = vector.broadcast %258 : f32 to vector<8x16xf32>
    %260 = arith.addf %257, %259 : vector<8x16xf32>
    %cst_140 = arith.constant 0.000000e+00 : f32
    %261 = vector.broadcast %cst_140 : f32 to vector<8x16xf32>
    %262 = arith.maximumf %260, %261 : vector<8x16xf32>
    %c0_141 = arith.constant 0 : index
    %c14_142 = arith.constant 14 : index
    %263 = memref.load %arg20[%c0_141, %c14_142] : memref<4x16xf32, #tpu.memory_space<smem>>
    %264 = vector.broadcast %263 : f32 to vector<8x16xf32>
    %265 = arith.mulf %262, %264 : vector<8x16xf32>
    %266 = arith.addf %250, %265 : vector<8x16xf32>
    %c0_143 = arith.constant 0 : index
    %c15 = arith.constant 15 : index
    %267 = memref.load %arg17[%c0_143, %c15] : memref<4x16xf32, #tpu.memory_space<smem>>
    %268 = vector.broadcast %267 : f32 to vector<8x16xf32>
    %269 = arith.mulf %25, %268 : vector<8x16xf32>
    %c0_144 = arith.constant 0 : index
    %c15_145 = arith.constant 15 : index
    %270 = memref.load %arg18[%c0_144, %c15_145] : memref<4x16xf32, #tpu.memory_space<smem>>
    %271 = vector.broadcast %270 : f32 to vector<8x16xf32>
    %272 = arith.mulf %5, %271 : vector<8x16xf32>
    %273 = arith.addf %269, %272 : vector<8x16xf32>
    %c0_146 = arith.constant 0 : index
    %c15_147 = arith.constant 15 : index
    %274 = memref.load %arg19[%c0_146, %c15_147] : memref<4x16xf32, #tpu.memory_space<smem>>
    %275 = vector.broadcast %274 : f32 to vector<8x16xf32>
    %276 = arith.addf %273, %275 : vector<8x16xf32>
    %cst_148 = arith.constant 0.000000e+00 : f32
    %277 = vector.broadcast %cst_148 : f32 to vector<8x16xf32>
    %278 = arith.maximumf %276, %277 : vector<8x16xf32>
    %c0_149 = arith.constant 0 : index
    %c15_150 = arith.constant 15 : index
    %279 = memref.load %arg20[%c0_149, %c15_150] : memref<4x16xf32, #tpu.memory_space<smem>>
    %280 = vector.broadcast %279 : f32 to vector<8x16xf32>
    %281 = arith.mulf %278, %280 : vector<8x16xf32>
    %282 = arith.addf %266, %281 : vector<8x16xf32>
    %c0_151 = arith.constant 0 : index
    %283 = memref.load %arg21[%c0_151] : memref<4xf32, #tpu.memory_space<smem>>
    %284 = vector.broadcast %283 : f32 to vector<8x16xf32>
    %285 = arith.addf %282, %284 : vector<8x16xf32>
    %cst_152 = arith.constant dense<0xFF800000> : vector<8xf32>
    %286 = vector.multi_reduction <maximumf>, %285, %cst_152 [1] : vector<8x16xf32> to vector<8xf32>
    %287 = vector.shape_cast %286 : vector<8xf32> to vector<8x1xf32>
    %288 = vector.broadcast %287 : vector<8x1xf32> to vector<8x16xf32>
    %289 = arith.subf %285, %288 : vector<8x16xf32>
    %290 = math.exp %289 : vector<8x16xf32>
    %cst_153 = arith.constant dense<0.000000e+00> : vector<8xf32>
    %291 = vector.multi_reduction <add>, %290, %cst_153 [1] : vector<8x16xf32> to vector<8xf32>
    %292 = vector.shape_cast %291 : vector<8xf32> to vector<8x1xf32>
    %293 = vector.shape_cast %290 : vector<8x16xf32> to vector<1x8x16xf32>
    "tpu.trace_start"() <{level = 10 : i32, message = "brc,bcd->brd"}> : () -> ()
    %cst_154 = arith.constant dense<0.000000e+00> : vector<1x8x8xf32>
    %294 = tpu.matmul %293, %21, %cst_154 {dimension_numbers = #tpu.dot_dimension_numbers<[2], [1], [1], [2], [0, 0, 0, 1, 1, 2], [0], [0]>} : vector<1x8x16xf32>, vector<1x16x8xf32>, vector<1x8x8xf32> -> vector<1x8x8xf32>
    "tpu.trace_stop"() : () -> ()
    %295 = vector.shape_cast %294 : vector<1x8x8xf32> to vector<8x8xf32>
    %296 = tpu.reciprocal %292 {approx = true} : vector<8x1xf32> -> vector<8x1xf32>
    %297 = vector.broadcast %296 : vector<8x1xf32> to vector<8x8xf32>
    %298 = arith.mulf %295, %297 : vector<8x8xf32>
    %299 = arith.truncf %298 : vector<8x8xf32> to vector<8x8xbf16>
    %300 = vector.extract_strided_slice %14 {offsets = [0, 0], sizes = [8, 32], strides = [1, 1]} : vector<32x32xbf16> to vector<8x32xbf16>
    %cst_155 = arith.constant dense<0.000000e+00> : vector<8x32xf32>
    %301 = tpu.matmul %299, %300, %cst_155 {dimension_numbers = #tpu.dot_dimension_numbers<[1], [0], [0], [1], [0, 0, 1, 1], [], []>} : vector<8x8xbf16>, vector<8x32xbf16>, vector<8x32xf32> -> vector<8x32xf32>
    %302 = arith.addf %15, %301 : vector<8x32xf32>
    %303 = vector.extract_strided_slice %9 {offsets = [0, 8], sizes = [8, 8], strides = [1, 1]} : vector<8x32xf32> to vector<8x8xf32>
    %304 = vector.shape_cast %303 : vector<8x8xf32> to vector<1x8x8xf32>
    %305 = vector.extract_strided_slice %11 {offsets = [0, 8], sizes = [16, 8], strides = [1, 1]} : vector<16x32xf32> to vector<16x8xf32>
    %306 = vector.shape_cast %305 : vector<16x8xf32> to vector<1x16x8xf32>
    %307 = vector.extract_strided_slice %13 {offsets = [0, 8], sizes = [16, 8], strides = [1, 1]} : vector<16x32xf32> to vector<16x8xf32>
    %308 = vector.shape_cast %307 : vector<16x8xf32> to vector<1x16x8xf32>
    "tpu.trace_start"() <{level = 10 : i32, message = "brd,bcd->brc"}> : () -> ()
    %cst_156 = arith.constant dense<0.000000e+00> : vector<1x8x16xf32>
    %309 = tpu.matmul %304, %306, %cst_156 {dimension_numbers = #tpu.dot_dimension_numbers<[2], [2], [1], [1], [0, 0, 0, 1, 1, 1], [0], [0]>} : vector<1x8x8xf32>, vector<1x16x8xf32>, vector<1x8x16xf32> -> vector<1x8x16xf32>
    "tpu.trace_stop"() : () -> ()
    %310 = vector.shape_cast %309 : vector<1x8x16xf32> to vector<8x16xf32>
    %cst_157 = arith.constant 0.353553385 : f32
    %311 = vector.broadcast %cst_157 : f32 to vector<8x16xf32>
    %312 = arith.mulf %310, %311 : vector<8x16xf32>
    %cst_158 = arith.constant 0.000000e+00 : f32
    %313 = vector.broadcast %cst_158 : f32 to vector<8x16xf32>
    %c1_159 = arith.constant 1 : index
    %c0_160 = arith.constant 0 : index
    %314 = memref.load %arg17[%c1_159, %c0_160] : memref<4x16xf32, #tpu.memory_space<smem>>
    %315 = vector.broadcast %314 : f32 to vector<8x16xf32>
    %316 = arith.mulf %312, %315 : vector<8x16xf32>
    %c1_161 = arith.constant 1 : index
    %c0_162 = arith.constant 0 : index
    %317 = memref.load %arg18[%c1_161, %c0_162] : memref<4x16xf32, #tpu.memory_space<smem>>
    %318 = vector.broadcast %317 : f32 to vector<8x16xf32>
    %319 = arith.mulf %5, %318 : vector<8x16xf32>
    %320 = arith.addf %316, %319 : vector<8x16xf32>
    %c1_163 = arith.constant 1 : index
    %c0_164 = arith.constant 0 : index
    %321 = memref.load %arg19[%c1_163, %c0_164] : memref<4x16xf32, #tpu.memory_space<smem>>
    %322 = vector.broadcast %321 : f32 to vector<8x16xf32>
    %323 = arith.addf %320, %322 : vector<8x16xf32>
    %cst_165 = arith.constant 0.000000e+00 : f32
    %324 = vector.broadcast %cst_165 : f32 to vector<8x16xf32>
    %325 = arith.maximumf %323, %324 : vector<8x16xf32>
    %c1_166 = arith.constant 1 : index
    %c0_167 = arith.constant 0 : index
    %326 = memref.load %arg20[%c1_166, %c0_167] : memref<4x16xf32, #tpu.memory_space<smem>>
    %327 = vector.broadcast %326 : f32 to vector<8x16xf32>
    %328 = arith.mulf %325, %327 : vector<8x16xf32>
    %329 = arith.addf %313, %328 : vector<8x16xf32>
    %c1_168 = arith.constant 1 : index
    %c1_169 = arith.constant 1 : index
    %330 = memref.load %arg17[%c1_168, %c1_169] : memref<4x16xf32, #tpu.memory_space<smem>>
    %331 = vector.broadcast %330 : f32 to vector<8x16xf32>
    %332 = arith.mulf %312, %331 : vector<8x16xf32>
    %c1_170 = arith.constant 1 : index
    %c1_171 = arith.constant 1 : index
    %333 = memref.load %arg18[%c1_170, %c1_171] : memref<4x16xf32, #tpu.memory_space<smem>>
    %334 = vector.broadcast %333 : f32 to vector<8x16xf32>
    %335 = arith.mulf %5, %334 : vector<8x16xf32>
    %336 = arith.addf %332, %335 : vector<8x16xf32>
    %c1_172 = arith.constant 1 : index
    %c1_173 = arith.constant 1 : index
    %337 = memref.load %arg19[%c1_172, %c1_173] : memref<4x16xf32, #tpu.memory_space<smem>>
    %338 = vector.broadcast %337 : f32 to vector<8x16xf32>
    %339 = arith.addf %336, %338 : vector<8x16xf32>
    %cst_174 = arith.constant 0.000000e+00 : f32
    %340 = vector.broadcast %cst_174 : f32 to vector<8x16xf32>
    %341 = arith.maximumf %339, %340 : vector<8x16xf32>
    %c1_175 = arith.constant 1 : index
    %c1_176 = arith.constant 1 : index
    %342 = memref.load %arg20[%c1_175, %c1_176] : memref<4x16xf32, #tpu.memory_space<smem>>
    %343 = vector.broadcast %342 : f32 to vector<8x16xf32>
    %344 = arith.mulf %341, %343 : vector<8x16xf32>
    %345 = arith.addf %329, %344 : vector<8x16xf32>
    %c1_177 = arith.constant 1 : index
    %c2_178 = arith.constant 2 : index
    %346 = memref.load %arg17[%c1_177, %c2_178] : memref<4x16xf32, #tpu.memory_space<smem>>
    %347 = vector.broadcast %346 : f32 to vector<8x16xf32>
    %348 = arith.mulf %312, %347 : vector<8x16xf32>
    %c1_179 = arith.constant 1 : index
    %c2_180 = arith.constant 2 : index
    %349 = memref.load %arg18[%c1_179, %c2_180] : memref<4x16xf32, #tpu.memory_space<smem>>
    %350 = vector.broadcast %349 : f32 to vector<8x16xf32>
    %351 = arith.mulf %5, %350 : vector<8x16xf32>
    %352 = arith.addf %348, %351 : vector<8x16xf32>
    %c1_181 = arith.constant 1 : index
    %c2_182 = arith.constant 2 : index
    %353 = memref.load %arg19[%c1_181, %c2_182] : memref<4x16xf32, #tpu.memory_space<smem>>
    %354 = vector.broadcast %353 : f32 to vector<8x16xf32>
    %355 = arith.addf %352, %354 : vector<8x16xf32>
    %cst_183 = arith.constant 0.000000e+00 : f32
    %356 = vector.broadcast %cst_183 : f32 to vector<8x16xf32>
    %357 = arith.maximumf %355, %356 : vector<8x16xf32>
    %c1_184 = arith.constant 1 : index
    %c2_185 = arith.constant 2 : index
    %358 = memref.load %arg20[%c1_184, %c2_185] : memref<4x16xf32, #tpu.memory_space<smem>>
    %359 = vector.broadcast %358 : f32 to vector<8x16xf32>
    %360 = arith.mulf %357, %359 : vector<8x16xf32>
    %361 = arith.addf %345, %360 : vector<8x16xf32>
    %c1_186 = arith.constant 1 : index
    %c3_187 = arith.constant 3 : index
    %362 = memref.load %arg17[%c1_186, %c3_187] : memref<4x16xf32, #tpu.memory_space<smem>>
    %363 = vector.broadcast %362 : f32 to vector<8x16xf32>
    %364 = arith.mulf %312, %363 : vector<8x16xf32>
    %c1_188 = arith.constant 1 : index
    %c3_189 = arith.constant 3 : index
    %365 = memref.load %arg18[%c1_188, %c3_189] : memref<4x16xf32, #tpu.memory_space<smem>>
    %366 = vector.broadcast %365 : f32 to vector<8x16xf32>
    %367 = arith.mulf %5, %366 : vector<8x16xf32>
    %368 = arith.addf %364, %367 : vector<8x16xf32>
    %c1_190 = arith.constant 1 : index
    %c3_191 = arith.constant 3 : index
    %369 = memref.load %arg19[%c1_190, %c3_191] : memref<4x16xf32, #tpu.memory_space<smem>>
    %370 = vector.broadcast %369 : f32 to vector<8x16xf32>
    %371 = arith.addf %368, %370 : vector<8x16xf32>
    %cst_192 = arith.constant 0.000000e+00 : f32
    %372 = vector.broadcast %cst_192 : f32 to vector<8x16xf32>
    %373 = arith.maximumf %371, %372 : vector<8x16xf32>
    %c1_193 = arith.constant 1 : index
    %c3_194 = arith.constant 3 : index
    %374 = memref.load %arg20[%c1_193, %c3_194] : memref<4x16xf32, #tpu.memory_space<smem>>
    %375 = vector.broadcast %374 : f32 to vector<8x16xf32>
    %376 = arith.mulf %373, %375 : vector<8x16xf32>
    %377 = arith.addf %361, %376 : vector<8x16xf32>
    %c1_195 = arith.constant 1 : index
    %c4_196 = arith.constant 4 : index
    %378 = memref.load %arg17[%c1_195, %c4_196] : memref<4x16xf32, #tpu.memory_space<smem>>
    %379 = vector.broadcast %378 : f32 to vector<8x16xf32>
    %380 = arith.mulf %312, %379 : vector<8x16xf32>
    %c1_197 = arith.constant 1 : index
    %c4_198 = arith.constant 4 : index
    %381 = memref.load %arg18[%c1_197, %c4_198] : memref<4x16xf32, #tpu.memory_space<smem>>
    %382 = vector.broadcast %381 : f32 to vector<8x16xf32>
    %383 = arith.mulf %5, %382 : vector<8x16xf32>
    %384 = arith.addf %380, %383 : vector<8x16xf32>
    %c1_199 = arith.constant 1 : index
    %c4_200 = arith.constant 4 : index
    %385 = memref.load %arg19[%c1_199, %c4_200] : memref<4x16xf32, #tpu.memory_space<smem>>
    %386 = vector.broadcast %385 : f32 to vector<8x16xf32>
    %387 = arith.addf %384, %386 : vector<8x16xf32>
    %cst_201 = arith.constant 0.000000e+00 : f32
    %388 = vector.broadcast %cst_201 : f32 to vector<8x16xf32>
    %389 = arith.maximumf %387, %388 : vector<8x16xf32>
    %c1_202 = arith.constant 1 : index
    %c4_203 = arith.constant 4 : index
    %390 = memref.load %arg20[%c1_202, %c4_203] : memref<4x16xf32, #tpu.memory_space<smem>>
    %391 = vector.broadcast %390 : f32 to vector<8x16xf32>
    %392 = arith.mulf %389, %391 : vector<8x16xf32>
    %393 = arith.addf %377, %392 : vector<8x16xf32>
    %c1_204 = arith.constant 1 : index
    %c5_205 = arith.constant 5 : index
    %394 = memref.load %arg17[%c1_204, %c5_205] : memref<4x16xf32, #tpu.memory_space<smem>>
    %395 = vector.broadcast %394 : f32 to vector<8x16xf32>
    %396 = arith.mulf %312, %395 : vector<8x16xf32>
    %c1_206 = arith.constant 1 : index
    %c5_207 = arith.constant 5 : index
    %397 = memref.load %arg18[%c1_206, %c5_207] : memref<4x16xf32, #tpu.memory_space<smem>>
    %398 = vector.broadcast %397 : f32 to vector<8x16xf32>
    %399 = arith.mulf %5, %398 : vector<8x16xf32>
    %400 = arith.addf %396, %399 : vector<8x16xf32>
    %c1_208 = arith.constant 1 : index
    %c5_209 = arith.constant 5 : index
    %401 = memref.load %arg19[%c1_208, %c5_209] : memref<4x16xf32, #tpu.memory_space<smem>>
    %402 = vector.broadcast %401 : f32 to vector<8x16xf32>
    %403 = arith.addf %400, %402 : vector<8x16xf32>
    %cst_210 = arith.constant 0.000000e+00 : f32
    %404 = vector.broadcast %cst_210 : f32 to vector<8x16xf32>
    %405 = arith.maximumf %403, %404 : vector<8x16xf32>
    %c1_211 = arith.constant 1 : index
    %c5_212 = arith.constant 5 : index
    %406 = memref.load %arg20[%c1_211, %c5_212] : memref<4x16xf32, #tpu.memory_space<smem>>
    %407 = vector.broadcast %406 : f32 to vector<8x16xf32>
    %408 = arith.mulf %405, %407 : vector<8x16xf32>
    %409 = arith.addf %393, %408 : vector<8x16xf32>
    %c1_213 = arith.constant 1 : index
    %c6_214 = arith.constant 6 : index
    %410 = memref.load %arg17[%c1_213, %c6_214] : memref<4x16xf32, #tpu.memory_space<smem>>
    %411 = vector.broadcast %410 : f32 to vector<8x16xf32>
    %412 = arith.mulf %312, %411 : vector<8x16xf32>
    %c1_215 = arith.constant 1 : index
    %c6_216 = arith.constant 6 : index
    %413 = memref.load %arg18[%c1_215, %c6_216] : memref<4x16xf32, #tpu.memory_space<smem>>
    %414 = vector.broadcast %413 : f32 to vector<8x16xf32>
    %415 = arith.mulf %5, %414 : vector<8x16xf32>
    %416 = arith.addf %412, %415 : vector<8x16xf32>
    %c1_217 = arith.constant 1 : index
    %c6_218 = arith.constant 6 : index
    %417 = memref.load %arg19[%c1_217, %c6_218] : memref<4x16xf32, #tpu.memory_space<smem>>
    %418 = vector.broadcast %417 : f32 to vector<8x16xf32>
    %419 = arith.addf %416, %418 : vector<8x16xf32>
    %cst_219 = arith.constant 0.000000e+00 : f32
    %420 = vector.broadcast %cst_219 : f32 to vector<8x16xf32>
    %421 = arith.maximumf %419, %420 : vector<8x16xf32>
    %c1_220 = arith.constant 1 : index
    %c6_221 = arith.constant 6 : index
    %422 = memref.load %arg20[%c1_220, %c6_221] : memref<4x16xf32, #tpu.memory_space<smem>>
    %423 = vector.broadcast %422 : f32 to vector<8x16xf32>
    %424 = arith.mulf %421, %423 : vector<8x16xf32>
    %425 = arith.addf %409, %424 : vector<8x16xf32>
    %c1_222 = arith.constant 1 : index
    %c7_223 = arith.constant 7 : index
    %426 = memref.load %arg17[%c1_222, %c7_223] : memref<4x16xf32, #tpu.memory_space<smem>>
    %427 = vector.broadcast %426 : f32 to vector<8x16xf32>
    %428 = arith.mulf %312, %427 : vector<8x16xf32>
    %c1_224 = arith.constant 1 : index
    %c7_225 = arith.constant 7 : index
    %429 = memref.load %arg18[%c1_224, %c7_225] : memref<4x16xf32, #tpu.memory_space<smem>>
    %430 = vector.broadcast %429 : f32 to vector<8x16xf32>
    %431 = arith.mulf %5, %430 : vector<8x16xf32>
    %432 = arith.addf %428, %431 : vector<8x16xf32>
    %c1_226 = arith.constant 1 : index
    %c7_227 = arith.constant 7 : index
    %433 = memref.load %arg19[%c1_226, %c7_227] : memref<4x16xf32, #tpu.memory_space<smem>>
    %434 = vector.broadcast %433 : f32 to vector<8x16xf32>
    %435 = arith.addf %432, %434 : vector<8x16xf32>
    %cst_228 = arith.constant 0.000000e+00 : f32
    %436 = vector.broadcast %cst_228 : f32 to vector<8x16xf32>
    %437 = arith.maximumf %435, %436 : vector<8x16xf32>
    %c1_229 = arith.constant 1 : index
    %c7_230 = arith.constant 7 : index
    %438 = memref.load %arg20[%c1_229, %c7_230] : memref<4x16xf32, #tpu.memory_space<smem>>
    %439 = vector.broadcast %438 : f32 to vector<8x16xf32>
    %440 = arith.mulf %437, %439 : vector<8x16xf32>
    %441 = arith.addf %425, %440 : vector<8x16xf32>
    %c1_231 = arith.constant 1 : index
    %c8_232 = arith.constant 8 : index
    %442 = memref.load %arg17[%c1_231, %c8_232] : memref<4x16xf32, #tpu.memory_space<smem>>
    %443 = vector.broadcast %442 : f32 to vector<8x16xf32>
    %444 = arith.mulf %312, %443 : vector<8x16xf32>
    %c1_233 = arith.constant 1 : index
    %c8_234 = arith.constant 8 : index
    %445 = memref.load %arg18[%c1_233, %c8_234] : memref<4x16xf32, #tpu.memory_space<smem>>
    %446 = vector.broadcast %445 : f32 to vector<8x16xf32>
    %447 = arith.mulf %5, %446 : vector<8x16xf32>
    %448 = arith.addf %444, %447 : vector<8x16xf32>
    %c1_235 = arith.constant 1 : index
    %c8_236 = arith.constant 8 : index
    %449 = memref.load %arg19[%c1_235, %c8_236] : memref<4x16xf32, #tpu.memory_space<smem>>
    %450 = vector.broadcast %449 : f32 to vector<8x16xf32>
    %451 = arith.addf %448, %450 : vector<8x16xf32>
    %cst_237 = arith.constant 0.000000e+00 : f32
    %452 = vector.broadcast %cst_237 : f32 to vector<8x16xf32>
    %453 = arith.maximumf %451, %452 : vector<8x16xf32>
    %c1_238 = arith.constant 1 : index
    %c8_239 = arith.constant 8 : index
    %454 = memref.load %arg20[%c1_238, %c8_239] : memref<4x16xf32, #tpu.memory_space<smem>>
    %455 = vector.broadcast %454 : f32 to vector<8x16xf32>
    %456 = arith.mulf %453, %455 : vector<8x16xf32>
    %457 = arith.addf %441, %456 : vector<8x16xf32>
    %c1_240 = arith.constant 1 : index
    %c9_241 = arith.constant 9 : index
    %458 = memref.load %arg17[%c1_240, %c9_241] : memref<4x16xf32, #tpu.memory_space<smem>>
    %459 = vector.broadcast %458 : f32 to vector<8x16xf32>
    %460 = arith.mulf %312, %459 : vector<8x16xf32>
    %c1_242 = arith.constant 1 : index
    %c9_243 = arith.constant 9 : index
    %461 = memref.load %arg18[%c1_242, %c9_243] : memref<4x16xf32, #tpu.memory_space<smem>>
    %462 = vector.broadcast %461 : f32 to vector<8x16xf32>
    %463 = arith.mulf %5, %462 : vector<8x16xf32>
    %464 = arith.addf %460, %463 : vector<8x16xf32>
    %c1_244 = arith.constant 1 : index
    %c9_245 = arith.constant 9 : index
    %465 = memref.load %arg19[%c1_244, %c9_245] : memref<4x16xf32, #tpu.memory_space<smem>>
    %466 = vector.broadcast %465 : f32 to vector<8x16xf32>
    %467 = arith.addf %464, %466 : vector<8x16xf32>
    %cst_246 = arith.constant 0.000000e+00 : f32
    %468 = vector.broadcast %cst_246 : f32 to vector<8x16xf32>
    %469 = arith.maximumf %467, %468 : vector<8x16xf32>
    %c1_247 = arith.constant 1 : index
    %c9_248 = arith.constant 9 : index
    %470 = memref.load %arg20[%c1_247, %c9_248] : memref<4x16xf32, #tpu.memory_space<smem>>
    %471 = vector.broadcast %470 : f32 to vector<8x16xf32>
    %472 = arith.mulf %469, %471 : vector<8x16xf32>
    %473 = arith.addf %457, %472 : vector<8x16xf32>
    %c1_249 = arith.constant 1 : index
    %c10_250 = arith.constant 10 : index
    %474 = memref.load %arg17[%c1_249, %c10_250] : memref<4x16xf32, #tpu.memory_space<smem>>
    %475 = vector.broadcast %474 : f32 to vector<8x16xf32>
    %476 = arith.mulf %312, %475 : vector<8x16xf32>
    %c1_251 = arith.constant 1 : index
    %c10_252 = arith.constant 10 : index
    %477 = memref.load %arg18[%c1_251, %c10_252] : memref<4x16xf32, #tpu.memory_space<smem>>
    %478 = vector.broadcast %477 : f32 to vector<8x16xf32>
    %479 = arith.mulf %5, %478 : vector<8x16xf32>
    %480 = arith.addf %476, %479 : vector<8x16xf32>
    %c1_253 = arith.constant 1 : index
    %c10_254 = arith.constant 10 : index
    %481 = memref.load %arg19[%c1_253, %c10_254] : memref<4x16xf32, #tpu.memory_space<smem>>
    %482 = vector.broadcast %481 : f32 to vector<8x16xf32>
    %483 = arith.addf %480, %482 : vector<8x16xf32>
    %cst_255 = arith.constant 0.000000e+00 : f32
    %484 = vector.broadcast %cst_255 : f32 to vector<8x16xf32>
    %485 = arith.maximumf %483, %484 : vector<8x16xf32>
    %c1_256 = arith.constant 1 : index
    %c10_257 = arith.constant 10 : index
    %486 = memref.load %arg20[%c1_256, %c10_257] : memref<4x16xf32, #tpu.memory_space<smem>>
    %487 = vector.broadcast %486 : f32 to vector<8x16xf32>
    %488 = arith.mulf %485, %487 : vector<8x16xf32>
    %489 = arith.addf %473, %488 : vector<8x16xf32>
    %c1_258 = arith.constant 1 : index
    %c11_259 = arith.constant 11 : index
    %490 = memref.load %arg17[%c1_258, %c11_259] : memref<4x16xf32, #tpu.memory_space<smem>>
    %491 = vector.broadcast %490 : f32 to vector<8x16xf32>
    %492 = arith.mulf %312, %491 : vector<8x16xf32>
    %c1_260 = arith.constant 1 : index
    %c11_261 = arith.constant 11 : index
    %493 = memref.load %arg18[%c1_260, %c11_261] : memref<4x16xf32, #tpu.memory_space<smem>>
    %494 = vector.broadcast %493 : f32 to vector<8x16xf32>
    %495 = arith.mulf %5, %494 : vector<8x16xf32>
    %496 = arith.addf %492, %495 : vector<8x16xf32>
    %c1_262 = arith.constant 1 : index
    %c11_263 = arith.constant 11 : index
    %497 = memref.load %arg19[%c1_262, %c11_263] : memref<4x16xf32, #tpu.memory_space<smem>>
    %498 = vector.broadcast %497 : f32 to vector<8x16xf32>
    %499 = arith.addf %496, %498 : vector<8x16xf32>
    %cst_264 = arith.constant 0.000000e+00 : f32
    %500 = vector.broadcast %cst_264 : f32 to vector<8x16xf32>
    %501 = arith.maximumf %499, %500 : vector<8x16xf32>
    %c1_265 = arith.constant 1 : index
    %c11_266 = arith.constant 11 : index
    %502 = memref.load %arg20[%c1_265, %c11_266] : memref<4x16xf32, #tpu.memory_space<smem>>
    %503 = vector.broadcast %502 : f32 to vector<8x16xf32>
    %504 = arith.mulf %501, %503 : vector<8x16xf32>
    %505 = arith.addf %489, %504 : vector<8x16xf32>
    %c1_267 = arith.constant 1 : index
    %c12_268 = arith.constant 12 : index
    %506 = memref.load %arg17[%c1_267, %c12_268] : memref<4x16xf32, #tpu.memory_space<smem>>
    %507 = vector.broadcast %506 : f32 to vector<8x16xf32>
    %508 = arith.mulf %312, %507 : vector<8x16xf32>
    %c1_269 = arith.constant 1 : index
    %c12_270 = arith.constant 12 : index
    %509 = memref.load %arg18[%c1_269, %c12_270] : memref<4x16xf32, #tpu.memory_space<smem>>
    %510 = vector.broadcast %509 : f32 to vector<8x16xf32>
    %511 = arith.mulf %5, %510 : vector<8x16xf32>
    %512 = arith.addf %508, %511 : vector<8x16xf32>
    %c1_271 = arith.constant 1 : index
    %c12_272 = arith.constant 12 : index
    %513 = memref.load %arg19[%c1_271, %c12_272] : memref<4x16xf32, #tpu.memory_space<smem>>
    %514 = vector.broadcast %513 : f32 to vector<8x16xf32>
    %515 = arith.addf %512, %514 : vector<8x16xf32>
    %cst_273 = arith.constant 0.000000e+00 : f32
    %516 = vector.broadcast %cst_273 : f32 to vector<8x16xf32>
    %517 = arith.maximumf %515, %516 : vector<8x16xf32>
    %c1_274 = arith.constant 1 : index
    %c12_275 = arith.constant 12 : index
    %518 = memref.load %arg20[%c1_274, %c12_275] : memref<4x16xf32, #tpu.memory_space<smem>>
    %519 = vector.broadcast %518 : f32 to vector<8x16xf32>
    %520 = arith.mulf %517, %519 : vector<8x16xf32>
    %521 = arith.addf %505, %520 : vector<8x16xf32>
    %c1_276 = arith.constant 1 : index
    %c13_277 = arith.constant 13 : index
    %522 = memref.load %arg17[%c1_276, %c13_277] : memref<4x16xf32, #tpu.memory_space<smem>>
    %523 = vector.broadcast %522 : f32 to vector<8x16xf32>
    %524 = arith.mulf %312, %523 : vector<8x16xf32>
    %c1_278 = arith.constant 1 : index
    %c13_279 = arith.constant 13 : index
    %525 = memref.load %arg18[%c1_278, %c13_279] : memref<4x16xf32, #tpu.memory_space<smem>>
    %526 = vector.broadcast %525 : f32 to vector<8x16xf32>
    %527 = arith.mulf %5, %526 : vector<8x16xf32>
    %528 = arith.addf %524, %527 : vector<8x16xf32>
    %c1_280 = arith.constant 1 : index
    %c13_281 = arith.constant 13 : index
    %529 = memref.load %arg19[%c1_280, %c13_281] : memref<4x16xf32, #tpu.memory_space<smem>>
    %530 = vector.broadcast %529 : f32 to vector<8x16xf32>
    %531 = arith.addf %528, %530 : vector<8x16xf32>
    %cst_282 = arith.constant 0.000000e+00 : f32
    %532 = vector.broadcast %cst_282 : f32 to vector<8x16xf32>
    %533 = arith.maximumf %531, %532 : vector<8x16xf32>
    %c1_283 = arith.constant 1 : index
    %c13_284 = arith.constant 13 : index
    %534 = memref.load %arg20[%c1_283, %c13_284] : memref<4x16xf32, #tpu.memory_space<smem>>
    %535 = vector.broadcast %534 : f32 to vector<8x16xf32>
    %536 = arith.mulf %533, %535 : vector<8x16xf32>
    %537 = arith.addf %521, %536 : vector<8x16xf32>
    %c1_285 = arith.constant 1 : index
    %c14_286 = arith.constant 14 : index
    %538 = memref.load %arg17[%c1_285, %c14_286] : memref<4x16xf32, #tpu.memory_space<smem>>
    %539 = vector.broadcast %538 : f32 to vector<8x16xf32>
    %540 = arith.mulf %312, %539 : vector<8x16xf32>
    %c1_287 = arith.constant 1 : index
    %c14_288 = arith.constant 14 : index
    %541 = memref.load %arg18[%c1_287, %c14_288] : memref<4x16xf32, #tpu.memory_space<smem>>
    %542 = vector.broadcast %541 : f32 to vector<8x16xf32>
    %543 = arith.mulf %5, %542 : vector<8x16xf32>
    %544 = arith.addf %540, %543 : vector<8x16xf32>
    %c1_289 = arith.constant 1 : index
    %c14_290 = arith.constant 14 : index
    %545 = memref.load %arg19[%c1_289, %c14_290] : memref<4x16xf32, #tpu.memory_space<smem>>
    %546 = vector.broadcast %545 : f32 to vector<8x16xf32>
    %547 = arith.addf %544, %546 : vector<8x16xf32>
    %cst_291 = arith.constant 0.000000e+00 : f32
    %548 = vector.broadcast %cst_291 : f32 to vector<8x16xf32>
    %549 = arith.maximumf %547, %548 : vector<8x16xf32>
    %c1_292 = arith.constant 1 : index
    %c14_293 = arith.constant 14 : index
    %550 = memref.load %arg20[%c1_292, %c14_293] : memref<4x16xf32, #tpu.memory_space<smem>>
    %551 = vector.broadcast %550 : f32 to vector<8x16xf32>
    %552 = arith.mulf %549, %551 : vector<8x16xf32>
    %553 = arith.addf %537, %552 : vector<8x16xf32>
    %c1_294 = arith.constant 1 : index
    %c15_295 = arith.constant 15 : index
    %554 = memref.load %arg17[%c1_294, %c15_295] : memref<4x16xf32, #tpu.memory_space<smem>>
    %555 = vector.broadcast %554 : f32 to vector<8x16xf32>
    %556 = arith.mulf %312, %555 : vector<8x16xf32>
    %c1_296 = arith.constant 1 : index
    %c15_297 = arith.constant 15 : index
    %557 = memref.load %arg18[%c1_296, %c15_297] : memref<4x16xf32, #tpu.memory_space<smem>>
    %558 = vector.broadcast %557 : f32 to vector<8x16xf32>
    %559 = arith.mulf %5, %558 : vector<8x16xf32>
    %560 = arith.addf %556, %559 : vector<8x16xf32>
    %c1_298 = arith.constant 1 : index
    %c15_299 = arith.constant 15 : index
    %561 = memref.load %arg19[%c1_298, %c15_299] : memref<4x16xf32, #tpu.memory_space<smem>>
    %562 = vector.broadcast %561 : f32 to vector<8x16xf32>
    %563 = arith.addf %560, %562 : vector<8x16xf32>
    %cst_300 = arith.constant 0.000000e+00 : f32
    %564 = vector.broadcast %cst_300 : f32 to vector<8x16xf32>
    %565 = arith.maximumf %563, %564 : vector<8x16xf32>
    %c1_301 = arith.constant 1 : index
    %c15_302 = arith.constant 15 : index
    %566 = memref.load %arg20[%c1_301, %c15_302] : memref<4x16xf32, #tpu.memory_space<smem>>
    %567 = vector.broadcast %566 : f32 to vector<8x16xf32>
    %568 = arith.mulf %565, %567 : vector<8x16xf32>
    %569 = arith.addf %553, %568 : vector<8x16xf32>
    %c1_303 = arith.constant 1 : index
    %570 = memref.load %arg21[%c1_303] : memref<4xf32, #tpu.memory_space<smem>>
    %571 = vector.broadcast %570 : f32 to vector<8x16xf32>
    %572 = arith.addf %569, %571 : vector<8x16xf32>
    %cst_304 = arith.constant dense<0xFF800000> : vector<8xf32>
    %573 = vector.multi_reduction <maximumf>, %572, %cst_304 [1] : vector<8x16xf32> to vector<8xf32>
    %574 = vector.shape_cast %573 : vector<8xf32> to vector<8x1xf32>
    %575 = vector.broadcast %574 : vector<8x1xf32> to vector<8x16xf32>
    %576 = arith.subf %572, %575 : vector<8x16xf32>
    %577 = math.exp %576 : vector<8x16xf32>
    %cst_305 = arith.constant dense<0.000000e+00> : vector<8xf32>
    %578 = vector.multi_reduction <add>, %577, %cst_305 [1] : vector<8x16xf32> to vector<8xf32>
    %579 = vector.shape_cast %578 : vector<8xf32> to vector<8x1xf32>
    %580 = vector.shape_cast %577 : vector<8x16xf32> to vector<1x8x16xf32>
    "tpu.trace_start"() <{level = 10 : i32, message = "brc,bcd->brd"}> : () -> ()
    %cst_306 = arith.constant dense<0.000000e+00> : vector<1x8x8xf32>
    %581 = tpu.matmul %580, %308, %cst_306 {dimension_numbers = #tpu.dot_dimension_numbers<[2], [1], [1], [2], [0, 0, 0, 1, 1, 2], [0], [0]>} : vector<1x8x16xf32>, vector<1x16x8xf32>, vector<1x8x8xf32> -> vector<1x8x8xf32>
    "tpu.trace_stop"() : () -> ()
    %582 = vector.shape_cast %581 : vector<1x8x8xf32> to vector<8x8xf32>
    %583 = tpu.reciprocal %579 {approx = true} : vector<8x1xf32> -> vector<8x1xf32>
    %584 = vector.broadcast %583 : vector<8x1xf32> to vector<8x8xf32>
    %585 = arith.mulf %582, %584 : vector<8x8xf32>
    %586 = arith.truncf %585 : vector<8x8xf32> to vector<8x8xbf16>
    %587 = vector.extract_strided_slice %14 {offsets = [8, 0], sizes = [8, 32], strides = [1, 1]} : vector<32x32xbf16> to vector<8x32xbf16>
    %cst_307 = arith.constant dense<0.000000e+00> : vector<8x32xf32>
    %588 = tpu.matmul %586, %587, %cst_307 {dimension_numbers = #tpu.dot_dimension_numbers<[1], [0], [0], [1], [0, 0, 1, 1], [], []>} : vector<8x8xbf16>, vector<8x32xbf16>, vector<8x32xf32> -> vector<8x32xf32>
    %589 = arith.addf %302, %588 : vector<8x32xf32>
    %590 = vector.extract_strided_slice %9 {offsets = [0, 16], sizes = [8, 8], strides = [1, 1]} : vector<8x32xf32> to vector<8x8xf32>
    %591 = vector.shape_cast %590 : vector<8x8xf32> to vector<1x8x8xf32>
    %592 = vector.extract_strided_slice %11 {offsets = [0, 16], sizes = [16, 8], strides = [1, 1]} : vector<16x32xf32> to vector<16x8xf32>
    %593 = vector.shape_cast %592 : vector<16x8xf32> to vector<1x16x8xf32>
    %594 = vector.extract_strided_slice %13 {offsets = [0, 16], sizes = [16, 8], strides = [1, 1]} : vector<16x32xf32> to vector<16x8xf32>
    %595 = vector.shape_cast %594 : vector<16x8xf32> to vector<1x16x8xf32>
    "tpu.trace_start"() <{level = 10 : i32, message = "brd,bcd->brc"}> : () -> ()
    %cst_308 = arith.constant dense<0.000000e+00> : vector<1x8x16xf32>
    %596 = tpu.matmul %591, %593, %cst_308 {dimension_numbers = #tpu.dot_dimension_numbers<[2], [2], [1], [1], [0, 0, 0, 1, 1, 1], [0], [0]>} : vector<1x8x8xf32>, vector<1x16x8xf32>, vector<1x8x16xf32> -> vector<1x8x16xf32>
    "tpu.trace_stop"() : () -> ()
    %597 = vector.shape_cast %596 : vector<1x8x16xf32> to vector<8x16xf32>
    %cst_309 = arith.constant 0.353553385 : f32
    %598 = vector.broadcast %cst_309 : f32 to vector<8x16xf32>
    %599 = arith.mulf %597, %598 : vector<8x16xf32>
    %cst_310 = arith.constant 0.000000e+00 : f32
    %600 = vector.broadcast %cst_310 : f32 to vector<8x16xf32>
    %c2_311 = arith.constant 2 : index
    %c0_312 = arith.constant 0 : index
    %601 = memref.load %arg17[%c2_311, %c0_312] : memref<4x16xf32, #tpu.memory_space<smem>>
    %602 = vector.broadcast %601 : f32 to vector<8x16xf32>
    %603 = arith.mulf %599, %602 : vector<8x16xf32>
    %c2_313 = arith.constant 2 : index
    %c0_314 = arith.constant 0 : index
    %604 = memref.load %arg18[%c2_313, %c0_314] : memref<4x16xf32, #tpu.memory_space<smem>>
    %605 = vector.broadcast %604 : f32 to vector<8x16xf32>
    %606 = arith.mulf %5, %605 : vector<8x16xf32>
    %607 = arith.addf %603, %606 : vector<8x16xf32>
    %c2_315 = arith.constant 2 : index
    %c0_316 = arith.constant 0 : index
    %608 = memref.load %arg19[%c2_315, %c0_316] : memref<4x16xf32, #tpu.memory_space<smem>>
    %609 = vector.broadcast %608 : f32 to vector<8x16xf32>
    %610 = arith.addf %607, %609 : vector<8x16xf32>
    %cst_317 = arith.constant 0.000000e+00 : f32
    %611 = vector.broadcast %cst_317 : f32 to vector<8x16xf32>
    %612 = arith.maximumf %610, %611 : vector<8x16xf32>
    %c2_318 = arith.constant 2 : index
    %c0_319 = arith.constant 0 : index
    %613 = memref.load %arg20[%c2_318, %c0_319] : memref<4x16xf32, #tpu.memory_space<smem>>
    %614 = vector.broadcast %613 : f32 to vector<8x16xf32>
    %615 = arith.mulf %612, %614 : vector<8x16xf32>
    %616 = arith.addf %600, %615 : vector<8x16xf32>
    %c2_320 = arith.constant 2 : index
    %c1_321 = arith.constant 1 : index
    %617 = memref.load %arg17[%c2_320, %c1_321] : memref<4x16xf32, #tpu.memory_space<smem>>
    %618 = vector.broadcast %617 : f32 to vector<8x16xf32>
    %619 = arith.mulf %599, %618 : vector<8x16xf32>
    %c2_322 = arith.constant 2 : index
    %c1_323 = arith.constant 1 : index
    %620 = memref.load %arg18[%c2_322, %c1_323] : memref<4x16xf32, #tpu.memory_space<smem>>
    %621 = vector.broadcast %620 : f32 to vector<8x16xf32>
    %622 = arith.mulf %5, %621 : vector<8x16xf32>
    %623 = arith.addf %619, %622 : vector<8x16xf32>
    %c2_324 = arith.constant 2 : index
    %c1_325 = arith.constant 1 : index
    %624 = memref.load %arg19[%c2_324, %c1_325] : memref<4x16xf32, #tpu.memory_space<smem>>
    %625 = vector.broadcast %624 : f32 to vector<8x16xf32>
    %626 = arith.addf %623, %625 : vector<8x16xf32>
    %cst_326 = arith.constant 0.000000e+00 : f32
    %627 = vector.broadcast %cst_326 : f32 to vector<8x16xf32>
    %628 = arith.maximumf %626, %627 : vector<8x16xf32>
    %c2_327 = arith.constant 2 : index
    %c1_328 = arith.constant 1 : index
    %629 = memref.load %arg20[%c2_327, %c1_328] : memref<4x16xf32, #tpu.memory_space<smem>>
    %630 = vector.broadcast %629 : f32 to vector<8x16xf32>
    %631 = arith.mulf %628, %630 : vector<8x16xf32>
    %632 = arith.addf %616, %631 : vector<8x16xf32>
    %c2_329 = arith.constant 2 : index
    %c2_330 = arith.constant 2 : index
    %633 = memref.load %arg17[%c2_329, %c2_330] : memref<4x16xf32, #tpu.memory_space<smem>>
    %634 = vector.broadcast %633 : f32 to vector<8x16xf32>
    %635 = arith.mulf %599, %634 : vector<8x16xf32>
    %c2_331 = arith.constant 2 : index
    %c2_332 = arith.constant 2 : index
    %636 = memref.load %arg18[%c2_331, %c2_332] : memref<4x16xf32, #tpu.memory_space<smem>>
    %637 = vector.broadcast %636 : f32 to vector<8x16xf32>
    %638 = arith.mulf %5, %637 : vector<8x16xf32>
    %639 = arith.addf %635, %638 : vector<8x16xf32>
    %c2_333 = arith.constant 2 : index
    %c2_334 = arith.constant 2 : index
    %640 = memref.load %arg19[%c2_333, %c2_334] : memref<4x16xf32, #tpu.memory_space<smem>>
    %641 = vector.broadcast %640 : f32 to vector<8x16xf32>
    %642 = arith.addf %639, %641 : vector<8x16xf32>
    %cst_335 = arith.constant 0.000000e+00 : f32
    %643 = vector.broadcast %cst_335 : f32 to vector<8x16xf32>
    %644 = arith.maximumf %642, %643 : vector<8x16xf32>
    %c2_336 = arith.constant 2 : index
    %c2_337 = arith.constant 2 : index
    %645 = memref.load %arg20[%c2_336, %c2_337] : memref<4x16xf32, #tpu.memory_space<smem>>
    %646 = vector.broadcast %645 : f32 to vector<8x16xf32>
    %647 = arith.mulf %644, %646 : vector<8x16xf32>
    %648 = arith.addf %632, %647 : vector<8x16xf32>
    %c2_338 = arith.constant 2 : index
    %c3_339 = arith.constant 3 : index
    %649 = memref.load %arg17[%c2_338, %c3_339] : memref<4x16xf32, #tpu.memory_space<smem>>
    %650 = vector.broadcast %649 : f32 to vector<8x16xf32>
    %651 = arith.mulf %599, %650 : vector<8x16xf32>
    %c2_340 = arith.constant 2 : index
    %c3_341 = arith.constant 3 : index
    %652 = memref.load %arg18[%c2_340, %c3_341] : memref<4x16xf32, #tpu.memory_space<smem>>
    %653 = vector.broadcast %652 : f32 to vector<8x16xf32>
    %654 = arith.mulf %5, %653 : vector<8x16xf32>
    %655 = arith.addf %651, %654 : vector<8x16xf32>
    %c2_342 = arith.constant 2 : index
    %c3_343 = arith.constant 3 : index
    %656 = memref.load %arg19[%c2_342, %c3_343] : memref<4x16xf32, #tpu.memory_space<smem>>
    %657 = vector.broadcast %656 : f32 to vector<8x16xf32>
    %658 = arith.addf %655, %657 : vector<8x16xf32>
    %cst_344 = arith.constant 0.000000e+00 : f32
    %659 = vector.broadcast %cst_344 : f32 to vector<8x16xf32>
    %660 = arith.maximumf %658, %659 : vector<8x16xf32>
    %c2_345 = arith.constant 2 : index
    %c3_346 = arith.constant 3 : index
    %661 = memref.load %arg20[%c2_345, %c3_346] : memref<4x16xf32, #tpu.memory_space<smem>>
    %662 = vector.broadcast %661 : f32 to vector<8x16xf32>
    %663 = arith.mulf %660, %662 : vector<8x16xf32>
    %664 = arith.addf %648, %663 : vector<8x16xf32>
    %c2_347 = arith.constant 2 : index
    %c4_348 = arith.constant 4 : index
    %665 = memref.load %arg17[%c2_347, %c4_348] : memref<4x16xf32, #tpu.memory_space<smem>>
    %666 = vector.broadcast %665 : f32 to vector<8x16xf32>
    %667 = arith.mulf %599, %666 : vector<8x16xf32>
    %c2_349 = arith.constant 2 : index
    %c4_350 = arith.constant 4 : index
    %668 = memref.load %arg18[%c2_349, %c4_350] : memref<4x16xf32, #tpu.memory_space<smem>>
    %669 = vector.broadcast %668 : f32 to vector<8x16xf32>
    %670 = arith.mulf %5, %669 : vector<8x16xf32>
    %671 = arith.addf %667, %670 : vector<8x16xf32>
    %c2_351 = arith.constant 2 : index
    %c4_352 = arith.constant 4 : index
    %672 = memref.load %arg19[%c2_351, %c4_352] : memref<4x16xf32, #tpu.memory_space<smem>>
    %673 = vector.broadcast %672 : f32 to vector<8x16xf32>
    %674 = arith.addf %671, %673 : vector<8x16xf32>
    %cst_353 = arith.constant 0.000000e+00 : f32
    %675 = vector.broadcast %cst_353 : f32 to vector<8x16xf32>
    %676 = arith.maximumf %674, %675 : vector<8x16xf32>
    %c2_354 = arith.constant 2 : index
    %c4_355 = arith.constant 4 : index
    %677 = memref.load %arg20[%c2_354, %c4_355] : memref<4x16xf32, #tpu.memory_space<smem>>
    %678 = vector.broadcast %677 : f32 to vector<8x16xf32>
    %679 = arith.mulf %676, %678 : vector<8x16xf32>
    %680 = arith.addf %664, %679 : vector<8x16xf32>
    %c2_356 = arith.constant 2 : index
    %c5_357 = arith.constant 5 : index
    %681 = memref.load %arg17[%c2_356, %c5_357] : memref<4x16xf32, #tpu.memory_space<smem>>
    %682 = vector.broadcast %681 : f32 to vector<8x16xf32>
    %683 = arith.mulf %599, %682 : vector<8x16xf32>
    %c2_358 = arith.constant 2 : index
    %c5_359 = arith.constant 5 : index
    %684 = memref.load %arg18[%c2_358, %c5_359] : memref<4x16xf32, #tpu.memory_space<smem>>
    %685 = vector.broadcast %684 : f32 to vector<8x16xf32>
    %686 = arith.mulf %5, %685 : vector<8x16xf32>
    %687 = arith.addf %683, %686 : vector<8x16xf32>
    %c2_360 = arith.constant 2 : index
    %c5_361 = arith.constant 5 : index
    %688 = memref.load %arg19[%c2_360, %c5_361] : memref<4x16xf32, #tpu.memory_space<smem>>
    %689 = vector.broadcast %688 : f32 to vector<8x16xf32>
    %690 = arith.addf %687, %689 : vector<8x16xf32>
    %cst_362 = arith.constant 0.000000e+00 : f32
    %691 = vector.broadcast %cst_362 : f32 to vector<8x16xf32>
    %692 = arith.maximumf %690, %691 : vector<8x16xf32>
    %c2_363 = arith.constant 2 : index
    %c5_364 = arith.constant 5 : index
    %693 = memref.load %arg20[%c2_363, %c5_364] : memref<4x16xf32, #tpu.memory_space<smem>>
    %694 = vector.broadcast %693 : f32 to vector<8x16xf32>
    %695 = arith.mulf %692, %694 : vector<8x16xf32>
    %696 = arith.addf %680, %695 : vector<8x16xf32>
    %c2_365 = arith.constant 2 : index
    %c6_366 = arith.constant 6 : index
    %697 = memref.load %arg17[%c2_365, %c6_366] : memref<4x16xf32, #tpu.memory_space<smem>>
    %698 = vector.broadcast %697 : f32 to vector<8x16xf32>
    %699 = arith.mulf %599, %698 : vector<8x16xf32>
    %c2_367 = arith.constant 2 : index
    %c6_368 = arith.constant 6 : index
    %700 = memref.load %arg18[%c2_367, %c6_368] : memref<4x16xf32, #tpu.memory_space<smem>>
    %701 = vector.broadcast %700 : f32 to vector<8x16xf32>
    %702 = arith.mulf %5, %701 : vector<8x16xf32>
    %703 = arith.addf %699, %702 : vector<8x16xf32>
    %c2_369 = arith.constant 2 : index
    %c6_370 = arith.constant 6 : index
    %704 = memref.load %arg19[%c2_369, %c6_370] : memref<4x16xf32, #tpu.memory_space<smem>>
    %705 = vector.broadcast %704 : f32 to vector<8x16xf32>
    %706 = arith.addf %703, %705 : vector<8x16xf32>
    %cst_371 = arith.constant 0.000000e+00 : f32
    %707 = vector.broadcast %cst_371 : f32 to vector<8x16xf32>
    %708 = arith.maximumf %706, %707 : vector<8x16xf32>
    %c2_372 = arith.constant 2 : index
    %c6_373 = arith.constant 6 : index
    %709 = memref.load %arg20[%c2_372, %c6_373] : memref<4x16xf32, #tpu.memory_space<smem>>
    %710 = vector.broadcast %709 : f32 to vector<8x16xf32>
    %711 = arith.mulf %708, %710 : vector<8x16xf32>
    %712 = arith.addf %696, %711 : vector<8x16xf32>
    %c2_374 = arith.constant 2 : index
    %c7_375 = arith.constant 7 : index
    %713 = memref.load %arg17[%c2_374, %c7_375] : memref<4x16xf32, #tpu.memory_space<smem>>
    %714 = vector.broadcast %713 : f32 to vector<8x16xf32>
    %715 = arith.mulf %599, %714 : vector<8x16xf32>
    %c2_376 = arith.constant 2 : index
    %c7_377 = arith.constant 7 : index
    %716 = memref.load %arg18[%c2_376, %c7_377] : memref<4x16xf32, #tpu.memory_space<smem>>
    %717 = vector.broadcast %716 : f32 to vector<8x16xf32>
    %718 = arith.mulf %5, %717 : vector<8x16xf32>
    %719 = arith.addf %715, %718 : vector<8x16xf32>
    %c2_378 = arith.constant 2 : index
    %c7_379 = arith.constant 7 : index
    %720 = memref.load %arg19[%c2_378, %c7_379] : memref<4x16xf32, #tpu.memory_space<smem>>
    %721 = vector.broadcast %720 : f32 to vector<8x16xf32>
    %722 = arith.addf %719, %721 : vector<8x16xf32>
    %cst_380 = arith.constant 0.000000e+00 : f32
    %723 = vector.broadcast %cst_380 : f32 to vector<8x16xf32>
    %724 = arith.maximumf %722, %723 : vector<8x16xf32>
    %c2_381 = arith.constant 2 : index
    %c7_382 = arith.constant 7 : index
    %725 = memref.load %arg20[%c2_381, %c7_382] : memref<4x16xf32, #tpu.memory_space<smem>>
    %726 = vector.broadcast %725 : f32 to vector<8x16xf32>
    %727 = arith.mulf %724, %726 : vector<8x16xf32>
    %728 = arith.addf %712, %727 : vector<8x16xf32>
    %c2_383 = arith.constant 2 : index
    %c8_384 = arith.constant 8 : index
    %729 = memref.load %arg17[%c2_383, %c8_384] : memref<4x16xf32, #tpu.memory_space<smem>>
    %730 = vector.broadcast %729 : f32 to vector<8x16xf32>
    %731 = arith.mulf %599, %730 : vector<8x16xf32>
    %c2_385 = arith.constant 2 : index
    %c8_386 = arith.constant 8 : index
    %732 = memref.load %arg18[%c2_385, %c8_386] : memref<4x16xf32, #tpu.memory_space<smem>>
    %733 = vector.broadcast %732 : f32 to vector<8x16xf32>
    %734 = arith.mulf %5, %733 : vector<8x16xf32>
    %735 = arith.addf %731, %734 : vector<8x16xf32>
    %c2_387 = arith.constant 2 : index
    %c8_388 = arith.constant 8 : index
    %736 = memref.load %arg19[%c2_387, %c8_388] : memref<4x16xf32, #tpu.memory_space<smem>>
    %737 = vector.broadcast %736 : f32 to vector<8x16xf32>
    %738 = arith.addf %735, %737 : vector<8x16xf32>
    %cst_389 = arith.constant 0.000000e+00 : f32
    %739 = vector.broadcast %cst_389 : f32 to vector<8x16xf32>
    %740 = arith.maximumf %738, %739 : vector<8x16xf32>
    %c2_390 = arith.constant 2 : index
    %c8_391 = arith.constant 8 : index
    %741 = memref.load %arg20[%c2_390, %c8_391] : memref<4x16xf32, #tpu.memory_space<smem>>
    %742 = vector.broadcast %741 : f32 to vector<8x16xf32>
    %743 = arith.mulf %740, %742 : vector<8x16xf32>
    %744 = arith.addf %728, %743 : vector<8x16xf32>
    %c2_392 = arith.constant 2 : index
    %c9_393 = arith.constant 9 : index
    %745 = memref.load %arg17[%c2_392, %c9_393] : memref<4x16xf32, #tpu.memory_space<smem>>
    %746 = vector.broadcast %745 : f32 to vector<8x16xf32>
    %747 = arith.mulf %599, %746 : vector<8x16xf32>
    %c2_394 = arith.constant 2 : index
    %c9_395 = arith.constant 9 : index
    %748 = memref.load %arg18[%c2_394, %c9_395] : memref<4x16xf32, #tpu.memory_space<smem>>
    %749 = vector.broadcast %748 : f32 to vector<8x16xf32>
    %750 = arith.mulf %5, %749 : vector<8x16xf32>
    %751 = arith.addf %747, %750 : vector<8x16xf32>
    %c2_396 = arith.constant 2 : index
    %c9_397 = arith.constant 9 : index
    %752 = memref.load %arg19[%c2_396, %c9_397] : memref<4x16xf32, #tpu.memory_space<smem>>
    %753 = vector.broadcast %752 : f32 to vector<8x16xf32>
    %754 = arith.addf %751, %753 : vector<8x16xf32>
    %cst_398 = arith.constant 0.000000e+00 : f32
    %755 = vector.broadcast %cst_398 : f32 to vector<8x16xf32>
    %756 = arith.maximumf %754, %755 : vector<8x16xf32>
    %c2_399 = arith.constant 2 : index
    %c9_400 = arith.constant 9 : index
    %757 = memref.load %arg20[%c2_399, %c9_400] : memref<4x16xf32, #tpu.memory_space<smem>>
    %758 = vector.broadcast %757 : f32 to vector<8x16xf32>
    %759 = arith.mulf %756, %758 : vector<8x16xf32>
    %760 = arith.addf %744, %759 : vector<8x16xf32>
    %c2_401 = arith.constant 2 : index
    %c10_402 = arith.constant 10 : index
    %761 = memref.load %arg17[%c2_401, %c10_402] : memref<4x16xf32, #tpu.memory_space<smem>>
    %762 = vector.broadcast %761 : f32 to vector<8x16xf32>
    %763 = arith.mulf %599, %762 : vector<8x16xf32>
    %c2_403 = arith.constant 2 : index
    %c10_404 = arith.constant 10 : index
    %764 = memref.load %arg18[%c2_403, %c10_404] : memref<4x16xf32, #tpu.memory_space<smem>>
    %765 = vector.broadcast %764 : f32 to vector<8x16xf32>
    %766 = arith.mulf %5, %765 : vector<8x16xf32>
    %767 = arith.addf %763, %766 : vector<8x16xf32>
    %c2_405 = arith.constant 2 : index
    %c10_406 = arith.constant 10 : index
    %768 = memref.load %arg19[%c2_405, %c10_406] : memref<4x16xf32, #tpu.memory_space<smem>>
    %769 = vector.broadcast %768 : f32 to vector<8x16xf32>
    %770 = arith.addf %767, %769 : vector<8x16xf32>
    %cst_407 = arith.constant 0.000000e+00 : f32
    %771 = vector.broadcast %cst_407 : f32 to vector<8x16xf32>
    %772 = arith.maximumf %770, %771 : vector<8x16xf32>
    %c2_408 = arith.constant 2 : index
    %c10_409 = arith.constant 10 : index
    %773 = memref.load %arg20[%c2_408, %c10_409] : memref<4x16xf32, #tpu.memory_space<smem>>
    %774 = vector.broadcast %773 : f32 to vector<8x16xf32>
    %775 = arith.mulf %772, %774 : vector<8x16xf32>
    %776 = arith.addf %760, %775 : vector<8x16xf32>
    %c2_410 = arith.constant 2 : index
    %c11_411 = arith.constant 11 : index
    %777 = memref.load %arg17[%c2_410, %c11_411] : memref<4x16xf32, #tpu.memory_space<smem>>
    %778 = vector.broadcast %777 : f32 to vector<8x16xf32>
    %779 = arith.mulf %599, %778 : vector<8x16xf32>
    %c2_412 = arith.constant 2 : index
    %c11_413 = arith.constant 11 : index
    %780 = memref.load %arg18[%c2_412, %c11_413] : memref<4x16xf32, #tpu.memory_space<smem>>
    %781 = vector.broadcast %780 : f32 to vector<8x16xf32>
    %782 = arith.mulf %5, %781 : vector<8x16xf32>
    %783 = arith.addf %779, %782 : vector<8x16xf32>
    %c2_414 = arith.constant 2 : index
    %c11_415 = arith.constant 11 : index
    %784 = memref.load %arg19[%c2_414, %c11_415] : memref<4x16xf32, #tpu.memory_space<smem>>
    %785 = vector.broadcast %784 : f32 to vector<8x16xf32>
    %786 = arith.addf %783, %785 : vector<8x16xf32>
    %cst_416 = arith.constant 0.000000e+00 : f32
    %787 = vector.broadcast %cst_416 : f32 to vector<8x16xf32>
    %788 = arith.maximumf %786, %787 : vector<8x16xf32>
    %c2_417 = arith.constant 2 : index
    %c11_418 = arith.constant 11 : index
    %789 = memref.load %arg20[%c2_417, %c11_418] : memref<4x16xf32, #tpu.memory_space<smem>>
    %790 = vector.broadcast %789 : f32 to vector<8x16xf32>
    %791 = arith.mulf %788, %790 : vector<8x16xf32>
    %792 = arith.addf %776, %791 : vector<8x16xf32>
    %c2_419 = arith.constant 2 : index
    %c12_420 = arith.constant 12 : index
    %793 = memref.load %arg17[%c2_419, %c12_420] : memref<4x16xf32, #tpu.memory_space<smem>>
    %794 = vector.broadcast %793 : f32 to vector<8x16xf32>
    %795 = arith.mulf %599, %794 : vector<8x16xf32>
    %c2_421 = arith.constant 2 : index
    %c12_422 = arith.constant 12 : index
    %796 = memref.load %arg18[%c2_421, %c12_422] : memref<4x16xf32, #tpu.memory_space<smem>>
    %797 = vector.broadcast %796 : f32 to vector<8x16xf32>
    %798 = arith.mulf %5, %797 : vector<8x16xf32>
    %799 = arith.addf %795, %798 : vector<8x16xf32>
    %c2_423 = arith.constant 2 : index
    %c12_424 = arith.constant 12 : index
    %800 = memref.load %arg19[%c2_423, %c12_424] : memref<4x16xf32, #tpu.memory_space<smem>>
    %801 = vector.broadcast %800 : f32 to vector<8x16xf32>
    %802 = arith.addf %799, %801 : vector<8x16xf32>
    %cst_425 = arith.constant 0.000000e+00 : f32
    %803 = vector.broadcast %cst_425 : f32 to vector<8x16xf32>
    %804 = arith.maximumf %802, %803 : vector<8x16xf32>
    %c2_426 = arith.constant 2 : index
    %c12_427 = arith.constant 12 : index
    %805 = memref.load %arg20[%c2_426, %c12_427] : memref<4x16xf32, #tpu.memory_space<smem>>
    %806 = vector.broadcast %805 : f32 to vector<8x16xf32>
    %807 = arith.mulf %804, %806 : vector<8x16xf32>
    %808 = arith.addf %792, %807 : vector<8x16xf32>
    %c2_428 = arith.constant 2 : index
    %c13_429 = arith.constant 13 : index
    %809 = memref.load %arg17[%c2_428, %c13_429] : memref<4x16xf32, #tpu.memory_space<smem>>
    %810 = vector.broadcast %809 : f32 to vector<8x16xf32>
    %811 = arith.mulf %599, %810 : vector<8x16xf32>
    %c2_430 = arith.constant 2 : index
    %c13_431 = arith.constant 13 : index
    %812 = memref.load %arg18[%c2_430, %c13_431] : memref<4x16xf32, #tpu.memory_space<smem>>
    %813 = vector.broadcast %812 : f32 to vector<8x16xf32>
    %814 = arith.mulf %5, %813 : vector<8x16xf32>
    %815 = arith.addf %811, %814 : vector<8x16xf32>
    %c2_432 = arith.constant 2 : index
    %c13_433 = arith.constant 13 : index
    %816 = memref.load %arg19[%c2_432, %c13_433] : memref<4x16xf32, #tpu.memory_space<smem>>
    %817 = vector.broadcast %816 : f32 to vector<8x16xf32>
    %818 = arith.addf %815, %817 : vector<8x16xf32>
    %cst_434 = arith.constant 0.000000e+00 : f32
    %819 = vector.broadcast %cst_434 : f32 to vector<8x16xf32>
    %820 = arith.maximumf %818, %819 : vector<8x16xf32>
    %c2_435 = arith.constant 2 : index
    %c13_436 = arith.constant 13 : index
    %821 = memref.load %arg20[%c2_435, %c13_436] : memref<4x16xf32, #tpu.memory_space<smem>>
    %822 = vector.broadcast %821 : f32 to vector<8x16xf32>
    %823 = arith.mulf %820, %822 : vector<8x16xf32>
    %824 = arith.addf %808, %823 : vector<8x16xf32>
    %c2_437 = arith.constant 2 : index
    %c14_438 = arith.constant 14 : index
    %825 = memref.load %arg17[%c2_437, %c14_438] : memref<4x16xf32, #tpu.memory_space<smem>>
    %826 = vector.broadcast %825 : f32 to vector<8x16xf32>
    %827 = arith.mulf %599, %826 : vector<8x16xf32>
    %c2_439 = arith.constant 2 : index
    %c14_440 = arith.constant 14 : index
    %828 = memref.load %arg18[%c2_439, %c14_440] : memref<4x16xf32, #tpu.memory_space<smem>>
    %829 = vector.broadcast %828 : f32 to vector<8x16xf32>
    %830 = arith.mulf %5, %829 : vector<8x16xf32>
    %831 = arith.addf %827, %830 : vector<8x16xf32>
    %c2_441 = arith.constant 2 : index
    %c14_442 = arith.constant 14 : index
    %832 = memref.load %arg19[%c2_441, %c14_442] : memref<4x16xf32, #tpu.memory_space<smem>>
    %833 = vector.broadcast %832 : f32 to vector<8x16xf32>
    %834 = arith.addf %831, %833 : vector<8x16xf32>
    %cst_443 = arith.constant 0.000000e+00 : f32
    %835 = vector.broadcast %cst_443 : f32 to vector<8x16xf32>
    %836 = arith.maximumf %834, %835 : vector<8x16xf32>
    %c2_444 = arith.constant 2 : index
    %c14_445 = arith.constant 14 : index
    %837 = memref.load %arg20[%c2_444, %c14_445] : memref<4x16xf32, #tpu.memory_space<smem>>
    %838 = vector.broadcast %837 : f32 to vector<8x16xf32>
    %839 = arith.mulf %836, %838 : vector<8x16xf32>
    %840 = arith.addf %824, %839 : vector<8x16xf32>
    %c2_446 = arith.constant 2 : index
    %c15_447 = arith.constant 15 : index
    %841 = memref.load %arg17[%c2_446, %c15_447] : memref<4x16xf32, #tpu.memory_space<smem>>
    %842 = vector.broadcast %841 : f32 to vector<8x16xf32>
    %843 = arith.mulf %599, %842 : vector<8x16xf32>
    %c2_448 = arith.constant 2 : index
    %c15_449 = arith.constant 15 : index
    %844 = memref.load %arg18[%c2_448, %c15_449] : memref<4x16xf32, #tpu.memory_space<smem>>
    %845 = vector.broadcast %844 : f32 to vector<8x16xf32>
    %846 = arith.mulf %5, %845 : vector<8x16xf32>
    %847 = arith.addf %843, %846 : vector<8x16xf32>
    %c2_450 = arith.constant 2 : index
    %c15_451 = arith.constant 15 : index
    %848 = memref.load %arg19[%c2_450, %c15_451] : memref<4x16xf32, #tpu.memory_space<smem>>
    %849 = vector.broadcast %848 : f32 to vector<8x16xf32>
    %850 = arith.addf %847, %849 : vector<8x16xf32>
    %cst_452 = arith.constant 0.000000e+00 : f32
    %851 = vector.broadcast %cst_452 : f32 to vector<8x16xf32>
    %852 = arith.maximumf %850, %851 : vector<8x16xf32>
    %c2_453 = arith.constant 2 : index
    %c15_454 = arith.constant 15 : index
    %853 = memref.load %arg20[%c2_453, %c15_454] : memref<4x16xf32, #tpu.memory_space<smem>>
    %854 = vector.broadcast %853 : f32 to vector<8x16xf32>
    %855 = arith.mulf %852, %854 : vector<8x16xf32>
    %856 = arith.addf %840, %855 : vector<8x16xf32>
    %c2_455 = arith.constant 2 : index
    %857 = memref.load %arg21[%c2_455] : memref<4xf32, #tpu.memory_space<smem>>
    %858 = vector.broadcast %857 : f32 to vector<8x16xf32>
    %859 = arith.addf %856, %858 : vector<8x16xf32>
    %cst_456 = arith.constant dense<0xFF800000> : vector<8xf32>
    %860 = vector.multi_reduction <maximumf>, %859, %cst_456 [1] : vector<8x16xf32> to vector<8xf32>
    %861 = vector.shape_cast %860 : vector<8xf32> to vector<8x1xf32>
    %862 = vector.broadcast %861 : vector<8x1xf32> to vector<8x16xf32>
    %863 = arith.subf %859, %862 : vector<8x16xf32>
    %864 = math.exp %863 : vector<8x16xf32>
    %cst_457 = arith.constant dense<0.000000e+00> : vector<8xf32>
    %865 = vector.multi_reduction <add>, %864, %cst_457 [1] : vector<8x16xf32> to vector<8xf32>
    %866 = vector.shape_cast %865 : vector<8xf32> to vector<8x1xf32>
    %867 = vector.shape_cast %864 : vector<8x16xf32> to vector<1x8x16xf32>
    "tpu.trace_start"() <{level = 10 : i32, message = "brc,bcd->brd"}> : () -> ()
    %cst_458 = arith.constant dense<0.000000e+00> : vector<1x8x8xf32>
    %868 = tpu.matmul %867, %595, %cst_458 {dimension_numbers = #tpu.dot_dimension_numbers<[2], [1], [1], [2], [0, 0, 0, 1, 1, 2], [0], [0]>} : vector<1x8x16xf32>, vector<1x16x8xf32>, vector<1x8x8xf32> -> vector<1x8x8xf32>
    "tpu.trace_stop"() : () -> ()
    %869 = vector.shape_cast %868 : vector<1x8x8xf32> to vector<8x8xf32>
    %870 = tpu.reciprocal %866 {approx = true} : vector<8x1xf32> -> vector<8x1xf32>
    %871 = vector.broadcast %870 : vector<8x1xf32> to vector<8x8xf32>
    %872 = arith.mulf %869, %871 : vector<8x8xf32>
    %873 = arith.truncf %872 : vector<8x8xf32> to vector<8x8xbf16>
    %874 = vector.extract_strided_slice %14 {offsets = [16, 0], sizes = [8, 32], strides = [1, 1]} : vector<32x32xbf16> to vector<8x32xbf16>
    %cst_459 = arith.constant dense<0.000000e+00> : vector<8x32xf32>
    %875 = tpu.matmul %873, %874, %cst_459 {dimension_numbers = #tpu.dot_dimension_numbers<[1], [0], [0], [1], [0, 0, 1, 1], [], []>} : vector<8x8xbf16>, vector<8x32xbf16>, vector<8x32xf32> -> vector<8x32xf32>
    %876 = arith.addf %589, %875 : vector<8x32xf32>
    %877 = vector.extract_strided_slice %9 {offsets = [0, 24], sizes = [8, 8], strides = [1, 1]} : vector<8x32xf32> to vector<8x8xf32>
    %878 = vector.shape_cast %877 : vector<8x8xf32> to vector<1x8x8xf32>
    %879 = vector.extract_strided_slice %11 {offsets = [0, 24], sizes = [16, 8], strides = [1, 1]} : vector<16x32xf32> to vector<16x8xf32>
    %880 = vector.shape_cast %879 : vector<16x8xf32> to vector<1x16x8xf32>
    %881 = vector.extract_strided_slice %13 {offsets = [0, 24], sizes = [16, 8], strides = [1, 1]} : vector<16x32xf32> to vector<16x8xf32>
    %882 = vector.shape_cast %881 : vector<16x8xf32> to vector<1x16x8xf32>
    "tpu.trace_start"() <{level = 10 : i32, message = "brd,bcd->brc"}> : () -> ()
    %cst_460 = arith.constant dense<0.000000e+00> : vector<1x8x16xf32>
    %883 = tpu.matmul %878, %880, %cst_460 {dimension_numbers = #tpu.dot_dimension_numbers<[2], [2], [1], [1], [0, 0, 0, 1, 1, 1], [0], [0]>} : vector<1x8x8xf32>, vector<1x16x8xf32>, vector<1x8x16xf32> -> vector<1x8x16xf32>
    "tpu.trace_stop"() : () -> ()
    %884 = vector.shape_cast %883 : vector<1x8x16xf32> to vector<8x16xf32>
    %cst_461 = arith.constant 0.353553385 : f32
    %885 = vector.broadcast %cst_461 : f32 to vector<8x16xf32>
    %886 = arith.mulf %884, %885 : vector<8x16xf32>
    %cst_462 = arith.constant 0.000000e+00 : f32
    %887 = vector.broadcast %cst_462 : f32 to vector<8x16xf32>
    %c3_463 = arith.constant 3 : index
    %c0_464 = arith.constant 0 : index
    %888 = memref.load %arg17[%c3_463, %c0_464] : memref<4x16xf32, #tpu.memory_space<smem>>
    %889 = vector.broadcast %888 : f32 to vector<8x16xf32>
    %890 = arith.mulf %886, %889 : vector<8x16xf32>
    %c3_465 = arith.constant 3 : index
    %c0_466 = arith.constant 0 : index
    %891 = memref.load %arg18[%c3_465, %c0_466] : memref<4x16xf32, #tpu.memory_space<smem>>
    %892 = vector.broadcast %891 : f32 to vector<8x16xf32>
    %893 = arith.mulf %5, %892 : vector<8x16xf32>
    %894 = arith.addf %890, %893 : vector<8x16xf32>
    %c3_467 = arith.constant 3 : index
    %c0_468 = arith.constant 0 : index
    %895 = memref.load %arg19[%c3_467, %c0_468] : memref<4x16xf32, #tpu.memory_space<smem>>
    %896 = vector.broadcast %895 : f32 to vector<8x16xf32>
    %897 = arith.addf %894, %896 : vector<8x16xf32>
    %cst_469 = arith.constant 0.000000e+00 : f32
    %898 = vector.broadcast %cst_469 : f32 to vector<8x16xf32>
    %899 = arith.maximumf %897, %898 : vector<8x16xf32>
    %c3_470 = arith.constant 3 : index
    %c0_471 = arith.constant 0 : index
    %900 = memref.load %arg20[%c3_470, %c0_471] : memref<4x16xf32, #tpu.memory_space<smem>>
    %901 = vector.broadcast %900 : f32 to vector<8x16xf32>
    %902 = arith.mulf %899, %901 : vector<8x16xf32>
    %903 = arith.addf %887, %902 : vector<8x16xf32>
    %c3_472 = arith.constant 3 : index
    %c1_473 = arith.constant 1 : index
    %904 = memref.load %arg17[%c3_472, %c1_473] : memref<4x16xf32, #tpu.memory_space<smem>>
    %905 = vector.broadcast %904 : f32 to vector<8x16xf32>
    %906 = arith.mulf %886, %905 : vector<8x16xf32>
    %c3_474 = arith.constant 3 : index
    %c1_475 = arith.constant 1 : index
    %907 = memref.load %arg18[%c3_474, %c1_475] : memref<4x16xf32, #tpu.memory_space<smem>>
    %908 = vector.broadcast %907 : f32 to vector<8x16xf32>
    %909 = arith.mulf %5, %908 : vector<8x16xf32>
    %910 = arith.addf %906, %909 : vector<8x16xf32>
    %c3_476 = arith.constant 3 : index
    %c1_477 = arith.constant 1 : index
    %911 = memref.load %arg19[%c3_476, %c1_477] : memref<4x16xf32, #tpu.memory_space<smem>>
    %912 = vector.broadcast %911 : f32 to vector<8x16xf32>
    %913 = arith.addf %910, %912 : vector<8x16xf32>
    %cst_478 = arith.constant 0.000000e+00 : f32
    %914 = vector.broadcast %cst_478 : f32 to vector<8x16xf32>
    %915 = arith.maximumf %913, %914 : vector<8x16xf32>
    %c3_479 = arith.constant 3 : index
    %c1_480 = arith.constant 1 : index
    %916 = memref.load %arg20[%c3_479, %c1_480] : memref<4x16xf32, #tpu.memory_space<smem>>
    %917 = vector.broadcast %916 : f32 to vector<8x16xf32>
    %918 = arith.mulf %915, %917 : vector<8x16xf32>
    %919 = arith.addf %903, %918 : vector<8x16xf32>
    %c3_481 = arith.constant 3 : index
    %c2_482 = arith.constant 2 : index
    %920 = memref.load %arg17[%c3_481, %c2_482] : memref<4x16xf32, #tpu.memory_space<smem>>
    %921 = vector.broadcast %920 : f32 to vector<8x16xf32>
    %922 = arith.mulf %886, %921 : vector<8x16xf32>
    %c3_483 = arith.constant 3 : index
    %c2_484 = arith.constant 2 : index
    %923 = memref.load %arg18[%c3_483, %c2_484] : memref<4x16xf32, #tpu.memory_space<smem>>
    %924 = vector.broadcast %923 : f32 to vector<8x16xf32>
    %925 = arith.mulf %5, %924 : vector<8x16xf32>
    %926 = arith.addf %922, %925 : vector<8x16xf32>
    %c3_485 = arith.constant 3 : index
    %c2_486 = arith.constant 2 : index
    %927 = memref.load %arg19[%c3_485, %c2_486] : memref<4x16xf32, #tpu.memory_space<smem>>
    %928 = vector.broadcast %927 : f32 to vector<8x16xf32>
    %929 = arith.addf %926, %928 : vector<8x16xf32>
    %cst_487 = arith.constant 0.000000e+00 : f32
    %930 = vector.broadcast %cst_487 : f32 to vector<8x16xf32>
    %931 = arith.maximumf %929, %930 : vector<8x16xf32>
    %c3_488 = arith.constant 3 : index
    %c2_489 = arith.constant 2 : index
    %932 = memref.load %arg20[%c3_488, %c2_489] : memref<4x16xf32, #tpu.memory_space<smem>>
    %933 = vector.broadcast %932 : f32 to vector<8x16xf32>
    %934 = arith.mulf %931, %933 : vector<8x16xf32>
    %935 = arith.addf %919, %934 : vector<8x16xf32>
    %c3_490 = arith.constant 3 : index
    %c3_491 = arith.constant 3 : index
    %936 = memref.load %arg17[%c3_490, %c3_491] : memref<4x16xf32, #tpu.memory_space<smem>>
    %937 = vector.broadcast %936 : f32 to vector<8x16xf32>
    %938 = arith.mulf %886, %937 : vector<8x16xf32>
    %c3_492 = arith.constant 3 : index
    %c3_493 = arith.constant 3 : index
    %939 = memref.load %arg18[%c3_492, %c3_493] : memref<4x16xf32, #tpu.memory_space<smem>>
    %940 = vector.broadcast %939 : f32 to vector<8x16xf32>
    %941 = arith.mulf %5, %940 : vector<8x16xf32>
    %942 = arith.addf %938, %941 : vector<8x16xf32>
    %c3_494 = arith.constant 3 : index
    %c3_495 = arith.constant 3 : index
    %943 = memref.load %arg19[%c3_494, %c3_495] : memref<4x16xf32, #tpu.memory_space<smem>>
    %944 = vector.broadcast %943 : f32 to vector<8x16xf32>
    %945 = arith.addf %942, %944 : vector<8x16xf32>
    %cst_496 = arith.constant 0.000000e+00 : f32
    %946 = vector.broadcast %cst_496 : f32 to vector<8x16xf32>
    %947 = arith.maximumf %945, %946 : vector<8x16xf32>
    %c3_497 = arith.constant 3 : index
    %c3_498 = arith.constant 3 : index
    %948 = memref.load %arg20[%c3_497, %c3_498] : memref<4x16xf32, #tpu.memory_space<smem>>
    %949 = vector.broadcast %948 : f32 to vector<8x16xf32>
    %950 = arith.mulf %947, %949 : vector<8x16xf32>
    %951 = arith.addf %935, %950 : vector<8x16xf32>
    %c3_499 = arith.constant 3 : index
    %c4_500 = arith.constant 4 : index
    %952 = memref.load %arg17[%c3_499, %c4_500] : memref<4x16xf32, #tpu.memory_space<smem>>
    %953 = vector.broadcast %952 : f32 to vector<8x16xf32>
    %954 = arith.mulf %886, %953 : vector<8x16xf32>
    %c3_501 = arith.constant 3 : index
    %c4_502 = arith.constant 4 : index
    %955 = memref.load %arg18[%c3_501, %c4_502] : memref<4x16xf32, #tpu.memory_space<smem>>
    %956 = vector.broadcast %955 : f32 to vector<8x16xf32>
    %957 = arith.mulf %5, %956 : vector<8x16xf32>
    %958 = arith.addf %954, %957 : vector<8x16xf32>
    %c3_503 = arith.constant 3 : index
    %c4_504 = arith.constant 4 : index
    %959 = memref.load %arg19[%c3_503, %c4_504] : memref<4x16xf32, #tpu.memory_space<smem>>
    %960 = vector.broadcast %959 : f32 to vector<8x16xf32>
    %961 = arith.addf %958, %960 : vector<8x16xf32>
    %cst_505 = arith.constant 0.000000e+00 : f32
    %962 = vector.broadcast %cst_505 : f32 to vector<8x16xf32>
    %963 = arith.maximumf %961, %962 : vector<8x16xf32>
    %c3_506 = arith.constant 3 : index
    %c4_507 = arith.constant 4 : index
    %964 = memref.load %arg20[%c3_506, %c4_507] : memref<4x16xf32, #tpu.memory_space<smem>>
    %965 = vector.broadcast %964 : f32 to vector<8x16xf32>
    %966 = arith.mulf %963, %965 : vector<8x16xf32>
    %967 = arith.addf %951, %966 : vector<8x16xf32>
    %c3_508 = arith.constant 3 : index
    %c5_509 = arith.constant 5 : index
    %968 = memref.load %arg17[%c3_508, %c5_509] : memref<4x16xf32, #tpu.memory_space<smem>>
    %969 = vector.broadcast %968 : f32 to vector<8x16xf32>
    %970 = arith.mulf %886, %969 : vector<8x16xf32>
    %c3_510 = arith.constant 3 : index
    %c5_511 = arith.constant 5 : index
    %971 = memref.load %arg18[%c3_510, %c5_511] : memref<4x16xf32, #tpu.memory_space<smem>>
    %972 = vector.broadcast %971 : f32 to vector<8x16xf32>
    %973 = arith.mulf %5, %972 : vector<8x16xf32>
    %974 = arith.addf %970, %973 : vector<8x16xf32>
    %c3_512 = arith.constant 3 : index
    %c5_513 = arith.constant 5 : index
    %975 = memref.load %arg19[%c3_512, %c5_513] : memref<4x16xf32, #tpu.memory_space<smem>>
    %976 = vector.broadcast %975 : f32 to vector<8x16xf32>
    %977 = arith.addf %974, %976 : vector<8x16xf32>
    %cst_514 = arith.constant 0.000000e+00 : f32
    %978 = vector.broadcast %cst_514 : f32 to vector<8x16xf32>
    %979 = arith.maximumf %977, %978 : vector<8x16xf32>
    %c3_515 = arith.constant 3 : index
    %c5_516 = arith.constant 5 : index
    %980 = memref.load %arg20[%c3_515, %c5_516] : memref<4x16xf32, #tpu.memory_space<smem>>
    %981 = vector.broadcast %980 : f32 to vector<8x16xf32>
    %982 = arith.mulf %979, %981 : vector<8x16xf32>
    %983 = arith.addf %967, %982 : vector<8x16xf32>
    %c3_517 = arith.constant 3 : index
    %c6_518 = arith.constant 6 : index
    %984 = memref.load %arg17[%c3_517, %c6_518] : memref<4x16xf32, #tpu.memory_space<smem>>
    %985 = vector.broadcast %984 : f32 to vector<8x16xf32>
    %986 = arith.mulf %886, %985 : vector<8x16xf32>
    %c3_519 = arith.constant 3 : index
    %c6_520 = arith.constant 6 : index
    %987 = memref.load %arg18[%c3_519, %c6_520] : memref<4x16xf32, #tpu.memory_space<smem>>
    %988 = vector.broadcast %987 : f32 to vector<8x16xf32>
    %989 = arith.mulf %5, %988 : vector<8x16xf32>
    %990 = arith.addf %986, %989 : vector<8x16xf32>
    %c3_521 = arith.constant 3 : index
    %c6_522 = arith.constant 6 : index
    %991 = memref.load %arg19[%c3_521, %c6_522] : memref<4x16xf32, #tpu.memory_space<smem>>
    %992 = vector.broadcast %991 : f32 to vector<8x16xf32>
    %993 = arith.addf %990, %992 : vector<8x16xf32>
    %cst_523 = arith.constant 0.000000e+00 : f32
    %994 = vector.broadcast %cst_523 : f32 to vector<8x16xf32>
    %995 = arith.maximumf %993, %994 : vector<8x16xf32>
    %c3_524 = arith.constant 3 : index
    %c6_525 = arith.constant 6 : index
    %996 = memref.load %arg20[%c3_524, %c6_525] : memref<4x16xf32, #tpu.memory_space<smem>>
    %997 = vector.broadcast %996 : f32 to vector<8x16xf32>
    %998 = arith.mulf %995, %997 : vector<8x16xf32>
    %999 = arith.addf %983, %998 : vector<8x16xf32>
    %c3_526 = arith.constant 3 : index
    %c7_527 = arith.constant 7 : index
    %1000 = memref.load %arg17[%c3_526, %c7_527] : memref<4x16xf32, #tpu.memory_space<smem>>
    %1001 = vector.broadcast %1000 : f32 to vector<8x16xf32>
    %1002 = arith.mulf %886, %1001 : vector<8x16xf32>
    %c3_528 = arith.constant 3 : index
    %c7_529 = arith.constant 7 : index
    %1003 = memref.load %arg18[%c3_528, %c7_529] : memref<4x16xf32, #tpu.memory_space<smem>>
    %1004 = vector.broadcast %1003 : f32 to vector<8x16xf32>
    %1005 = arith.mulf %5, %1004 : vector<8x16xf32>
    %1006 = arith.addf %1002, %1005 : vector<8x16xf32>
    %c3_530 = arith.constant 3 : index
    %c7_531 = arith.constant 7 : index
    %1007 = memref.load %arg19[%c3_530, %c7_531] : memref<4x16xf32, #tpu.memory_space<smem>>
    %1008 = vector.broadcast %1007 : f32 to vector<8x16xf32>
    %1009 = arith.addf %1006, %1008 : vector<8x16xf32>
    %cst_532 = arith.constant 0.000000e+00 : f32
    %1010 = vector.broadcast %cst_532 : f32 to vector<8x16xf32>
    %1011 = arith.maximumf %1009, %1010 : vector<8x16xf32>
    %c3_533 = arith.constant 3 : index
    %c7_534 = arith.constant 7 : index
    %1012 = memref.load %arg20[%c3_533, %c7_534] : memref<4x16xf32, #tpu.memory_space<smem>>
    %1013 = vector.broadcast %1012 : f32 to vector<8x16xf32>
    %1014 = arith.mulf %1011, %1013 : vector<8x16xf32>
    %1015 = arith.addf %999, %1014 : vector<8x16xf32>
    %c3_535 = arith.constant 3 : index
    %c8_536 = arith.constant 8 : index
    %1016 = memref.load %arg17[%c3_535, %c8_536] : memref<4x16xf32, #tpu.memory_space<smem>>
    %1017 = vector.broadcast %1016 : f32 to vector<8x16xf32>
    %1018 = arith.mulf %886, %1017 : vector<8x16xf32>
    %c3_537 = arith.constant 3 : index
    %c8_538 = arith.constant 8 : index
    %1019 = memref.load %arg18[%c3_537, %c8_538] : memref<4x16xf32, #tpu.memory_space<smem>>
    %1020 = vector.broadcast %1019 : f32 to vector<8x16xf32>
    %1021 = arith.mulf %5, %1020 : vector<8x16xf32>
    %1022 = arith.addf %1018, %1021 : vector<8x16xf32>
    %c3_539 = arith.constant 3 : index
    %c8_540 = arith.constant 8 : index
    %1023 = memref.load %arg19[%c3_539, %c8_540] : memref<4x16xf32, #tpu.memory_space<smem>>
    %1024 = vector.broadcast %1023 : f32 to vector<8x16xf32>
    %1025 = arith.addf %1022, %1024 : vector<8x16xf32>
    %cst_541 = arith.constant 0.000000e+00 : f32
    %1026 = vector.broadcast %cst_541 : f32 to vector<8x16xf32>
    %1027 = arith.maximumf %1025, %1026 : vector<8x16xf32>
    %c3_542 = arith.constant 3 : index
    %c8_543 = arith.constant 8 : index
    %1028 = memref.load %arg20[%c3_542, %c8_543] : memref<4x16xf32, #tpu.memory_space<smem>>
    %1029 = vector.broadcast %1028 : f32 to vector<8x16xf32>
    %1030 = arith.mulf %1027, %1029 : vector<8x16xf32>
    %1031 = arith.addf %1015, %1030 : vector<8x16xf32>
    %c3_544 = arith.constant 3 : index
    %c9_545 = arith.constant 9 : index
    %1032 = memref.load %arg17[%c3_544, %c9_545] : memref<4x16xf32, #tpu.memory_space<smem>>
    %1033 = vector.broadcast %1032 : f32 to vector<8x16xf32>
    %1034 = arith.mulf %886, %1033 : vector<8x16xf32>
    %c3_546 = arith.constant 3 : index
    %c9_547 = arith.constant 9 : index
    %1035 = memref.load %arg18[%c3_546, %c9_547] : memref<4x16xf32, #tpu.memory_space<smem>>
    %1036 = vector.broadcast %1035 : f32 to vector<8x16xf32>
    %1037 = arith.mulf %5, %1036 : vector<8x16xf32>
    %1038 = arith.addf %1034, %1037 : vector<8x16xf32>
    %c3_548 = arith.constant 3 : index
    %c9_549 = arith.constant 9 : index
    %1039 = memref.load %arg19[%c3_548, %c9_549] : memref<4x16xf32, #tpu.memory_space<smem>>
    %1040 = vector.broadcast %1039 : f32 to vector<8x16xf32>
    %1041 = arith.addf %1038, %1040 : vector<8x16xf32>
    %cst_550 = arith.constant 0.000000e+00 : f32
    %1042 = vector.broadcast %cst_550 : f32 to vector<8x16xf32>
    %1043 = arith.maximumf %1041, %1042 : vector<8x16xf32>
    %c3_551 = arith.constant 3 : index
    %c9_552 = arith.constant 9 : index
    %1044 = memref.load %arg20[%c3_551, %c9_552] : memref<4x16xf32, #tpu.memory_space<smem>>
    %1045 = vector.broadcast %1044 : f32 to vector<8x16xf32>
    %1046 = arith.mulf %1043, %1045 : vector<8x16xf32>
    %1047 = arith.addf %1031, %1046 : vector<8x16xf32>
    %c3_553 = arith.constant 3 : index
    %c10_554 = arith.constant 10 : index
    %1048 = memref.load %arg17[%c3_553, %c10_554] : memref<4x16xf32, #tpu.memory_space<smem>>
    %1049 = vector.broadcast %1048 : f32 to vector<8x16xf32>
    %1050 = arith.mulf %886, %1049 : vector<8x16xf32>
    %c3_555 = arith.constant 3 : index
    %c10_556 = arith.constant 10 : index
    %1051 = memref.load %arg18[%c3_555, %c10_556] : memref<4x16xf32, #tpu.memory_space<smem>>
    %1052 = vector.broadcast %1051 : f32 to vector<8x16xf32>
    %1053 = arith.mulf %5, %1052 : vector<8x16xf32>
    %1054 = arith.addf %1050, %1053 : vector<8x16xf32>
    %c3_557 = arith.constant 3 : index
    %c10_558 = arith.constant 10 : index
    %1055 = memref.load %arg19[%c3_557, %c10_558] : memref<4x16xf32, #tpu.memory_space<smem>>
    %1056 = vector.broadcast %1055 : f32 to vector<8x16xf32>
    %1057 = arith.addf %1054, %1056 : vector<8x16xf32>
    %cst_559 = arith.constant 0.000000e+00 : f32
    %1058 = vector.broadcast %cst_559 : f32 to vector<8x16xf32>
    %1059 = arith.maximumf %1057, %1058 : vector<8x16xf32>
    %c3_560 = arith.constant 3 : index
    %c10_561 = arith.constant 10 : index
    %1060 = memref.load %arg20[%c3_560, %c10_561] : memref<4x16xf32, #tpu.memory_space<smem>>
    %1061 = vector.broadcast %1060 : f32 to vector<8x16xf32>
    %1062 = arith.mulf %1059, %1061 : vector<8x16xf32>
    %1063 = arith.addf %1047, %1062 : vector<8x16xf32>
    %c3_562 = arith.constant 3 : index
    %c11_563 = arith.constant 11 : index
    %1064 = memref.load %arg17[%c3_562, %c11_563] : memref<4x16xf32, #tpu.memory_space<smem>>
    %1065 = vector.broadcast %1064 : f32 to vector<8x16xf32>
    %1066 = arith.mulf %886, %1065 : vector<8x16xf32>
    %c3_564 = arith.constant 3 : index
    %c11_565 = arith.constant 11 : index
    %1067 = memref.load %arg18[%c3_564, %c11_565] : memref<4x16xf32, #tpu.memory_space<smem>>
    %1068 = vector.broadcast %1067 : f32 to vector<8x16xf32>
    %1069 = arith.mulf %5, %1068 : vector<8x16xf32>
    %1070 = arith.addf %1066, %1069 : vector<8x16xf32>
    %c3_566 = arith.constant 3 : index
    %c11_567 = arith.constant 11 : index
    %1071 = memref.load %arg19[%c3_566, %c11_567] : memref<4x16xf32, #tpu.memory_space<smem>>
    %1072 = vector.broadcast %1071 : f32 to vector<8x16xf32>
    %1073 = arith.addf %1070, %1072 : vector<8x16xf32>
    %cst_568 = arith.constant 0.000000e+00 : f32
    %1074 = vector.broadcast %cst_568 : f32 to vector<8x16xf32>
    %1075 = arith.maximumf %1073, %1074 : vector<8x16xf32>
    %c3_569 = arith.constant 3 : index
    %c11_570 = arith.constant 11 : index
    %1076 = memref.load %arg20[%c3_569, %c11_570] : memref<4x16xf32, #tpu.memory_space<smem>>
    %1077 = vector.broadcast %1076 : f32 to vector<8x16xf32>
    %1078 = arith.mulf %1075, %1077 : vector<8x16xf32>
    %1079 = arith.addf %1063, %1078 : vector<8x16xf32>
    %c3_571 = arith.constant 3 : index
    %c12_572 = arith.constant 12 : index
    %1080 = memref.load %arg17[%c3_571, %c12_572] : memref<4x16xf32, #tpu.memory_space<smem>>
    %1081 = vector.broadcast %1080 : f32 to vector<8x16xf32>
    %1082 = arith.mulf %886, %1081 : vector<8x16xf32>
    %c3_573 = arith.constant 3 : index
    %c12_574 = arith.constant 12 : index
    %1083 = memref.load %arg18[%c3_573, %c12_574] : memref<4x16xf32, #tpu.memory_space<smem>>
    %1084 = vector.broadcast %1083 : f32 to vector<8x16xf32>
    %1085 = arith.mulf %5, %1084 : vector<8x16xf32>
    %1086 = arith.addf %1082, %1085 : vector<8x16xf32>
    %c3_575 = arith.constant 3 : index
    %c12_576 = arith.constant 12 : index
    %1087 = memref.load %arg19[%c3_575, %c12_576] : memref<4x16xf32, #tpu.memory_space<smem>>
    %1088 = vector.broadcast %1087 : f32 to vector<8x16xf32>
    %1089 = arith.addf %1086, %1088 : vector<8x16xf32>
    %cst_577 = arith.constant 0.000000e+00 : f32
    %1090 = vector.broadcast %cst_577 : f32 to vector<8x16xf32>
    %1091 = arith.maximumf %1089, %1090 : vector<8x16xf32>
    %c3_578 = arith.constant 3 : index
    %c12_579 = arith.constant 12 : index
    %1092 = memref.load %arg20[%c3_578, %c12_579] : memref<4x16xf32, #tpu.memory_space<smem>>
    %1093 = vector.broadcast %1092 : f32 to vector<8x16xf32>
    %1094 = arith.mulf %1091, %1093 : vector<8x16xf32>
    %1095 = arith.addf %1079, %1094 : vector<8x16xf32>
    %c3_580 = arith.constant 3 : index
    %c13_581 = arith.constant 13 : index
    %1096 = memref.load %arg17[%c3_580, %c13_581] : memref<4x16xf32, #tpu.memory_space<smem>>
    %1097 = vector.broadcast %1096 : f32 to vector<8x16xf32>
    %1098 = arith.mulf %886, %1097 : vector<8x16xf32>
    %c3_582 = arith.constant 3 : index
    %c13_583 = arith.constant 13 : index
    %1099 = memref.load %arg18[%c3_582, %c13_583] : memref<4x16xf32, #tpu.memory_space<smem>>
    %1100 = vector.broadcast %1099 : f32 to vector<8x16xf32>
    %1101 = arith.mulf %5, %1100 : vector<8x16xf32>
    %1102 = arith.addf %1098, %1101 : vector<8x16xf32>
    %c3_584 = arith.constant 3 : index
    %c13_585 = arith.constant 13 : index
    %1103 = memref.load %arg19[%c3_584, %c13_585] : memref<4x16xf32, #tpu.memory_space<smem>>
    %1104 = vector.broadcast %1103 : f32 to vector<8x16xf32>
    %1105 = arith.addf %1102, %1104 : vector<8x16xf32>
    %cst_586 = arith.constant 0.000000e+00 : f32
    %1106 = vector.broadcast %cst_586 : f32 to vector<8x16xf32>
    %1107 = arith.maximumf %1105, %1106 : vector<8x16xf32>
    %c3_587 = arith.constant 3 : index
    %c13_588 = arith.constant 13 : index
    %1108 = memref.load %arg20[%c3_587, %c13_588] : memref<4x16xf32, #tpu.memory_space<smem>>
    %1109 = vector.broadcast %1108 : f32 to vector<8x16xf32>
    %1110 = arith.mulf %1107, %1109 : vector<8x16xf32>
    %1111 = arith.addf %1095, %1110 : vector<8x16xf32>
    %c3_589 = arith.constant 3 : index
    %c14_590 = arith.constant 14 : index
    %1112 = memref.load %arg17[%c3_589, %c14_590] : memref<4x16xf32, #tpu.memory_space<smem>>
    %1113 = vector.broadcast %1112 : f32 to vector<8x16xf32>
    %1114 = arith.mulf %886, %1113 : vector<8x16xf32>
    %c3_591 = arith.constant 3 : index
    %c14_592 = arith.constant 14 : index
    %1115 = memref.load %arg18[%c3_591, %c14_592] : memref<4x16xf32, #tpu.memory_space<smem>>
    %1116 = vector.broadcast %1115 : f32 to vector<8x16xf32>
    %1117 = arith.mulf %5, %1116 : vector<8x16xf32>
    %1118 = arith.addf %1114, %1117 : vector<8x16xf32>
    %c3_593 = arith.constant 3 : index
    %c14_594 = arith.constant 14 : index
    %1119 = memref.load %arg19[%c3_593, %c14_594] : memref<4x16xf32, #tpu.memory_space<smem>>
    %1120 = vector.broadcast %1119 : f32 to vector<8x16xf32>
    %1121 = arith.addf %1118, %1120 : vector<8x16xf32>
    %cst_595 = arith.constant 0.000000e+00 : f32
    %1122 = vector.broadcast %cst_595 : f32 to vector<8x16xf32>
    %1123 = arith.maximumf %1121, %1122 : vector<8x16xf32>
    %c3_596 = arith.constant 3 : index
    %c14_597 = arith.constant 14 : index
    %1124 = memref.load %arg20[%c3_596, %c14_597] : memref<4x16xf32, #tpu.memory_space<smem>>
    %1125 = vector.broadcast %1124 : f32 to vector<8x16xf32>
    %1126 = arith.mulf %1123, %1125 : vector<8x16xf32>
    %1127 = arith.addf %1111, %1126 : vector<8x16xf32>
    %c3_598 = arith.constant 3 : index
    %c15_599 = arith.constant 15 : index
    %1128 = memref.load %arg17[%c3_598, %c15_599] : memref<4x16xf32, #tpu.memory_space<smem>>
    %1129 = vector.broadcast %1128 : f32 to vector<8x16xf32>
    %1130 = arith.mulf %886, %1129 : vector<8x16xf32>
    %c3_600 = arith.constant 3 : index
    %c15_601 = arith.constant 15 : index
    %1131 = memref.load %arg18[%c3_600, %c15_601] : memref<4x16xf32, #tpu.memory_space<smem>>
    %1132 = vector.broadcast %1131 : f32 to vector<8x16xf32>
    %1133 = arith.mulf %5, %1132 : vector<8x16xf32>
    %1134 = arith.addf %1130, %1133 : vector<8x16xf32>
    %c3_602 = arith.constant 3 : index
    %c15_603 = arith.constant 15 : index
    %1135 = memref.load %arg19[%c3_602, %c15_603] : memref<4x16xf32, #tpu.memory_space<smem>>
    %1136 = vector.broadcast %1135 : f32 to vector<8x16xf32>
    %1137 = arith.addf %1134, %1136 : vector<8x16xf32>
    %cst_604 = arith.constant 0.000000e+00 : f32
    %1138 = vector.broadcast %cst_604 : f32 to vector<8x16xf32>
    %1139 = arith.maximumf %1137, %1138 : vector<8x16xf32>
    %c3_605 = arith.constant 3 : index
    %c15_606 = arith.constant 15 : index
    %1140 = memref.load %arg20[%c3_605, %c15_606] : memref<4x16xf32, #tpu.memory_space<smem>>
    %1141 = vector.broadcast %1140 : f32 to vector<8x16xf32>
    %1142 = arith.mulf %1139, %1141 : vector<8x16xf32>
    %1143 = arith.addf %1127, %1142 : vector<8x16xf32>
    %c3_607 = arith.constant 3 : index
    %1144 = memref.load %arg21[%c3_607] : memref<4xf32, #tpu.memory_space<smem>>
    %1145 = vector.broadcast %1144 : f32 to vector<8x16xf32>
    %1146 = arith.addf %1143, %1145 : vector<8x16xf32>
    %cst_608 = arith.constant dense<0xFF800000> : vector<8xf32>
    %1147 = vector.multi_reduction <maximumf>, %1146, %cst_608 [1] : vector<8x16xf32> to vector<8xf32>
    %1148 = vector.shape_cast %1147 : vector<8xf32> to vector<8x1xf32>
    %1149 = vector.broadcast %1148 : vector<8x1xf32> to vector<8x16xf32>
    %1150 = arith.subf %1146, %1149 : vector<8x16xf32>
    %1151 = math.exp %1150 : vector<8x16xf32>
    %cst_609 = arith.constant dense<0.000000e+00> : vector<8xf32>
    %1152 = vector.multi_reduction <add>, %1151, %cst_609 [1] : vector<8x16xf32> to vector<8xf32>
    %1153 = vector.shape_cast %1152 : vector<8xf32> to vector<8x1xf32>
    %1154 = vector.shape_cast %1151 : vector<8x16xf32> to vector<1x8x16xf32>
    "tpu.trace_start"() <{level = 10 : i32, message = "brc,bcd->brd"}> : () -> ()
    %cst_610 = arith.constant dense<0.000000e+00> : vector<1x8x8xf32>
    %1155 = tpu.matmul %1154, %882, %cst_610 {dimension_numbers = #tpu.dot_dimension_numbers<[2], [1], [1], [2], [0, 0, 0, 1, 1, 2], [0], [0]>} : vector<1x8x16xf32>, vector<1x16x8xf32>, vector<1x8x8xf32> -> vector<1x8x8xf32>
    "tpu.trace_stop"() : () -> ()
    %1156 = vector.shape_cast %1155 : vector<1x8x8xf32> to vector<8x8xf32>
    %1157 = tpu.reciprocal %1153 {approx = true} : vector<8x1xf32> -> vector<8x1xf32>
    %1158 = vector.broadcast %1157 : vector<8x1xf32> to vector<8x8xf32>
    %1159 = arith.mulf %1156, %1158 : vector<8x8xf32>
    %1160 = arith.truncf %1159 : vector<8x8xf32> to vector<8x8xbf16>
    %1161 = vector.extract_strided_slice %14 {offsets = [24, 0], sizes = [8, 32], strides = [1, 1]} : vector<32x32xbf16> to vector<8x32xbf16>
    %cst_611 = arith.constant dense<0.000000e+00> : vector<8x32xf32>
    %1162 = tpu.matmul %1160, %1161, %cst_611 {dimension_numbers = #tpu.dot_dimension_numbers<[1], [0], [0], [1], [0, 0, 1, 1], [], []>} : vector<8x8xbf16>, vector<8x32xbf16>, vector<8x32xf32> -> vector<8x32xf32>
    %1163 = arith.addf %876, %1162 : vector<8x32xf32>
    %c0_612 = arith.constant 0 : index
    %c0_613 = arith.constant 0 : index
    %1164 = vector.load %arg8[%c0_612, %c0_613] : memref<1x32xf32, #tpu.memory_space<vmem>>, vector<1x32xf32>
    %1165 = vector.broadcast %1164 : vector<1x32xf32> to vector<8x32xf32>
    %1166 = arith.addf %1163, %1165 : vector<8x32xf32>
    %1167 = vector.shape_cast %1166 : vector<8x32xf32> to vector<1x8x32xf32>
    %1168 = arith.addf %0, %1167 : vector<1x8x32xf32>
    %c0_614 = arith.constant 0 : index
    %c0_615 = arith.constant 0 : index
    %1169 = vector.load %arg9[%c0_614, %c0_615] : memref<1x32xf32, #tpu.memory_space<vmem>>, vector<1x32xf32>
    %c0_616 = arith.constant 0 : index
    %c0_617 = arith.constant 0 : index
    %1170 = vector.load %arg10[%c0_616, %c0_617] : memref<1x32xf32, #tpu.memory_space<vmem>>, vector<1x32xf32>
    %cst_618 = arith.constant dense<0.000000e+00> : vector<1x32xf32>
    %1171 = vector.multi_reduction <add>, %1168, %cst_618 [1] : vector<1x8x32xf32> to vector<1x32xf32>
    %1172 = vector.shape_cast %1171 : vector<1x32xf32> to vector<1x1x32xf32>
    %cst_619 = arith.constant 8.000000e+00 : f32
    %1173 = vector.broadcast %cst_619 : f32 to vector<1x1x32xf32>
    %1174 = arith.divf %1172, %1173 : vector<1x1x32xf32>
    %1175 = vector.broadcast %1174 : vector<1x1x32xf32> to vector<1x8x32xf32>
    %1176 = arith.subf %1168, %1175 : vector<1x8x32xf32>
    %1177 = arith.mulf %1176, %1176 : vector<1x8x32xf32>
    %cst_620 = arith.constant dense<0.000000e+00> : vector<1x32xf32>
    %1178 = vector.multi_reduction <add>, %1177, %cst_620 [1] : vector<1x8x32xf32> to vector<1x32xf32>
    %1179 = vector.shape_cast %1178 : vector<1x32xf32> to vector<1x1x32xf32>
    %cst_621 = arith.constant 8.000000e+00 : f32
    %1180 = vector.broadcast %cst_621 : f32 to vector<1x1x32xf32>
    %1181 = arith.divf %1179, %1180 : vector<1x1x32xf32>
    %cst_622 = arith.constant 9.99999974E-6 : f32
    %1182 = vector.broadcast %cst_622 : f32 to vector<1x1x32xf32>
    %1183 = arith.addf %1181, %1182 : vector<1x1x32xf32>
    %1184 = math.rsqrt %1183 : vector<1x1x32xf32>
    %1185 = vector.broadcast %1184 : vector<1x1x32xf32> to vector<1x8x32xf32>
    %1186 = arith.mulf %1176, %1185 : vector<1x8x32xf32>
    %1187 = vector.shape_cast %1169 : vector<1x32xf32> to vector<1x1x32xf32>
    %1188 = vector.broadcast %1187 : vector<1x1x32xf32> to vector<1x8x32xf32>
    %1189 = arith.mulf %1186, %1188 : vector<1x8x32xf32>
    %1190 = vector.shape_cast %1170 : vector<1x32xf32> to vector<1x1x32xf32>
    %1191 = vector.broadcast %1190 : vector<1x1x32xf32> to vector<1x8x32xf32>
    %1192 = arith.addf %1189, %1191 : vector<1x8x32xf32>
    %1193 = vector.shape_cast %1192 : vector<1x8x32xf32> to vector<8x32xf32>
    %1194 = arith.truncf %1193 : vector<8x32xf32> to vector<8x32xbf16>
    %c0_623 = arith.constant 0 : index
    %c0_624 = arith.constant 0 : index
    %1195 = vector.load %arg11[%c0_623, %c0_624] : memref<32x64xbf16, #tpu.memory_space<vmem>>, vector<32x64xbf16>
    %cst_625 = arith.constant dense<0.000000e+00> : vector<8x64xf32>
    %1196 = tpu.matmul %1194, %1195, %cst_625 {dimension_numbers = #tpu.dot_dimension_numbers<[1], [0], [0], [1], [0, 0, 1, 1], [], []>} : vector<8x32xbf16>, vector<32x64xbf16>, vector<8x64xf32> -> vector<8x64xf32>
    %c0_626 = arith.constant 0 : index
    %c0_627 = arith.constant 0 : index
    %1197 = vector.load %arg12[%c0_626, %c0_627] : memref<1x64xf32, #tpu.memory_space<vmem>>, vector<1x64xf32>
    %1198 = vector.broadcast %1197 : vector<1x64xf32> to vector<8x64xf32>
    %1199 = arith.addf %1196, %1198 : vector<8x64xf32>
    %cst_628 = arith.constant 0.000000e+00 : f32
    %1200 = vector.broadcast %cst_628 : f32 to vector<8x64xf32>
    %1201 = arith.maximumf %1199, %1200 : vector<8x64xf32>
    %1202 = arith.truncf %1201 : vector<8x64xf32> to vector<8x64xbf16>
    %c0_629 = arith.constant 0 : index
    %c0_630 = arith.constant 0 : index
    %1203 = vector.load %arg13[%c0_629, %c0_630] : memref<64x32xbf16, #tpu.memory_space<vmem>>, vector<64x32xbf16>
    %cst_631 = arith.constant dense<0.000000e+00> : vector<8x32xf32>
    %1204 = tpu.matmul %1202, %1203, %cst_631 {dimension_numbers = #tpu.dot_dimension_numbers<[1], [0], [0], [1], [0, 0, 1, 1], [], []>} : vector<8x64xbf16>, vector<64x32xbf16>, vector<8x32xf32> -> vector<8x32xf32>
    %c0_632 = arith.constant 0 : index
    %c0_633 = arith.constant 0 : index
    %1205 = vector.load %arg14[%c0_632, %c0_633] : memref<1x32xf32, #tpu.memory_space<vmem>>, vector<1x32xf32>
    %1206 = vector.broadcast %1205 : vector<1x32xf32> to vector<8x32xf32>
    %1207 = arith.addf %1204, %1206 : vector<8x32xf32>
    %1208 = vector.shape_cast %1207 : vector<8x32xf32> to vector<1x8x32xf32>
    %1209 = arith.addf %1192, %1208 : vector<1x8x32xf32>
    %c0_634 = arith.constant 0 : index
    %c0_635 = arith.constant 0 : index
    %1210 = vector.load %arg15[%c0_634, %c0_635] : memref<1x32xf32, #tpu.memory_space<vmem>>, vector<1x32xf32>
    %c0_636 = arith.constant 0 : index
    %c0_637 = arith.constant 0 : index
    %1211 = vector.load %arg16[%c0_636, %c0_637] : memref<1x32xf32, #tpu.memory_space<vmem>>, vector<1x32xf32>
    %cst_638 = arith.constant dense<0.000000e+00> : vector<1x32xf32>
    %1212 = vector.multi_reduction <add>, %1209, %cst_638 [1] : vector<1x8x32xf32> to vector<1x32xf32>
    %1213 = vector.shape_cast %1212 : vector<1x32xf32> to vector<1x1x32xf32>
    %cst_639 = arith.constant 8.000000e+00 : f32
    %1214 = vector.broadcast %cst_639 : f32 to vector<1x1x32xf32>
    %1215 = arith.divf %1213, %1214 : vector<1x1x32xf32>
    %1216 = vector.broadcast %1215 : vector<1x1x32xf32> to vector<1x8x32xf32>
    %1217 = arith.subf %1209, %1216 : vector<1x8x32xf32>
    %1218 = arith.mulf %1217, %1217 : vector<1x8x32xf32>
    %cst_640 = arith.constant dense<0.000000e+00> : vector<1x32xf32>
    %1219 = vector.multi_reduction <add>, %1218, %cst_640 [1] : vector<1x8x32xf32> to vector<1x32xf32>
    %1220 = vector.shape_cast %1219 : vector<1x32xf32> to vector<1x1x32xf32>
    %cst_641 = arith.constant 8.000000e+00 : f32
    %1221 = vector.broadcast %cst_641 : f32 to vector<1x1x32xf32>
    %1222 = arith.divf %1220, %1221 : vector<1x1x32xf32>
    %cst_642 = arith.constant 9.99999974E-6 : f32
    %1223 = vector.broadcast %cst_642 : f32 to vector<1x1x32xf32>
    %1224 = arith.addf %1222, %1223 : vector<1x1x32xf32>
    %1225 = math.rsqrt %1224 : vector<1x1x32xf32>
    %1226 = vector.broadcast %1225 : vector<1x1x32xf32> to vector<1x8x32xf32>
    %1227 = arith.mulf %1217, %1226 : vector<1x8x32xf32>
    %1228 = vector.shape_cast %1210 : vector<1x32xf32> to vector<1x1x32xf32>
    %1229 = vector.broadcast %1228 : vector<1x1x32xf32> to vector<1x8x32xf32>
    %1230 = arith.mulf %1227, %1229 : vector<1x8x32xf32>
    %1231 = vector.shape_cast %1211 : vector<1x32xf32> to vector<1x1x32xf32>
    %1232 = vector.broadcast %1231 : vector<1x1x32xf32> to vector<1x8x32xf32>
    %1233 = arith.addf %1230, %1232 : vector<1x8x32xf32>
    %c0_643 = arith.constant 0 : index
    %c0_644 = arith.constant 0 : index
    %c0_645 = arith.constant 0 : index
    %1234 = vector.load %arg22[%c0_643, %c0_644, %c0_645] : memref<1x8x32xf32, #tpu.memory_space<vmem>>, vector<1x8x32xf32>
    tpu.vector_store %arg22[%c0_643, %c0_644, %c0_645], %1233 {strides = array<i32>} : memref<1x8x32xf32, #tpu.memory_space<vmem>>, vector<1x8x32xf32>,
    return
  }
  func.func @transform_0(%arg0: i32) -> (i32, i32, i32) {
    %c0_i32 = arith.constant 0 : i32
    %c0_i32_0 = arith.constant 0 : i32
    %c0_i32_1 = arith.constant 0 : i32
    return %arg0, %c0_i32, %c0_i32_0 : i32, i32, i32
  }
  func.func @transform_1(%arg0: i32) -> (i32, i32, i32) {
    %c0_i32 = arith.constant 0 : i32
    %c0_i32_0 = arith.constant 0 : i32
    %c0_i32_1 = arith.constant 0 : i32
    return %arg0, %c0_i32, %c0_i32_0 : i32, i32, i32
  }
  func.func @transform_2(%arg0: i32) -> (i32, i32, i32) {
    %c0_i32 = arith.constant 0 : i32
    %c0_i32_0 = arith.constant 0 : i32
    %c0_i32_1 = arith.constant 0 : i32
    return %arg0, %c0_i32, %c0_i32_0 : i32, i32, i32
  }
  func.func @transform_3(%arg0: i32) -> (i32, i32) {
    %c0_i32 = arith.constant 0 : i32
    %c0_i32_0 = arith.constant 0 : i32
    %c0_i32_1 = arith.constant 0 : i32
    return %c0_i32, %c0_i32_0 : i32, i32
  }
  func.func @transform_4(%arg0: i32) -> (i32, i32) {
    %c0_i32 = arith.constant 0 : i32
    %c0_i32_0 = arith.constant 0 : i32
    %c0_i32_1 = arith.constant 0 : i32
    return %c0_i32, %c0_i32_0 : i32, i32
  }
  func.func @transform_5(%arg0: i32) -> (i32, i32) {
    %c0_i32 = arith.constant 0 : i32
    %c0_i32_0 = arith.constant 0 : i32
    %c0_i32_1 = arith.constant 0 : i32
    return %c0_i32, %c0_i32_0 : i32, i32
  }
  func.func @transform_6(%arg0: i32) -> (i32, i32) {
    %c0_i32 = arith.constant 0 : i32
    %c0_i32_0 = arith.constant 0 : i32
    %c0_i32_1 = arith.constant 0 : i32
    return %c0_i32, %c0_i32_0 : i32, i32
  }
  func.func @transform_7(%arg0: i32) -> (i32, i32) {
    %c0_i32 = arith.constant 0 : i32
    %c0_i32_0 = arith.constant 0 : i32
    %c0_i32_1 = arith.constant 0 : i32
    return %c0_i32, %c0_i32_0 : i32, i32
  }
  func.func @transform_8(%arg0: i32) -> (i32, i32) {
    %c0_i32 = arith.constant 0 : i32
    %c0_i32_0 = arith.constant 0 : i32
    %c0_i32_1 = arith.constant 0 : i32
    return %c0_i32, %c0_i32_0 : i32, i32
  }
  func.func @transform_9(%arg0: i32) -> (i32, i32) {
    %c0_i32 = arith.constant 0 : i32
    %c0_i32_0 = arith.constant 0 : i32
    %c0_i32_1 = arith.constant 0 : i32
    return %c0_i32, %c0_i32_0 : i32, i32
  }
  func.func @transform_10(%arg0: i32) -> (i32, i32) {
    %c0_i32 = arith.constant 0 : i32
    %c0_i32_0 = arith.constant 0 : i32
    %c0_i32_1 = arith.constant 0 : i32
    return %c0_i32, %c0_i32_0 : i32, i32
  }
  func.func @transform_11(%arg0: i32) -> (i32, i32) {
    %c0_i32 = arith.constant 0 : i32
    %c0_i32_0 = arith.constant 0 : i32
    %c0_i32_1 = arith.constant 0 : i32
    return %c0_i32, %c0_i32_0 : i32, i32
  }
  func.func @transform_12(%arg0: i32) -> (i32, i32) {
    %c0_i32 = arith.constant 0 : i32
    %c0_i32_0 = arith.constant 0 : i32
    %c0_i32_1 = arith.constant 0 : i32
    return %c0_i32, %c0_i32_0 : i32, i32
  }
  func.func @transform_13(%arg0: i32) -> (i32, i32) {
    %c0_i32 = arith.constant 0 : i32
    %c0_i32_0 = arith.constant 0 : i32
    %c0_i32_1 = arith.constant 0 : i32
    return %c0_i32, %c0_i32_0 : i32, i32
  }
  func.func @transform_14(%arg0: i32) -> (i32, i32) {
    %c0_i32 = arith.constant 0 : i32
    %c0_i32_0 = arith.constant 0 : i32
    %c0_i32_1 = arith.constant 0 : i32
    return %c0_i32, %c0_i32_0 : i32, i32
  }
  func.func @transform_15(%arg0: i32) -> (i32, i32) {
    %c0_i32 = arith.constant 0 : i32
    %c0_i32_0 = arith.constant 0 : i32
    %c0_i32_1 = arith.constant 0 : i32
    return %c0_i32, %c0_i32_0 : i32, i32
  }
  func.func @transform_16(%arg0: i32) -> (i32, i32) {
    %c0_i32 = arith.constant 0 : i32
    %c0_i32_0 = arith.constant 0 : i32
    %c0_i32_1 = arith.constant 0 : i32
    return %c0_i32, %c0_i32_0 : i32, i32
  }
  func.func @transform_17(%arg0: i32) -> (i32, i32) {
    %c0_i32 = arith.constant 0 : i32
    %c0_i32_0 = arith.constant 0 : i32
    %c0_i32_1 = arith.constant 0 : i32
    return %c0_i32, %c0_i32_0 : i32, i32
  }
  func.func @transform_18(%arg0: i32) -> (i32, i32) {
    %c0_i32 = arith.constant 0 : i32
    %c0_i32_0 = arith.constant 0 : i32
    %c0_i32_1 = arith.constant 0 : i32
    return %c0_i32, %c0_i32_0 : i32, i32
  }
  func.func @transform_19(%arg0: i32) -> (i32, i32) {
    %c0_i32 = arith.constant 0 : i32
    %c0_i32_0 = arith.constant 0 : i32
    %c0_i32_1 = arith.constant 0 : i32
    return %c0_i32, %c0_i32_0 : i32, i32
  }
  func.func @transform_20(%arg0: i32) -> i32 {
    %c0_i32 = arith.constant 0 : i32
    %c0_i32_0 = arith.constant 0 : i32
    return %c0_i32 : i32
  }
  func.func @transform_21(%arg0: i32) -> (i32, i32, i32) {
    %c0_i32 = arith.constant 0 : i32
    %c0_i32_0 = arith.constant 0 : i32
    %c0_i32_1 = arith.constant 0 : i32
    return %arg0, %c0_i32, %c0_i32_0 : i32, i32, i32
  }
}

</mosaic_0001>

<llo_original>
// kernel: tpu_custom_call.1
$region0: #{tpu_custom_call.1}
  #allocation0 [shape = 'u32[]', space=smem, size = 0x4, offset = 0x4, fixed_abs, tag = 'smem constant byte address 0x4 - core index']
  #allocation1 [shape = 'u32[144,128]{1,0:T(1,128)}', space=vmem, size = 0x12000, scoped, tag = 'internal scratch']
  %s0 = inlined_call_operand.vmem [shape: f32[2,8,32], index: 0, kind: input, shape index: {}]
  %s1 = inlined_call_operand.vmem [shape: f32[2,16,32], index: 1, kind: input, shape index: {}]
  %s2 = inlined_call_operand.hbm [shape: f32[2,8,16], index: 2, kind: input, shape index: {}]
  %s3 = inlined_call_operand.hbm [shape: bf16[32,32], index: 3, kind: input, shape index: {}]
  %s4 = inlined_call_operand.hbm [shape: bf16[32,32], index: 4, kind: input, shape index: {}]
  %s5 = inlined_call_operand.hbm [shape: bf16[32,32], index: 5, kind: input, shape index: {}]
  %s6 = inlined_call_operand.hbm [shape: bf16[32,32], index: 6, kind: input, shape index: {}]
  %s7 = inlined_call_operand.vmem [shape: f32[1,32], index: 7, kind: input, shape index: {}]
  %s8 = inlined_call_operand.hbm [shape: f32[1,32], index: 8, kind: input, shape index: {}]
  %s9 = inlined_call_operand.hbm [shape: f32[1,32], index: 9, kind: input, shape index: {}]
  %s10 = inlined_call_operand.vmem [shape: bf16[32,64], index: 10, kind: input, shape index: {}]
  %s11 = inlined_call_operand.hbm [shape: f32[1,64], index: 11, kind: input, shape index: {}]
  %s12 = inlined_call_operand.vmem [shape: bf16[64,32], index: 12, kind: input, shape index: {}]
  %s13 = inlined_call_operand.hbm [shape: f32[1,32], index: 13, kind: input, shape index: {}]
  %s14 = inlined_call_operand.vmem [shape: f32[1,32], index: 14, kind: input, shape index: {}]
  %s15 = inlined_call_operand.vmem [shape: f32[1,32], index: 15, kind: input, shape index: {}]
  %s16 = inlined_call_operand.vmem [shape: f32[4,16], index: 16, kind: input, shape index: {}]
  %s17 = inlined_call_operand.vmem [shape: f32[4,16], index: 17, kind: input, shape index: {}]
  %s18 = inlined_call_operand.vmem [shape: f32[4,16], index: 18, kind: input, shape index: {}]
  %s19 = inlined_call_operand.vmem [shape: f32[4,16], index: 19, kind: input, shape index: {}]
  %s20 = inlined_call_operand.vmem [shape: f32[4], index: 20, kind: input, shape index: {}]
  %s21 = inlined_call_operand.hbm [shape: f32[2,8,32], index: 21, kind: output, shape index: {}]
  %s22 = sld [smem:[#allocation0]]
  $region173: #{tpu_custom_call.1} parent=0
    _
  %s24 = ssub.s32 1, %s22
  %s25 = scalar_select 0, %s24, %s22
  $region1: #{tpu_custom_call.1} parent=0
    #allocation2 [shape = 'u8[8192]{0}', space=vmem, size = 0x2000, scoped, tag = 'input window, operand 2']
    #allocation3 [shape = 's32[2]{0}', space=sflag, size = 0x8, scoped, tag = 'scoped memory for tpu_custom_call.1']
    #allocation4 [shape = 's32[2]{0}', space=sflag, size = 0x8, scoped, tag = 'scoped memory for tpu_custom_call.1']
    #allocation5 [shape = 's32[2]{0}', space=sflag, size = 0x8, scoped, tag = 'scoped memory for tpu_custom_call.1']
    #allocation6 [shape = 'u8[8192]{0}', space=vmem, size = 0x2000, scoped, tag = 'input window, operand 3, single buffered']
    #allocation7 [shape = 's32[1]{0}', space=sflag, size = 0x4, scoped, tag = 'scoped memory for tpu_custom_call.1']
    #allocation8 [shape = 'u8[8192]{0}', space=vmem, size = 0x2000, scoped, tag = 'input window, operand 4, single buffered']
    #allocation9 [shape = 'u8[8192]{0}', space=vmem, size = 0x2000, scoped, tag = 'input window, operand 5, single buffered']
    #allocation10 [shape = 's32[1]{0}', space=sflag, size = 0x4, scoped, tag = 'scoped memory for tpu_custom_call.1']
    #allocation11 [shape = 'u8[8192]{0}', space=vmem, size = 0x2000, scoped, tag = 'input window, operand 6, single buffered']
    #allocation12 [shape = 'u8[512]{0}', space=vmem, size = 0x400, scoped, tag = 'input window, operand 8, single buffered']
    #allocation13 [shape = 's32[1]{0}', space=sflag, size = 0x4, scoped, tag = 'scoped memory for tpu_custom_call.1']
    #allocation14 [shape = 'u8[512]{0}', space=vmem, size = 0x400, scoped, tag = 'input window, operand 9, single buffered']
    #allocation15 [shape = 'u8[512]{0}', space=vmem, size = 0x400, scoped, tag = 'input window, operand 11, single buffered']
    #allocation16 [shape = 's32[1]{0}', space=sflag, size = 0x4, scoped, tag = 'scoped memory for tpu_custom_call.1']
    #allocation17 [shape = 'u8[512]{0}', space=vmem, size = 0x400, scoped, tag = 'input window, operand 13, single buffered']
    #allocation18 [shape = 'u8[2048]{0}', space=smem, size = 0x800, scoped, tag = 'input window, operand 16, single buffered']
    #allocation19 [shape = 'u8[2048]{0}', space=smem, size = 0x800, scoped, tag = 'input window, operand 17, single buffered']
    #allocation20 [shape = 's32[1]{0}', space=sflag, size = 0x4, scoped, tag = 'scoped memory for tpu_custom_call.1']
    #allocation21 [shape = 'u8[2048]{0}', space=smem, size = 0x800, scoped, tag = 'input window, operand 18, single buffered']
    #allocation22 [shape = 'u8[2048]{0}', space=smem, size = 0x800, scoped, tag = 'input window, operand 19, single buffered']
    #allocation23 [shape = 's32[1]{0}', space=sflag, size = 0x4, scoped, tag = 'scoped memory for tpu_custom_call.1']
    #allocation24 [shape = 'u8[512]{0}', space=smem, size = 0x200, scoped, tag = 'input window, operand 20, single buffered']
    #allocation25 [shape = 'u8[8192]{0}', space=vmem, size = 0x2000, scoped, tag = 'output window, operand 0']
    %26 = vsyncpa [#allocation3], 0
    %s27 = scalar_lea.sflag [#allocation3], 1
    %28 = vsyncpa %s27, 0
    %29 = vsyncpa [#allocation7], 0
    %30 = vsyncpa [#allocation10], 0
    %31 = vsyncpa [#allocation13], 0
    %32 = vsyncpa [#allocation16], 0
    %33 = vsyncpa [#allocation5], 0
    %34 = vsyncpa [#allocation20], 0
    %35 = vsyncpa [#allocation23], 0
    %36 = vsyncpa [#allocation4], 0
    %s37 = scalar_lea.sflag [#allocation4], 1
    %38 = vsyncpa %s37, 0
    loop: start=0, step=1, limit=4
    $region2: #{tpu_custom_call.1} parent=1 // loop_pre_header
      _
    $region3: #{tpu_custom_call.1} parent=1 // loop_header
      %s40 = sphi 0, %s44
      %p41 = scmp.ge.s32.totalorder %s40, 4
      %s50 = sphi 0, %s52
      %s53 = sphi 0, %s50
      %s54 = sphi 0, %s53
      %s70 = sphi 0, %s54
      %s76 = sphi 0, %s78
      %s79 = sphi 0, %s76
      %s80 = sphi 0, %s79
      %s96 = sphi 0, %s80
      %s102 = sphi 0, %s104
      %s105 = sphi 0, %s102
      %s106 = sphi 0, %s105
      %s122 = sphi 0, %s106
      %s126 = sphi 0, %s126
      %s128 = sphi 0, %s126
      %s129 = sphi 0, %s128
      %s143 = sphi 0, %s129
      %s147 = sphi 0, %s147
      %s149 = sphi 0, %s147
      %s150 = sphi 0, %s149
      %s164 = sphi 0, %s150
      %s168 = sphi 0, %s168
      %s170 = sphi 0, %s168
      %s171 = sphi 0, %s170
      %s185 = sphi 0, %s171
      %s189 = sphi 0, %s189
      %s191 = sphi 0, %s189
      %s192 = sphi 0, %s191
      %s206 = sphi 0, %s192
      %s210 = sphi 0, %s210
      %s212 = sphi 0, %s210
      %s213 = sphi 0, %s212
      %s227 = sphi 0, %s213
      %s231 = sphi 0, %s231
      %s233 = sphi 0, %s231
      %s234 = sphi 0, %s233
      %s248 = sphi 0, %s234
      %s252 = sphi 0, %s252
      %s254 = sphi 0, %s252
      %s255 = sphi 0, %s254
      %s269 = sphi 0, %s255
      %s273 = sphi 0, %s273
      %s275 = sphi 0, %s273
      %s276 = sphi 0, %s275
      %s290 = sphi 0, %s276
      %s294 = sphi 0, %s294
      %s296 = sphi 0, %s294
      %s297 = sphi 0, %s296
      %s311 = sphi 0, %s297
      %s315 = sphi 0, %s315
      %s317 = sphi 0, %s315
      %s318 = sphi 0, %s317
      %s332 = sphi 0, %s318
      %s336 = sphi 0, %s336
      %s338 = sphi 0, %s336
      %s339 = sphi 0, %s338
      %s353 = sphi 0, %s339
      %s357 = sphi 0, %s357
      %s359 = sphi 0, %s357
      %s360 = sphi 0, %s359
      %s374 = sphi 0, %s360
      %s378 = sphi 0, %s378
      %s380 = sphi 0, %s378
      %s381 = sphi 0, %s380
      %s395 = sphi 0, %s381
      %s399 = sphi 0, %s399
      %s401 = sphi 0, %s399
      %s402 = sphi 0, %s401
      %s416 = sphi 0, %s402
      %s420 = sphi 0, %s420
      %s422 = sphi 0, %s420
      %s423 = sphi 0, %s422
      %s437 = sphi 0, %s423
      %s441 = sphi 0, %s441
      %s443 = sphi 0, %s441
      %s444 = sphi 0, %s443
      %s458 = sphi 0, %s444
      %s462 = sphi 0, %s462
      %s464 = sphi 0, %s462
      %s465 = sphi 0, %s464
      %s479 = sphi 0, %s465
      %s483 = sphi 0, %s483
      %s485 = sphi 0, %s483
      %s486 = sphi 0, %s485
      %s500 = sphi 0, %s486
      %s506 = sphi 0, %s508
      %s509 = sphi 0, %s506
      %s510 = sphi 0, %s509
      %s526 = sphi 0, %s510
    $region4: #{tpu_custom_call.1} parent=1 // loop_header_branch
      %43 = sbr.rel (%p41) target = $region8
    $region5: #{tpu_custom_call.1} parent=1 // loop_body
      %s45 = ssub.s32 %s40, 1
      %s46 = ssub.s32 %s40, 2
      %s47 = sadd.s32 %s40, 1
      %s48 = ssub.s32 %s40, %s47
      %p49 = scmp.eq.s32.totalorder %s48, 0
      %s51 = sadd.s32 %s50, 1
      %s52 = scalar_select %p49, %s50, %s51
      %p55 = pneg %p49
      %p56 = scmp.eq.s32.totalorder %s40, 1
      %p57 = por %p55, %p56
      %p58 = scmp.ne.s32.totalorder %s50, %s53
      %p59 = scmp.eq.s32.totalorder %s40, 0
      %p60 = por %p58, %p59
      %p61 = scmp.ne.s32.totalorder %s50, %s53
      %p62 = scmp.eq.s32.totalorder %s45, 1
      %p63 = por %p61, %p62
      %p64 = scmp.ne.s32.totalorder %s53, %s54
      %p65 = scmp.eq.s32.totalorder %s45, 0
      %p66 = por %p64, %p65
      %p67 = scmp.ne.s32.totalorder %s53, %s54
      %p68 = scmp.eq.s32.totalorder %s46, 1
      %p69 = por %p67, %p68
      %p71 = scmp.ne.s32.totalorder %s54, %s70
      %p72 = scmp.eq.s32.totalorder %s46, 0
      %p73 = por %p71, %p72
      %s74 = ssub.s32 %s40, %s47
      %p75 = scmp.eq.s32.totalorder %s74, 0
      %s77 = sadd.s32 %s76, 1
      %s78 = scalar_select %p75, %s76, %s77
      %p81 = pneg %p75
      %p82 = scmp.eq.s32.totalorder %s40, 1
      %p83 = por %p81, %p82
      %p84 = scmp.ne.s32.totalorder %s76, %s79
      %p85 = scmp.eq.s32.totalorder %s40, 0
      %p86 = por %p84, %p85
      %p87 = scmp.ne.s32.totalorder %s76, %s79
      %p88 = scmp.eq.s32.totalorder %s45, 1
      %p89 = por %p87, %p88
      %p90 = scmp.ne.s32.totalorder %s79, %s80
      %p91 = scmp.eq.s32.totalorder %s45, 0
      %p92 = por %p90, %p91
      %p93 = scmp.ne.s32.totalorder %s79, %s80
      %p94 = scmp.eq.s32.totalorder %s46, 1
      %p95 = por %p93, %p94
      %p97 = scmp.ne.s32.totalorder %s80, %s96
      %p98 = scmp.eq.s32.totalorder %s46, 0
      %p99 = por %p97, %p98
      %s100 = ssub.s32 %s40, %s47
      %p101 = scmp.eq.s32.totalorder %s100, 0
      %s103 = sadd.s32 %s102, 1
      %s104 = scalar_select %p101, %s102, %s103
      %p107 = pneg %p101
      %p108 = scmp.eq.s32.totalorder %s40, 1
      %p109 = por %p107, %p108
      %p110 = scmp.ne.s32.totalorder %s102, %s105
      %p111 = scmp.eq.s32.totalorder %s40, 0
      %p112 = por %p110, %p111
      %p113 = scmp.ne.s32.totalorder %s102, %s105
      %p114 = scmp.eq.s32.totalorder %s45, 1
      %p115 = por %p113, %p114
      %p116 = scmp.ne.s32.totalorder %s105, %s106
      %p117 = scmp.eq.s32.totalorder %s45, 0
      %p118 = por %p116, %p117
      %p119 = scmp.ne.s32.totalorder %s105, %s106
      %p120 = scmp.eq.s32.totalorder %s46, 1
      %p121 = por %p119, %p120
      %p123 = scmp.ne.s32.totalorder %s106, %s122
      %p124 = scmp.eq.s32.totalorder %s46, 0
      %p125 = por %p123, %p124
      %s127 = sadd.s32 %s126, 1
      %p130 = scmp.eq.s32.totalorder %s40, 1
      %p131 = scmp.ne.s32.totalorder %s126, %s128
      %p132 = scmp.eq.s32.totalorder %s40, 0
      %p133 = por %p131, %p132
      %p134 = scmp.ne.s32.totalorder %s126, %s128
      %p135 = scmp.eq.s32.totalorder %s45, 1
      %p136 = por %p134, %p135
      %p137 = scmp.ne.s32.totalorder %s128, %s129
      %p138 = scmp.eq.s32.totalorder %s45, 0
      %p139 = por %p137, %p138
      %p140 = scmp.ne.s32.totalorder %s128, %s129
      %p141 = scmp.eq.s32.totalorder %s46, 1
      %p142 = por %p140, %p141
      %p144 = scmp.ne.s32.totalorder %s129, %s143
      %p145 = scmp.eq.s32.totalorder %s46, 0
      %p146 = por %p144, %p145
      %s148 = sadd.s32 %s147, 1
      %p151 = scmp.eq.s32.totalorder %s40, 1
      %p152 = scmp.ne.s32.totalorder %s147, %s149
      %p153 = scmp.eq.s32.totalorder %s40, 0
      %p154 = por %p152, %p153
      %p155 = scmp.ne.s32.totalorder %s147, %s149
      %p156 = scmp.eq.s32.totalorder %s45, 1
      %p157 = por %p155, %p156
      %p158 = scmp.ne.s32.totalorder %s149, %s150
      %p159 = scmp.eq.s32.totalorder %s45, 0
      %p160 = por %p158, %p159
      %p161 = scmp.ne.s32.totalorder %s149, %s150
      %p162 = scmp.eq.s32.totalorder %s46, 1
      %p163 = por %p161, %p162
      %p165 = scmp.ne.s32.totalorder %s150, %s164
      %p166 = scmp.eq.s32.totalorder %s46, 0
      %p167 = por %p165, %p166
      %s169 = sadd.s32 %s168, 1
      %p172 = scmp.eq.s32.totalorder %s40, 1
      %p173 = scmp.ne.s32.totalorder %s168, %s170
      %p174 = scmp.eq.s32.totalorder %s40, 0
      %p175 = por %p173, %p174
      %p176 = scmp.ne.s32.totalorder %s168, %s170
      %p177 = scmp.eq.s32.totalorder %s45, 1
      %p178 = por %p176, %p177
      %p179 = scmp.ne.s32.totalorder %s170, %s171
      %p180 = scmp.eq.s32.totalorder %s45, 0
      %p181 = por %p179, %p180
      %p182 = scmp.ne.s32.totalorder %s170, %s171
      %p183 = scmp.eq.s32.totalorder %s46, 1
      %p184 = por %p182, %p183
      %p186 = scmp.ne.s32.totalorder %s171, %s185
      %p187 = scmp.eq.s32.totalorder %s46, 0
      %p188 = por %p186, %p187
      %s190 = sadd.s32 %s189, 1
      %p193 = scmp.eq.s32.totalorder %s40, 1
      %p194 = scmp.ne.s32.totalorder %s189, %s191
      %p195 = scmp.eq.s32.totalorder %s40, 0
      %p196 = por %p194, %p195
      %p197 = scmp.ne.s32.totalorder %s189, %s191
      %p198 = scmp.eq.s32.totalorder %s45, 1
      %p199 = por %p197, %p198
      %p200 = scmp.ne.s32.totalorder %s191, %s192
      %p201 = scmp.eq.s32.totalorder %s45, 0
      %p202 = por %p200, %p201
      %p203 = scmp.ne.s32.totalorder %s191, %s192
      %p204 = scmp.eq.s32.totalorder %s46, 1
      %p205 = por %p203, %p204
      %p207 = scmp.ne.s32.totalorder %s192, %s206
      %p208 = scmp.eq.s32.totalorder %s46, 0
      %p209 = por %p207, %p208
      %s211 = sadd.s32 %s210, 1
      %p214 = scmp.eq.s32.totalorder %s40, 1
      %p215 = scmp.ne.s32.totalorder %s210, %s212
      %p216 = scmp.eq.s32.totalorder %s40, 0
      %p217 = por %p215, %p216
      %p218 = scmp.ne.s32.totalorder %s210, %s212
      %p219 = scmp.eq.s32.totalorder %s45, 1
      %p220 = por %p218, %p219
      %p221 = scmp.ne.s32.totalorder %s212, %s213
      %p222 = scmp.eq.s32.totalorder %s45, 0
      %p223 = por %p221, %p222
      %p224 = scmp.ne.s32.totalorder %s212, %s213
      %p225 = scmp.eq.s32.totalorder %s46, 1
      %p226 = por %p224, %p225
      %p228 = scmp.ne.s32.totalorder %s213, %s227
      %p229 = scmp.eq.s32.totalorder %s46, 0
      %p230 = por %p228, %p229
      %s232 = sadd.s32 %s231, 1
      %p235 = scmp.eq.s32.totalorder %s40, 1
      %p236 = scmp.ne.s32.totalorder %s231, %s233
      %p237 = scmp.eq.s32.totalorder %s40, 0
      %p238 = por %p236, %p237
      %p239 = scmp.ne.s32.totalorder %s231, %s233
      %p240 = scmp.eq.s32.totalorder %s45, 1
      %p241 = por %p239, %p240
      %p242 = scmp.ne.s32.totalorder %s233, %s234
      %p243 = scmp.eq.s32.totalorder %s45, 0
      %p244 = por %p242, %p243
      %p245 = scmp.ne.s32.totalorder %s233, %s234
      %p246 = scmp.eq.s32.totalorder %s46, 1
      %p247 = por %p245, %p246
      %p249 = scmp.ne.s32.totalorder %s234, %s248
      %p250 = scmp.eq.s32.totalorder %s46, 0
      %p251 = por %p249, %p250
      %s253 = sadd.s32 %s252, 1
      %p256 = scmp.eq.s32.totalorder %s40, 1
      %p257 = scmp.ne.s32.totalorder %s252, %s254
      %p258 = scmp.eq.s32.totalorder %s40, 0
      %p259 = por %p257, %p258
      %p260 = scmp.ne.s32.totalorder %s252, %s254
      %p261 = scmp.eq.s32.totalorder %s45, 1
      %p262 = por %p260, %p261
      %p263 = scmp.ne.s32.totalorder %s254, %s255
      %p264 = scmp.eq.s32.totalorder %s45, 0
      %p265 = por %p263, %p264
      %p266 = scmp.ne.s32.totalorder %s254, %s255
      %p267 = scmp.eq.s32.totalorder %s46, 1
      %p268 = por %p266, %p267
      %p270 = scmp.ne.s32.totalorder %s255, %s269
      %p271 = scmp.eq.s32.totalorder %s46, 0
      %p272 = por %p270, %p271
      %s274 = sadd.s32 %s273, 1
      %p277 = scmp.eq.s32.totalorder %s40, 1
      %p278 = scmp.ne.s32.totalorder %s273, %s275
      %p279 = scmp.eq.s32.totalorder %s40, 0
      %p280 = por %p278, %p279
      %p281 = scmp.ne.s32.totalorder %s273, %s275
      %p282 = scmp.eq.s32.totalorder %s45, 1
      %p283 = por %p281, %p282
      %p284 = scmp.ne.s32.totalorder %s275, %s276
      %p285 = scmp.eq.s32.totalorder %s45, 0
      %p286 = por %p284, %p285
      %p287 = scmp.ne.s32.totalorder %s275, %s276
      %p288 = scmp.eq.s32.totalorder %s46, 1
      %p289 = por %p287, %p288
      %p291 = scmp.ne.s32.totalorder %s276, %s290
      %p292 = scmp.eq.s32.totalorder %s46, 0
      %p293 = por %p291, %p292
      %s295 = sadd.s32 %s294, 1
      %p298 = scmp.eq.s32.totalorder %s40, 1
      %p299 = scmp.ne.s32.totalorder %s294, %s296
      %p300 = scmp.eq.s32.totalorder %s40, 0
      %p301 = por %p299, %p300
      %p302 = scmp.ne.s32.totalorder %s294, %s296
      %p303 = scmp.eq.s32.totalorder %s45, 1
      %p304 = por %p302, %p303
      %p305 = scmp.ne.s32.totalorder %s296, %s297
      %p306 = scmp.eq.s32.totalorder %s45, 0
      %p307 = por %p305, %p306
      %p308 = scmp.ne.s32.totalorder %s296, %s297
      %p309 = scmp.eq.s32.totalorder %s46, 1
      %p310 = por %p308, %p309
      %p312 = scmp.ne.s32.totalorder %s297, %s311
      %p313 = scmp.eq.s32.totalorder %s46, 0
      %p314 = por %p312, %p313
      %s316 = sadd.s32 %s315, 1
      %p319 = scmp.eq.s32.totalorder %s40, 1
      %p320 = scmp.ne.s32.totalorder %s315, %s317
      %p321 = scmp.eq.s32.totalorder %s40, 0
      %p322 = por %p320, %p321
      %p323 = scmp.ne.s32.totalorder %s315, %s317
      %p324 = scmp.eq.s32.totalorder %s45, 1
      %p325 = por %p323, %p324
      %p326 = scmp.ne.s32.totalorder %s317, %s318
      %p327 = scmp.eq.s32.totalorder %s45, 0
      %p328 = por %p326, %p327
      %p329 = scmp.ne.s32.totalorder %s317, %s318
      %p330 = scmp.eq.s32.totalorder %s46, 1
      %p331 = por %p329, %p330
      %p333 = scmp.ne.s32.totalorder %s318, %s332
      %p334 = scmp.eq.s32.totalorder %s46, 0
      %p335 = por %p333, %p334
      %s337 = sadd.s32 %s336, 1
      %p340 = scmp.eq.s32.totalorder %s40, 1
      %p341 = scmp.ne.s32.totalorder %s336, %s338
      %p342 = scmp.eq.s32.totalorder %s40, 0
      %p343 = por %p341, %p342
      %p344 = scmp.ne.s32.totalorder %s336, %s338
      %p345 = scmp.eq.s32.totalorder %s45, 1
      %p346 = por %p344, %p345
      %p347 = scmp.ne.s32.totalorder %s338, %s339
      %p348 = scmp.eq.s32.totalorder %s45, 0
      %p349 = por %p347, %p348
      %p350 = scmp.ne.s32.totalorder %s338, %s339
      %p351 = scmp.eq.s32.totalorder %s46, 1
      %p352 = por %p350, %p351
      %p354 = scmp.ne.s32.totalorder %s339, %s353
      %p355 = scmp.eq.s32.totalorder %s46, 0
      %p356 = por %p354, %p355
      %s358 = sadd.s32 %s357, 1
      %p361 = scmp.eq.s32.totalorder %s40, 1
      %p362 = scmp.ne.s32.totalorder %s357, %s359
      %p363 = scmp.eq.s32.totalorder %s40, 0
      %p364 = por %p362, %p363
      %p365 = scmp.ne.s32.totalorder %s357, %s359
      %p366 = scmp.eq.s32.totalorder %s45, 1
      %p367 = por %p365, %p366
      %p368 = scmp.ne.s32.totalorder %s359, %s360
      %p369 = scmp.eq.s32.totalorder %s45, 0
      %p370 = por %p368, %p369
      %p371 = scmp.ne.s32.totalorder %s359, %s360
      %p372 = scmp.eq.s32.totalorder %s46, 1
      %p373 = por %p371, %p372
      %p375 = scmp.ne.s32.totalorder %s360, %s374
      %p376 = scmp.eq.s32.totalorder %s46, 0
      %p377 = por %p375, %p376
      %s379 = sadd.s32 %s378, 1
      %p382 = scmp.eq.s32.totalorder %s40, 1
      %p383 = scmp.ne.s32.totalorder %s378, %s380
      %p384 = scmp.eq.s32.totalorder %s40, 0
      %p385 = por %p383, %p384
      %p386 = scmp.ne.s32.totalorder %s378, %s380
      %p387 = scmp.eq.s32.totalorder %s45, 1
      %p388 = por %p386, %p387
      %p389 = scmp.ne.s32.totalorder %s380, %s381
      %p390 = scmp.eq.s32.totalorder %s45, 0
      %p391 = por %p389, %p390
      %p392 = scmp.ne.s32.totalorder %s380, %s381
      %p393 = scmp.eq.s32.totalorder %s46, 1
      %p394 = por %p392, %p393
      %p396 = scmp.ne.s32.totalorder %s381, %s395
      %p397 = scmp.eq.s32.totalorder %s46, 0
      %p398 = por %p396, %p397
      %s400 = sadd.s32 %s399, 1
      %p403 = scmp.eq.s32.totalorder %s40, 1
      %p404 = scmp.ne.s32.totalorder %s399, %s401
      %p405 = scmp.eq.s32.totalorder %s40, 0
      %p406 = por %p404, %p405
      %p407 = scmp.ne.s32.totalorder %s399, %s401
      %p408 = scmp.eq.s32.totalorder %s45, 1
      %p409 = por %p407, %p408
      %p410 = scmp.ne.s32.totalorder %s401, %s402
      %p411 = scmp.eq.s32.totalorder %s45, 0
      %p412 = por %p410, %p411
      %p413 = scmp.ne.s32.totalorder %s401, %s402
      %p414 = scmp.eq.s32.totalorder %s46, 1
      %p415 = por %p413, %p414
      %p417 = scmp.ne.s32.totalorder %s402, %s416
      %p418 = scmp.eq.s32.totalorder %s46, 0
      %p419 = por %p417, %p418
      %s421 = sadd.s32 %s420, 1
      %p424 = scmp.eq.s32.totalorder %s40, 1
      %p425 = scmp.ne.s32.totalorder %s420, %s422
      %p426 = scmp.eq.s32.totalorder %s40, 0
      %p427 = por %p425, %p426
      %p428 = scmp.ne.s32.totalorder %s420, %s422
      %p429 = scmp.eq.s32.totalorder %s45, 1
      %p430 = por %p428, %p429
      %p431 = scmp.ne.s32.totalorder %s422, %s423
      %p432 = scmp.eq.s32.totalorder %s45, 0
      %p433 = por %p431, %p432
      %p434 = scmp.ne.s32.totalorder %s422, %s423
      %p435 = scmp.eq.s32.totalorder %s46, 1
      %p436 = por %p434, %p435
      %p438 = scmp.ne.s32.totalorder %s423, %s437
      %p439 = scmp.eq.s32.totalorder %s46, 0
      %p440 = por %p438, %p439
      %s442 = sadd.s32 %s441, 1
      %p445 = scmp.eq.s32.totalorder %s40, 1
      %p446 = scmp.ne.s32.totalorder %s441, %s443
      %p447 = scmp.eq.s32.totalorder %s40, 0
      %p448 = por %p446, %p447
      %p449 = scmp.ne.s32.totalorder %s441, %s443
      %p450 = scmp.eq.s32.totalorder %s45, 1
      %p451 = por %p449, %p450
      %p452 = scmp.ne.s32.totalorder %s443, %s444
      %p453 = scmp.eq.s32.totalorder %s45, 0
      %p454 = por %p452, %p453
      %p455 = scmp.ne.s32.totalorder %s443, %s444
      %p456 = scmp.eq.s32.totalorder %s46, 1
      %p457 = por %p455, %p456
      %p459 = scmp.ne.s32.totalorder %s444, %s458
      %p460 = scmp.eq.s32.totalorder %s46, 0
      %p461 = por %p459, %p460
      %s463 = sadd.s32 %s462, 1
      %p466 = scmp.eq.s32.totalorder %s40, 1
      %p467 = scmp.ne.s32.totalorder %s462, %s464
      %p468 = scmp.eq.s32.totalorder %s40, 0
      %p469 = por %p467, %p468
      %p470 = scmp.ne.s32.totalorder %s462, %s464
      %p471 = scmp.eq.s32.totalorder %s45, 1
      %p472 = por %p470, %p471
      %p473 = scmp.ne.s32.totalorder %s464, %s465
      %p474 = scmp.eq.s32.totalorder %s45, 0
      %p475 = por %p473, %p474
      %p476 = scmp.ne.s32.totalorder %s464, %s465
      %p477 = scmp.eq.s32.totalorder %s46, 1
      %p478 = por %p476, %p477
      %p480 = scmp.ne.s32.totalorder %s465, %s479
      %p481 = scmp.eq.s32.totalorder %s46, 0
      %p482 = por %p480, %p481
      %s484 = sadd.s32 %s483, 1
      %p487 = scmp.eq.s32.totalorder %s40, 1
      %p488 = scmp.ne.s32.totalorder %s483, %s485
      %p489 = scmp.eq.s32.totalorder %s40, 0
      %p490 = por %p488, %p489
      %p491 = scmp.ne.s32.totalorder %s483, %s485
      %p492 = scmp.eq.s32.totalorder %s45, 1
      %p493 = por %p491, %p492
      %p494 = scmp.ne.s32.totalorder %s485, %s486
      %p495 = scmp.eq.s32.totalorder %s45, 0
      %p496 = por %p494, %p495
      %p497 = scmp.ne.s32.totalorder %s485, %s486
      %p498 = scmp.eq.s32.totalorder %s46, 1
      %p499 = por %p497, %p498
      %p501 = scmp.ne.s32.totalorder %s486, %s500
      %p502 = scmp.eq.s32.totalorder %s46, 0
      %p503 = por %p501, %p502
      %s504 = ssub.s32 %s40, %s47
      %p505 = scmp.eq.s32.totalorder %s504, 0
      %s507 = sadd.s32 %s506, 1
      %s508 = scalar_select %p505, %s506, %s507
      %p511 = pneg %p505
      %p512 = scmp.eq.s32.totalorder %s40, 1
      %p513 = por %p511, %p512
      %p514 = scmp.ne.s32.totalorder %s506, %s509
      %p515 = scmp.eq.s32.totalorder %s40, 0
      %p516 = por %p514, %p515
      %p517 = scmp.ne.s32.totalorder %s506, %s509
      %p518 = scmp.eq.s32.totalorder %s45, 1
      %p519 = por %p517, %p518
      %p520 = scmp.ne.s32.totalorder %s509, %s510
      %p521 = scmp.eq.s32.totalorder %s45, 0
      %p522 = por %p520, %p521
      %p523 = scmp.ne.s32.totalorder %s509, %s510
      %p524 = scmp.eq.s32.totalorder %s46, 1
      %p525 = por %p523, %p524
      %p527 = scmp.ne.s32.totalorder %s510, %s526
      %p528 = scmp.eq.s32.totalorder %s46, 0
      %p529 = por %p527, %p528
      %p530 = scmp.le.s32.totalorder 1, %s40
      %p531 = scmp.lt.s32.totalorder %s40, 3
      %p532 = pnand %p530, %p531
      %p533 = pneg %p532
      // Predicated region
      $region9: #{tpu_custom_call.1} parent=5 // pred_check
        _
      $region10: #{tpu_custom_call.1} parent=5 // pred_check_branch
        %535 = sbr.rel (%p532) target = $region12
      $region11: #{tpu_custom_call.1} parent=5 // pred_region
        %s536 = ssub.s32 %s40, 1
        // Predicated region
        $region13: #{tpu_custom_call.1} parent=11 // pred_check
          %p537 = pneg %p139
        $region14: #{tpu_custom_call.1} parent=11 // pred_check_branch
          %539 = sbr.rel (%p537) target = $region16
        $region15: #{tpu_custom_call.1} parent=11 // pred_region
          %s541 = ssub.s32 256, 256
          %542 = vsyncadd [#allocation7], %s541
          %s543 = sshll.u32 [#allocation6], 4
          %s544 = int_to_ptr.vmem [resolvable:$true] %s543
          %549 = dma.hbm_to_vmem [thread:$0]  %s3, 256, %s544, [#allocation7], 64, 64, 4
        $region16: #{tpu_custom_call.1} parent=11 // pred_fallthru
          _
        // Predicated region
        $region17: #{tpu_custom_call.1} parent=11 // pred_check
          %p550 = pneg %p160
        $region18: #{tpu_custom_call.1} parent=11 // pred_check_branch
          %552 = sbr.rel (%p550) target = $region20
        $region19: #{tpu_custom_call.1} parent=11 // pred_region
          %s554 = ssub.s32 256, 256
          %555 = vsyncadd [#allocation7], %s554
          %s556 = sshll.u32 [#allocation8], 4
          %s557 = int_to_ptr.vmem [resolvable:$true] %s556
          %562 = dma.hbm_to_vmem [thread:$0]  %s4, 256, %s557, [#allocation7], 64, 64, 4
        $region20: #{tpu_custom_call.1} parent=11 // pred_fallthru
          _
        // Predicated region
        $region21: #{tpu_custom_call.1} parent=11 // pred_check
          %p563 = pneg %p181
        $region22: #{tpu_custom_call.1} parent=11 // pred_check_branch
          %565 = sbr.rel (%p563) target = $region24
        $region23: #{tpu_custom_call.1} parent=11 // pred_region
          %s567 = ssub.s32 256, 256
          %568 = vsyncadd [#allocation10], %s567
          %s569 = sshll.u32 [#allocation9], 4
          %s570 = int_to_ptr.vmem [resolvable:$true] %s569
          %575 = dma.hbm_to_vmem [thread:$0]  %s5, 256, %s570, [#allocation10], 64, 64, 4
        $region24: #{tpu_custom_call.1} parent=11 // pred_fallthru
          _
        // Predicated region
        $region25: #{tpu_custom_call.1} parent=11 // pred_check
          %p576 = pneg %p202
        $region26: #{tpu_custom_call.1} parent=11 // pred_check_branch
          %578 = sbr.rel (%p576) target = $region28
        $region27: #{tpu_custom_call.1} parent=11 // pred_region
          %s580 = ssub.s32 256, 256
          %581 = vsyncadd [#allocation10], %s580
          %s582 = sshll.u32 [#allocation11], 4
          %s583 = int_to_ptr.vmem [resolvable:$true] %s582
          %588 = dma.hbm_to_vmem [thread:$0]  %s6, 256, %s583, [#allocation10], 64, 64, 4
        $region28: #{tpu_custom_call.1} parent=11 // pred_fallthru
          _
        // Predicated region
        $region29: #{tpu_custom_call.1} parent=11 // pred_check
          %p589 = pneg %p223
        $region30: #{tpu_custom_call.1} parent=11 // pred_check_branch
          %591 = sbr.rel (%p589) target = $region32
        $region31: #{tpu_custom_call.1} parent=11 // pred_region
          _
        $region32: #{tpu_custom_call.1} parent=11 // pred_fallthru
          _
        // Predicated region
        $region33: #{tpu_custom_call.1} parent=11 // pred_check
          %p592 = pneg %p244
        $region34: #{tpu_custom_call.1} parent=11 // pred_check_branch
          %594 = sbr.rel (%p592) target = $region36
        $region35: #{tpu_custom_call.1} parent=11 // pred_region
          %s596 = ssub.s32 16, 16
          %597 = vsyncadd [#allocation13], %s596
          %s599 = sshll.u32 [#allocation12], 4
          %s600 = int_to_ptr.vmem [resolvable:$true] %s599
          %602 = dma.hbm_to_vmem [thread:$0]  %s8, 16, %s600, [#allocation13]
        $region36: #{tpu_custom_call.1} parent=11 // pred_fallthru
          _
        // Predicated region
        $region37: #{tpu_custom_call.1} parent=11 // pred_check
          %p603 = pneg %p265
        $region38: #{tpu_custom_call.1} parent=11 // pred_check_branch
          %605 = sbr.rel (%p603) target = $region40
        $region39: #{tpu_custom_call.1} parent=11 // pred_region
          %s607 = ssub.s32 16, 16
          %608 = vsyncadd [#allocation13], %s607
          %s610 = sshll.u32 [#allocation14], 4
          %s611 = int_to_ptr.vmem [resolvable:$true] %s610
          %613 = dma.hbm_to_vmem [thread:$0]  %s9, 16, %s611, [#allocation13]
        $region40: #{tpu_custom_call.1} parent=11 // pred_fallthru
          _
        // Predicated region
        $region41: #{tpu_custom_call.1} parent=11 // pred_check
          %p614 = pneg %p286
        $region42: #{tpu_custom_call.1} parent=11 // pred_check_branch
          %616 = sbr.rel (%p614) target = $region44
        $region43: #{tpu_custom_call.1} parent=11 // pred_region
          _
        $region44: #{tpu_custom_call.1} parent=11 // pred_fallthru
          _
        // Predicated region
        $region45: #{tpu_custom_call.1} parent=11 // pred_check
          %p617 = pneg %p307
        $region46: #{tpu_custom_call.1} parent=11 // pred_check_branch
          %619 = sbr.rel (%p617) target = $region48
        $region47: #{tpu_custom_call.1} parent=11 // pred_region
          %s621 = ssub.s32 16, 16
          %622 = vsyncadd [#allocation16], %s621
          %s624 = sshll.u32 [#allocation15], 4
          %s625 = int_to_ptr.vmem [resolvable:$true] %s624
          %627 = dma.hbm_to_vmem [thread:$0]  %s11, 16, %s625, [#allocation16]
        $region48: #{tpu_custom_call.1} parent=11 // pred_fallthru
          _
        // Predicated region
        $region49: #{tpu_custom_call.1} parent=11 // pred_check
          %p628 = pneg %p328
        $region50: #{tpu_custom_call.1} parent=11 // pred_check_branch
          %630 = sbr.rel (%p628) target = $region52
        $region51: #{tpu_custom_call.1} parent=11 // pred_region
          _
        $region52: #{tpu_custom_call.1} parent=11 // pred_fallthru
          _
        // Predicated region
        $region53: #{tpu_custom_call.1} parent=11 // pred_check
          %p631 = pneg %p349
        $region54: #{tpu_custom_call.1} parent=11 // pred_check_branch
          %633 = sbr.rel (%p631) target = $region56
        $region55: #{tpu_custom_call.1} parent=11 // pred_region
          %s635 = ssub.s32 16, 16
          %636 = vsyncadd [#allocation16], %s635
          %s638 = sshll.u32 [#allocation17], 4
          %s639 = int_to_ptr.vmem [resolvable:$true] %s638
          %641 = dma.hbm_to_vmem [thread:$0]  %s13, 16, %s639, [#allocation16]
        $region56: #{tpu_custom_call.1} parent=11 // pred_fallthru
          _
        // Predicated region
        $region57: #{tpu_custom_call.1} parent=11 // pred_check
          %p642 = pneg %p370
        $region58: #{tpu_custom_call.1} parent=11 // pred_check_branch
          %644 = sbr.rel (%p642) target = $region60
        $region59: #{tpu_custom_call.1} parent=11 // pred_region
          _
        $region60: #{tpu_custom_call.1} parent=11 // pred_fallthru
          _
        // Predicated region
        $region61: #{tpu_custom_call.1} parent=11 // pred_check
          %p645 = pneg %p391
        $region62: #{tpu_custom_call.1} parent=11 // pred_check_branch
          %647 = sbr.rel (%p645) target = $region64
        $region63: #{tpu_custom_call.1} parent=11 // pred_region
          _
        $region64: #{tpu_custom_call.1} parent=11 // pred_fallthru
          _
        // Predicated region
        $region65: #{tpu_custom_call.1} parent=11 // pred_check
          %p648 = pneg %p412
        $region66: #{tpu_custom_call.1} parent=11 // pred_check_branch
          %650 = sbr.rel (%p648) target = $region68
        $region67: #{tpu_custom_call.1} parent=11 // pred_region
          %s652 = ssub.s32 64, 64
          %653 = vsyncadd [#allocation5], %s652
          %s655 = sshll.u32 %s16, 4
          %s656 = int_to_ptr.vmem [resolvable:$true] %s655
          %658 = dma.vmem_to_smem %s656, 64, [#allocation18], [#allocation5]
        $region68: #{tpu_custom_call.1} parent=11 // pred_fallthru
          _
        // Predicated region
        $region69: #{tpu_custom_call.1} parent=11 // pred_check
          %p659 = pneg %p433
        $region70: #{tpu_custom_call.1} parent=11 // pred_check_branch
          %661 = sbr.rel (%p659) target = $region72
        $region71: #{tpu_custom_call.1} parent=11 // pred_region
          %s663 = ssub.s32 64, 64
          %664 = vsyncadd [#allocation20], %s663
          %s666 = sshll.u32 %s17, 4
          %s667 = int_to_ptr.vmem [resolvable:$true] %s666
          %669 = dma.vmem_to_smem %s667, 64, [#allocation19], [#allocation20]
        $region72: #{tpu_custom_call.1} parent=11 // pred_fallthru
          _
        // Predicated region
        $region73: #{tpu_custom_call.1} parent=11 // pred_check
          %p670 = pneg %p454
        $region74: #{tpu_custom_call.1} parent=11 // pred_check_branch
          %672 = sbr.rel (%p670) target = $region76
        $region75: #{tpu_custom_call.1} parent=11 // pred_region
          %s674 = ssub.s32 64, 64
          %675 = vsyncadd [#allocation20], %s674
          %s677 = sshll.u32 %s18, 4
          %s678 = int_to_ptr.vmem [resolvable:$true] %s677
          %680 = dma.vmem_to_smem %s678, 64, [#allocation21], [#allocation20]
        $region76: #{tpu_custom_call.1} parent=11 // pred_fallthru
          _
        // Predicated region
        $region77: #{tpu_custom_call.1} parent=11 // pred_check
          %p681 = pneg %p475
        $region78: #{tpu_custom_call.1} parent=11 // pred_check_branch
          %683 = sbr.rel (%p681) target = $region80
        $region79: #{tpu_custom_call.1} parent=11 // pred_region
          %s685 = ssub.s32 64, 64
          %686 = vsyncadd [#allocation23], %s685
          %s688 = sshll.u32 %s19, 4
          %s689 = int_to_ptr.vmem [resolvable:$true] %s688
          %691 = dma.vmem_to_smem %s689, 64, [#allocation22], [#allocation23]
        $region80: #{tpu_custom_call.1} parent=11 // pred_fallthru
          _
        // Predicated region
        $region81: #{tpu_custom_call.1} parent=11 // pred_check
          %p692 = pneg %p496
        $region82: #{tpu_custom_call.1} parent=11 // pred_check_branch
          %694 = sbr.rel (%p692) target = $region84
        $region83: #{tpu_custom_call.1} parent=11 // pred_region
          %s696 = ssub.s32 16, 16
          %697 = vsyncadd [#allocation23], %s696
          %s699 = sshll.u32 %s20, 4
          %s700 = int_to_ptr.vmem [resolvable:$true] %s699
          %702 = dma.vmem_to_smem %s700, 16, [#allocation24], [#allocation23]
        $region84: #{tpu_custom_call.1} parent=11 // pred_fallthru
          _
      $region12: #{tpu_custom_call.1} parent=5 // pred_fallthru
        _
      %p703 = scmp.lt.s32.totalorder %s40, 2
      // Predicated region
      $region85: #{tpu_custom_call.1} parent=5 // pred_check
        %p704 = pneg %p703
      $region86: #{tpu_custom_call.1} parent=5 // pred_check_branch
        %706 = sbr.rel (%p704) target = $region88
      $region87: #{tpu_custom_call.1} parent=5 // pred_region
        // Predicated region
        $region89: #{tpu_custom_call.1} parent=87 // pred_check
          %p707 = pneg %p60
        $region90: #{tpu_custom_call.1} parent=87 // pred_check_branch
          %709 = sbr.rel (%p707) target = $region92
        $region91: #{tpu_custom_call.1} parent=87 // pred_region
          %p710 = scmp.lt.s32.totalorder %s40, 1
          %s711 = scalar_select %p710, %s40, 1
          %s712 = smul.addr %s711, 8
          %s713 = scalar_lea.vmem %s0, %s712
        $region92: #{tpu_custom_call.1} parent=87 // pred_fallthru
          _
        // Predicated region
        $region93: #{tpu_custom_call.1} parent=87 // pred_check
          %p714 = pneg %p86
        $region94: #{tpu_custom_call.1} parent=87 // pred_check_branch
          %716 = sbr.rel (%p714) target = $region96
        $region95: #{tpu_custom_call.1} parent=87 // pred_region
          %p717 = scmp.lt.s32.totalorder %s40, 1
          %s718 = scalar_select %p717, %s40, 1
          %s719 = smul.addr %s718, 2
          %s720 = smul.addr %s719, 8
          %s721 = scalar_lea.vmem %s1, %s720
        $region96: #{tpu_custom_call.1} parent=87 // pred_fallthru
          _
        // Predicated region
        $region97: #{tpu_custom_call.1} parent=87 // pred_check
          %p722 = pneg %p112
        $region98: #{tpu_custom_call.1} parent=87 // pred_check_branch
          %724 = sbr.rel (%p722) target = $region100
        $region99: #{tpu_custom_call.1} parent=87 // pred_region
          %s725 = sand.u32 %s102, 1
          %s726 = scalar_lea.sflag [#allocation3], %s725
          %s727 = sand.u32 %s102, 1
          %s728 = smul.addr %s727, 8
          %s729 = scalar_lea.vmem [#allocation2], %s728
          %s731 = ssub.s32 128, 128
          %732 = vsyncadd %s726, %s731
          %s733 = smul.addr %s40, 128
          %s734 = scalar_lea.hbm %s2, %s733
          %s736 = sshll.u32 %s729, 4
          %s737 = int_to_ptr.vmem [resolvable:$true] %s736
          %739 = dma.hbm_to_vmem [thread:$0]  %s734, 128, %s737, %s726
        $region100: #{tpu_custom_call.1} parent=87 // pred_fallthru
          _
      $region88: #{tpu_custom_call.1} parent=5 // pred_fallthru
        _
      %p740 = scmp.le.s32.totalorder 1, %s40
      %p741 = scmp.lt.s32.totalorder %s40, 3
      %p742 = pnand %p740, %p741
      %p743 = pneg %p742
      // Predicated region
      $region101: #{tpu_custom_call.1} parent=5 // pred_check
        _
      $region102: #{tpu_custom_call.1} parent=5 // pred_check_branch
        %745 = sbr.rel (%p742) target = $region104
      $region103: #{tpu_custom_call.1} parent=5 // pred_region
        %s746 = ssub.s32 %s40, 1
        %s747 = sand.u32 %s105, 1
        %s748 = scalar_lea.sflag [#allocation3], %s747
        %s749 = sand.u32 %s105, 1
        %s750 = smul.addr %s749, 8
        %s751 = scalar_lea.vmem [#allocation2], %s750
        // Predicated region
        $region105: #{tpu_custom_call.1} parent=103 // pred_check
          %p752 = pneg %p118
        $region106: #{tpu_custom_call.1} parent=103 // pred_check_branch
          %754 = sbr.rel (%p752) target = $region108
        $region107: #{tpu_custom_call.1} parent=103 // pred_region
          %755 = dma.done %s748, 128
        $region108: #{tpu_custom_call.1} parent=103 // pred_fallthru
          _
        // Predicated region
        $region109: #{tpu_custom_call.1} parent=103 // pred_check
          %p756 = pneg %p139
        $region110: #{tpu_custom_call.1} parent=103 // pred_check_branch
          %758 = sbr.rel (%p756) target = $region112
        $region111: #{tpu_custom_call.1} parent=103 // pred_region
          %759 = dma.done [#allocation7], 256
        $region112: #{tpu_custom_call.1} parent=103 // pred_fallthru
          _
        // Predicated region
        $region113: #{tpu_custom_call.1} parent=103 // pred_check
          %p760 = pneg %p160
        $region114: #{tpu_custom_call.1} parent=103 // pred_check_branch
          %762 = sbr.rel (%p760) target = $region116
        $region115: #{tpu_custom_call.1} parent=103 // pred_region
          %763 = dma.done [#allocation7], 256
        $region116: #{tpu_custom_call.1} parent=103 // pred_fallthru
          _
        // Predicated region
        $region117: #{tpu_custom_call.1} parent=103 // pred_check
          %p764 = pneg %p181
        $region118: #{tpu_custom_call.1} parent=103 // pred_check_branch
          %766 = sbr.rel (%p764) target = $region120
        $region119: #{tpu_custom_call.1} parent=103 // pred_region
          %767 = dma.done [#allocation10], 256
        $region120: #{tpu_custom_call.1} parent=103 // pred_fallthru
          _
        // Predicated region
        $region121: #{tpu_custom_call.1} parent=103 // pred_check
          %p768 = pneg %p202
        $region122: #{tpu_custom_call.1} parent=103 // pred_check_branch
          %770 = sbr.rel (%p768) target = $region124
        $region123: #{tpu_custom_call.1} parent=103 // pred_region
          %771 = dma.done [#allocation10], 256
        $region124: #{tpu_custom_call.1} parent=103 // pred_fallthru
          _
        // Predicated region
        $region125: #{tpu_custom_call.1} parent=103 // pred_check
          %p772 = pneg %p244
        $region126: #{tpu_custom_call.1} parent=103 // pred_check_branch
          %774 = sbr.rel (%p772) target = $region128
        $region127: #{tpu_custom_call.1} parent=103 // pred_region
          %775 = dma.done [#allocation13], 16
        $region128: #{tpu_custom_call.1} parent=103 // pred_fallthru
          _
        // Predicated region
        $region129: #{tpu_custom_call.1} parent=103 // pred_check
          %p776 = pneg %p265
        $region130: #{tpu_custom_call.1} parent=103 // pred_check_branch
          %778 = sbr.rel (%p776) target = $region132
        $region131: #{tpu_custom_call.1} parent=103 // pred_region
          %779 = dma.done [#allocation13], 16
        $region132: #{tpu_custom_call.1} parent=103 // pred_fallthru
          _
        // Predicated region
        $region133: #{tpu_custom_call.1} parent=103 // pred_check
          %p780 = pneg %p307
        $region134: #{tpu_custom_call.1} parent=103 // pred_check_branch
          %782 = sbr.rel (%p780) target = $region136
        $region135: #{tpu_custom_call.1} parent=103 // pred_region
          %783 = dma.done [#allocation16], 16
        $region136: #{tpu_custom_call.1} parent=103 // pred_fallthru
          _
        // Predicated region
        $region137: #{tpu_custom_call.1} parent=103 // pred_check
          %p784 = pneg %p349
        $region138: #{tpu_custom_call.1} parent=103 // pred_check_branch
          %786 = sbr.rel (%p784) target = $region140
        $region139: #{tpu_custom_call.1} parent=103 // pred_region
          %787 = dma.done [#allocation16], 16
        $region140: #{tpu_custom_call.1} parent=103 // pred_fallthru
          _
        // Predicated region
        $region141: #{tpu_custom_call.1} parent=103 // pred_check
          %p788 = pneg %p412
        $region142: #{tpu_custom_call.1} parent=103 // pred_check_branch
          %790 = sbr.rel (%p788) target = $region144
        $region143: #{tpu_custom_call.1} parent=103 // pred_region
          %791 = dma.done [#allocation5], 64
        $region144: #{tpu_custom_call.1} parent=103 // pred_fallthru
          _
        // Predicated region
        $region145: #{tpu_custom_call.1} parent=103 // pred_check
          %p792 = pneg %p433
        $region146: #{tpu_custom_call.1} parent=103 // pred_check_branch
          %794 = sbr.rel (%p792) target = $region148
        $region147: #{tpu_custom_call.1} parent=103 // pred_region
          %795 = dma.done [#allocation20], 64
        $region148: #{tpu_custom_call.1} parent=103 // pred_fallthru
          _
        // Predicated region
        $region149: #{tpu_custom_call.1} parent=103 // pred_check
          %p796 = pneg %p454
        $region150: #{tpu_custom_call.1} parent=103 // pred_check_branch
          %798 = sbr.rel (%p796) target = $region152
        $region151: #{tpu_custom_call.1} parent=103 // pred_region
          %799 = dma.done [#allocation20], 64
        $region152: #{tpu_custom_call.1} parent=103 // pred_fallthru
          _
        // Predicated region
        $region153: #{tpu_custom_call.1} parent=103 // pred_check
          %p800 = pneg %p475
        $region154: #{tpu_custom_call.1} parent=103 // pred_check_branch
          %802 = sbr.rel (%p800) target = $region156
        $region155: #{tpu_custom_call.1} parent=103 // pred_region
          %803 = dma.done [#allocation23], 64
        $region156: #{tpu_custom_call.1} parent=103 // pred_fallthru
          _
        // Predicated region
        $region157: #{tpu_custom_call.1} parent=103 // pred_check
          %p804 = pneg %p496
        $region158: #{tpu_custom_call.1} parent=103 // pred_check_branch
          %806 = sbr.rel (%p804) target = $region160
        $region159: #{tpu_custom_call.1} parent=103 // pred_region
          %807 = dma.done [#allocation23], 16
        $region160: #{tpu_custom_call.1} parent=103 // pred_fallthru
          _
        %808 = sfence
        %p809 = scmp.lt.s32.totalorder %s45, 1
        %s810 = scalar_select %p809, %s45, 1
        %s811 = smul.addr %s810, 8
        %s812 = scalar_lea.vmem %s0, %s811
        %p813 = pneg %p66
        %p814 = pneg %p63
        %p815 = scmp.lt.s32.totalorder %s45, 1
        %s816 = scalar_select %p815, %s45, 1
        %s817 = smul.addr %s816, 2
        %s818 = smul.addr %s817, 8
        %s819 = scalar_lea.vmem %s1, %s818
        %p820 = pneg %p92
        %p821 = pneg %p89
        %s822 = sand.u32 %s105, 1
        %s823 = scalar_lea.sflag [#allocation3], %s822
        %s824 = sand.u32 %s105, 1
        %s825 = smul.addr %s824, 8
        %s826 = scalar_lea.vmem [#allocation2], %s825
        %p827 = pneg %p118
        %p828 = pneg %p115
        %p829 = pneg %p139
        %p830 = pneg %p136
        %p831 = pneg %p160
        %p832 = pneg %p157
        %p833 = pneg %p181
        %p834 = pneg %p178
        %p835 = pneg %p202
        %p836 = pneg %p199
        %p837 = pneg %p223
        %p838 = pneg %p220
        %p839 = pneg %p244
        %p840 = pneg %p241
        %p841 = pneg %p265
        %p842 = pneg %p262
        %p843 = pneg %p286
        %p844 = pneg %p283
        %p845 = pneg %p307
        %p846 = pneg %p304
        %p847 = pneg %p328
        %p848 = pneg %p325
        %p849 = pneg %p349
        %p850 = pneg %p346
        %p851 = pneg %p370
        %p852 = pneg %p367
        %p853 = pneg %p391
        %p854 = pneg %p388
        %p855 = pneg %p412
        %p856 = pneg %p409
        %p857 = pneg %p433
        %p858 = pneg %p430
        %p859 = pneg %p454
        %p860 = pneg %p451
        %p861 = pneg %p475
        %p862 = pneg %p472
        %p863 = pneg %p496
        %p864 = pneg %p493
        %p865 = pneg %p522
        %p866 = pneg %p519
        %s867 = sand.u32 %s509, 1
        %s868 = scalar_lea.sflag [#allocation4], %s867
        %s869 = sand.u32 %s509, 1
        %s870 = smul.addr %s869, 8
        %s871 = scalar_lea.vmem [#allocation25], %s870
        %p872 = scmp.lt.s32.totalorder %s45, 1
        %s873 = scalar_select %p872, %s45, 1
        %s874 = smul.addr %s873, 8
        %s875 = scalar_lea.vmem %s0, %s874
        %p876 = scmp.lt.s32.totalorder %s45, 1
        %s877 = scalar_select %p876, %s45, 1
        %s878 = smul.addr %s877, 2
        %s879 = smul.addr %s878, 8
        %s880 = scalar_lea.vmem %s1, %s879
        %v882 = vld [vmem:[%s875] sm:$0xff]
        %v883 = vld [vmem:[%s880] sm:$0xff]
        %v884 = vld [vmem:[%s880 + $0x8] sm:$0xff]
        %v885 = vld [vmem:[%s751] sm:$0xff]
        %v886 = vpack.c.bf16 %v882, %v882
        %v887 = vpack.c.bf16 %v884, %v883
        %v888 = vld [vmem:[#allocation6] sm:$0xf]
        %v889 = vld [vmem:[#allocation6 + $0x4] sm:$0xf]
        %v890 = vld [vmem:[#allocation6 + $0x8] sm:$0xf]
        %v891 = vld [vmem:[#allocation6 + $0xc] sm:$0xf]
        %v896 = vunpack.c.l.b16 %v888
        %v897 = vunpack.c.l.b16 %v889
        %v898 = vunpack.c.l.b16 %v890
        %v899 = vunpack.c.l.b16 %v891
        %v900 = vpack.c.b16 %v897, %v896
        %v901 = vpack.c.b16 %v899, %v898
        %vm904 = vcmask 261120
        %v906 = vsel %vm904, %v886, 0
        %908 = vmatprep.subr.bf16.mxu0 0
        %909 = vmatpush1.bf16.msra.mxu0 %v900
        %910 = vmatprep.subr.bf16.mxu0 0
        %911 = vmatpush1.bf16.msra.mxu0 %v901
        %912 = vmatprep.subr.bf16.mxu0 0
        %913 = vmatpush1.bf16.msra.mxu0 0
        %914 = vmatprep.subr.bf16.mxu0 0
        %915 = vmatpush1.bf16.msra.mxu0 0
        %916 = vmatprep.subr.bf16.mxu0 0
        %917 = vmatpush1.bf16.msra.mxu0 0
        %918 = vmatprep.subr.bf16.mxu0 0
        %919 = vmatpush1.bf16.msra.mxu0 0
        %920 = vmatprep.subr.bf16.mxu0 0
        %921 = vmatpush1.bf16.msra.mxu0 0
        %922 = vmatprep.subr.bf16.mxu0 0
        %923 = vmatpush1.bf16.msra.mxu0 0
        %924 = vmatprep.subr.bf16.mxu0 0
        %925 = vmatpush1.bf16.msra.mxu0 0
        %926 = vmatprep.subr.bf16.mxu0 0
        %927 = vmatpush1.bf16.msra.mxu0 0
        %928 = vmatprep.subr.bf16.mxu0 0
        %929 = vmatpush1.bf16.msra.mxu0 0
        %930 = vmatprep.subr.bf16.mxu0 0
        %931 = vmatpush1.bf16.msra.mxu0 0
        %932 = vmatprep.subr.bf16.mxu0 0
        %933 = vmatpush1.bf16.msra.mxu0 0
        %934 = vmatprep.subr.bf16.mxu0 0
        %935 = vmatpush1.bf16.msra.mxu0 0
        %936 = vmatprep.subr.bf16.mxu0 0
        %937 = vmatpush1.bf16.msra.mxu0 0
        %938 = vmatprep.subr.bf16.mxu0 0
        %939 = vmatpush1.bf16.msra.mxu0 0
        %940 = vmatprep.mubr.bf16.mxu0 0
        %941 = vmatmul.mubr.bf16.gmra.mrb[0].mxu0 %v906
        %v942 = vpop.f32.mrb[0].mxu0
        %v943 = vadd.f32 0.0, %v942
        %v944 = vpop.f32.mrb[0].mxu0
        %v945 = vpop.f32.mrb[0].mxu0
        %v946 = vpop.f32.mrb[0].mxu0
        %947 = vdwg.mxu0
        %v948 = vld [vmem:[#allocation8] sm:$0xf]
        %v949 = vld [vmem:[#allocation8 + $0x4] sm:$0xf]
        %v950 = vld [vmem:[#allocation8 + $0x8] sm:$0xf]
        %v951 = vld [vmem:[#allocation8 + $0xc] sm:$0xf]
        %v956 = vunpack.c.l.b16 %v948
        %v957 = vunpack.c.l.b16 %v949
        %v958 = vunpack.c.l.b16 %v950
        %v959 = vunpack.c.l.b16 %v951
        %v960 = vpack.c.b16 %v957, %v956
        %v961 = vpack.c.b16 %v959, %v958
        %v965 = vsel %vm904, %v887, 0
        %967 = vmatprep.subr.bf16.mxu0 0
        %968 = vmatpush1.bf16.msra.mxu0 %v960
        %969 = vmatprep.subr.bf16.mxu0 0
        %970 = vmatpush1.bf16.msra.mxu0 %v961
        %971 = vmatprep.subr.bf16.mxu0 0
        %972 = vmatpush1.bf16.msra.mxu0 0
        %973 = vmatprep.subr.bf16.mxu0 0
        %974 = vmatpush1.bf16.msra.mxu0 0
        %975 = vmatprep.subr.bf16.mxu0 0
        %976 = vmatpush1.bf16.msra.mxu0 0
        %977 = vmatprep.subr.bf16.mxu0 0
        %978 = vmatpush1.bf16.msra.mxu0 0
        %979 = vmatprep.subr.bf16.mxu0 0
        %980 = vmatpush1.bf16.msra.mxu0 0
        %981 = vmatprep.subr.bf16.mxu0 0
        %982 = vmatpush1.bf16.msra.mxu0 0
        %983 = vmatprep.subr.bf16.mxu0 0
        %984 = vmatpush1.bf16.msra.mxu0 0
        %985 = vmatprep.subr.bf16.mxu0 0
        %986 = vmatpush1.bf16.msra.mxu0 0
        %987 = vmatprep.subr.bf16.mxu0 0
        %988 = vmatpush1.bf16.msra.mxu0 0
        %989 = vmatprep.subr.bf16.mxu0 0
        %990 = vmatpush1.bf16.msra.mxu0 0
        %991 = vmatprep.subr.bf16.mxu0 0
        %992 = vmatpush1.bf16.msra.mxu0 0
        %993 = vmatprep.subr.bf16.mxu0 0
        %994 = vmatpush1.bf16.msra.mxu0 0
        %995 = vmatprep.subr.bf16.mxu0 0
        %996 = vmatpush1.bf16.msra.mxu0 0
        %997 = vmatprep.subr.bf16.mxu0 0
        %998 = vmatpush1.bf16.msra.mxu0 0
        %999 = vmatprep.mubr.bf16.mxu0 0
        %1000 = vmatmul.mubr.bf16.gmra.mrb[0].mxu0 %v965
        %v1001 = vpop.f32.mrb[0].mxu0
        %v1002 = vadd.f32 0.0, %v1001
        %v1003 = vpop.f32.mrb[0].mxu0
        %v1004 = vpop.f32.mrb[0].mxu0
        %v1005 = vadd.f32 0.0, %v1004
        %v1006 = vpop.f32.mrb[0].mxu0
        %1007 = vdwg.mxu0
        %v1008 = vld [vmem:[#allocation9] sm:$0xf]
        %v1009 = vld [vmem:[#allocation9 + $0x4] sm:$0xf]
        %v1010 = vld [vmem:[#allocation9 + $0x8] sm:$0xf]
        %v1011 = vld [vmem:[#allocation9 + $0xc] sm:$0xf]
        %v1016 = vunpack.c.l.b16 %v1008
        %v1017 = vunpack.c.l.b16 %v1009
        %v1018 = vunpack.c.l.b16 %v1010
        %v1019 = vunpack.c.l.b16 %v1011
        %v1020 = vpack.c.b16 %v1017, %v1016
        %v1021 = vpack.c.b16 %v1019, %v1018
        %1024 = vmatprep.subr.bf16.mxu0 0
        %1025 = vmatpush1.bf16.msra.mxu0 %v1020
        %1026 = vmatprep.subr.bf16.mxu0 0
        %1027 = vmatpush1.bf16.msra.mxu0 %v1021
        %1028 = vmatprep.subr.bf16.mxu0 0
        %1029 = vmatpush1.bf16.msra.mxu0 0
        %1030 = vmatprep.subr.bf16.mxu0 0
        %1031 = vmatpush1.bf16.msra.mxu0 0
        %1032 = vmatprep.subr.bf16.mxu0 0
        %1033 = vmatpush1.bf16.msra.mxu0 0
        %1034 = vmatprep.subr.bf16.mxu0 0
        %1035 = vmatpush1.bf16.msra.mxu0 0
        %1036 = vmatprep.subr.bf16.mxu0 0
        %1037 = vmatpush1.bf16.msra.mxu0 0
        %1038 = vmatprep.subr.bf16.mxu0 0
        %1039 = vmatpush1.bf16.msra.mxu0 0
        %1040 = vmatprep.subr.bf16.mxu0 0
        %1041 = vmatpush1.bf16.msra.mxu0 0
        %1042 = vmatprep.subr.bf16.mxu0 0
        %1043 = vmatpush1.bf16.msra.mxu0 0
        %1044 = vmatprep.subr.bf16.mxu0 0
        %1045 = vmatpush1.bf16.msra.mxu0 0
        %1046 = vmatprep.subr.bf16.mxu0 0
        %1047 = vmatpush1.bf16.msra.mxu0 0
        %1048 = vmatprep.subr.bf16.mxu0 0
        %1049 = vmatpush1.bf16.msra.mxu0 0
        %1050 = vmatprep.subr.bf16.mxu0 0
        %1051 = vmatpush1.bf16.msra.mxu0 0
        %1052 = vmatprep.subr.bf16.mxu0 0
        %1053 = vmatpush1.bf16.msra.mxu0 0
        %1054 = vmatprep.subr.bf16.mxu0 0
        %1055 = vmatpush1.bf16.msra.mxu0 0
        %1056 = vmatprep.mubr.bf16.mxu0 0
        %1057 = vmatmul.mubr.bf16.gmra.mrb[0].mxu0 %v965
        %v1058 = vpop.f32.mrb[0].mxu0
        %v1059 = vadd.f32 0.0, %v1058
        %v1060 = vpop.f32.mrb[0].mxu0
        %v1061 = vpop.f32.mrb[0].mxu0
        %v1062 = vadd.f32 0.0, %v1061
        %v1063 = vpop.f32.mrb[0].mxu0
        %1064 = vdwg.mxu0
        %v1065 = vld [vmem:[#allocation11] sm:$0xf]
        %v1066 = vld [vmem:[#allocation11 + $0x4] sm:$0xf]
        %v1067 = vld [vmem:[#allocation11 + $0x8] sm:$0xf]
        %v1068 = vld [vmem:[#allocation11 + $0xc] sm:$0xf]
        %vm1069 = vcmask 64512
        %v1071 = vsel %vm1069, %v943, 0
        %v1074 = vsel %vm1069, %v1002, 0
        %v1077 = vsel %vm1069, %v1005, 0
        %1079 = vmatprep.subr.mxu0 0.0
        %1080 = vmatpush1.xpose.msra.mxu0 %v1074
        %1081 = vmatprep.subr.mxu0 0.0
        %1082 = vmatpush1.xpose.msra.mxu0 %v1077
        %1083 = vmatprep.subr.mxu0 0.0
        %1084 = vmatpush1.xpose.msra.mxu0 0.0
        %1085 = vmatprep.subr.mxu0 0.0
        %1086 = vmatpush1.xpose.msra.mxu0 0.0
        %1087 = vmatprep.subr.mxu0 0.0
        %1088 = vmatpush1.xpose.msra.mxu0 0.0
        %1089 = vmatprep.subr.mxu0 0.0
        %1090 = vmatpush1.xpose.msra.mxu0 0.0
        %1091 = vmatprep.subr.mxu0 0.0
        %1092 = vmatpush1.xpose.msra.mxu0 0.0
        %1093 = vmatprep.subr.mxu0 0.0
        %1094 = vmatpush1.xpose.msra.mxu0 0.0
        %1095 = vmatprep.subr.mxu0 0.0
        %1096 = vmatpush1.xpose.msra.mxu0 0.0
        %1097 = vmatprep.subr.mxu0 0.0
        %1098 = vmatpush1.xpose.msra.mxu0 0.0
        %1099 = vmatprep.subr.mxu0 0.0
        %1100 = vmatpush1.xpose.msra.mxu0 0.0
        %1101 = vmatprep.subr.mxu0 0.0
        %1102 = vmatpush1.xpose.msra.mxu0 0.0
        %1103 = vmatprep.subr.mxu0 0.0
        %1104 = vmatpush1.xpose.msra.mxu0 0.0
        %1105 = vmatprep.subr.mxu0 0.0
        %1106 = vmatpush1.xpose.msra.mxu0 0.0
        %1107 = vmatprep.subr.mxu0 0.0
        %1108 = vmatpush1.xpose.msra.mxu0 0.0
        %1109 = vmatprep.subr.mxu0 0.0
        %1110 = vmatpush1.xpose.msra.mxu0 0.0
        %1111 = vmatprep.subr.mxu0 0.0
        %1112 = vmatpush1.xpose.msra.mxu0 0.0
        %1113 = vmatprep.subr.mxu0 0.0
        %1114 = vmatpush1.xpose.msra.mxu0 0.0
        %1115 = vmatprep.subr.mxu0 0.0
        %1116 = vmatpush1.xpose.msra.mxu0 0.0
        %1117 = vmatprep.subr.mxu0 0.0
        %1118 = vmatpush1.xpose.msra.mxu0 0.0
        %1119 = vmatprep.subr.mxu0 0.0
        %1120 = vmatpush1.xpose.msra.mxu0 0.0
        %1121 = vmatprep.subr.mxu0 0.0
        %1122 = vmatpush1.xpose.msra.mxu0 0.0
        %1123 = vmatprep.subr.mxu0 0.0
        %1124 = vmatpush1.xpose.msra.mxu0 0.0
        %1125 = vmatprep.subr.mxu0 0.0
        %1126 = vmatpush1.xpose.msra.mxu0 0.0
        %1127 = vmatprep.subr.mxu0 0.0
        %1128 = vmatpush1.xpose.msra.mxu0 0.0
        %1129 = vmatprep.subr.mxu0 0.0
        %1130 = vmatpush1.xpose.msra.mxu0 0.0
        %1131 = vmatprep.subr.mxu0 0.0
        %1132 = vmatpush1.xpose.msra.mxu0 0.0
        %1133 = vmatprep.subr.mxu0 0.0
        %1134 = vmatpush1.xpose.msra.mxu0 0.0
        %1135 = vmatprep.subr.mxu0 0.0
        %1136 = vmatpush1.xpose.msra.mxu0 0.0
        %1137 = vmatprep.subr.mxu0 0.0
        %1138 = vmatpush1.xpose.msra.mxu0 0.0
        %1139 = vmatprep.subr.mxu0 0.0
        %1140 = vmatpush1.xpose.msra.mxu0 0.0
        %1141 = vmatprep.subr.mxu0 0.0
        %1142 = vmatpush1.xpose.msra.mxu0 0.0
        %1143 = vmatprep.mubr.f32.mxu0 0.0
        %1144 = vmatmul.mubr.f32.gmra.mrb[0].mxu0 %v1071
        %v1145 = vpop.f32.mrb[0].mxu0
        %v1146 = vadd.f32 0.0, %v1145
        %v1147 = vpop.f32.mrb[0].mxu0
        %1148 = vdwg.mxu0
        %v1149 = vmul.f32 %v1146, 0.35355338
        %s1150 = sld [smem:[#allocation18]]
        %v1151 = vstv %s1150
        %v1152 = vmul.f32 %v1149, %v1151
        %s1153 = sld [smem:[#allocation19]]
        %v1154 = vstv %s1153
        %v1155 = vmul.f32 %v885, %v1154
        %v1156 = vadd.f32 %v1152, %v1155
        %s1157 = sld [smem:[#allocation21]]
        %v1158 = vstv %s1157
        %v1159 = vadd.f32 %v1156, %v1158
        %v1160 = vmax.f32 %v1159, 0.0
        %s1161 = sld [smem:[#allocation22]]
        %v1162 = vstv %s1161
        %v1163 = vmul.f32 %v1160, %v1162
        %v1164 = vadd.f32 %v1163, 0.0
        %s1165 = sld [smem:[#allocation18 + $0x1]]
        %v1166 = vstv %s1165
        %v1167 = vmul.f32 %v1149, %v1166
        %s1168 = sld [smem:[#allocation19 + $0x1]]
        %v1169 = vstv %s1168
        %v1170 = vmul.f32 %v885, %v1169
        %v1171 = vadd.f32 %v1167, %v1170
        %s1172 = sld [smem:[#allocation21 + $0x1]]
        %v1173 = vstv %s1172
        %v1174 = vadd.f32 %v1171, %v1173
        %v1175 = vmax.f32 %v1174, 0.0
        %s1176 = sld [smem:[#allocation22 + $0x1]]
        %v1177 = vstv %s1176
        %v1178 = vmul.f32 %v1175, %v1177
        %v1179 = vadd.f32 %v1164, %v1178
        %s1180 = sld [smem:[#allocation18 + $0x2]]
        %v1181 = vstv %s1180
        %v1182 = vmul.f32 %v1149, %v1181
        %s1183 = sld [smem:[#allocation19 + $0x2]]
        %v1184 = vstv %s1183
        %v1185 = vmul.f32 %v885, %v1184
        %v1186 = vadd.f32 %v1182, %v1185
        %s1187 = sld [smem:[#allocation21 + $0x2]]
        %v1188 = vstv %s1187
        %v1189 = vadd.f32 %v1186, %v1188
        %v1190 = vmax.f32 %v1189, 0.0
        %s1191 = sld [smem:[#allocation22 + $0x2]]
        %v1192 = vstv %s1191
        %v1193 = vmul.f32 %v1190, %v1192
        %v1194 = vadd.f32 %v1179, %v1193
        %s1195 = sld [smem:[#allocation18 + $0x3]]
        %v1196 = vstv %s1195
        %v1197 = vmul.f32 %v1149, %v1196
        %s1198 = sld [smem:[#allocation19 + $0x3]]
        %v1199 = vstv %s1198
        %v1200 = vmul.f32 %v885, %v1199
        %v1201 = vadd.f32 %v1197, %v1200
        %s1202 = sld [smem:[#allocation21 + $0x3]]
        %v1203 = vstv %s1202
        %v1204 = vadd.f32 %v1201, %v1203
        %v1205 = vmax.f32 %v1204, 0.0
        %s1206 = sld [smem:[#allocation22 + $0x3]]
        %v1207 = vstv %s1206
        %v1208 = vmul.f32 %v1205, %v1207
        %v1209 = vadd.f32 %v1194, %v1208
        %s1210 = sld [smem:[#allocation18 + $0x4]]
        %v1211 = vstv %s1210
        %v1212 = vmul.f32 %v1149, %v1211
        %s1213 = sld [smem:[#allocation19 + $0x4]]
        %v1214 = vstv %s1213
        %v1215 = vmul.f32 %v885, %v1214
        %v1216 = vadd.f32 %v1212, %v1215
        %s1217 = sld [smem:[#allocation21 + $0x4]]
        %v1218 = vstv %s1217
        %v1219 = vadd.f32 %v1216, %v1218
        %v1220 = vmax.f32 %v1219, 0.0
        %s1221 = sld [smem:[#allocation22 + $0x4]]
        %v1222 = vstv %s1221
        %v1223 = vmul.f32 %v1220, %v1222
        %v1224 = vadd.f32 %v1209, %v1223
        %s1225 = sld [smem:[#allocation18 + $0x5]]
        %v1226 = vstv %s1225
        %v1227 = vmul.f32 %v1149, %v1226
        %s1228 = sld [smem:[#allocation19 + $0x5]]
        %v1229 = vstv %s1228
        %v1230 = vmul.f32 %v885, %v1229
        %v1231 = vadd.f32 %v1227, %v1230
        %s1232 = sld [smem:[#allocation21 + $0x5]]
        %v1233 = vstv %s1232
        %v1234 = vadd.f32 %v1231, %v1233
        %v1235 = vmax.f32 %v1234, 0.0
        %s1236 = sld [smem:[#allocation22 + $0x5]]
        %v1237 = vstv %s1236
        %v1238 = vmul.f32 %v1235, %v1237
        %v1239 = vadd.f32 %v1224, %v1238
        %s1240 = sld [smem:[#allocation18 + $0x6]]
        %v1241 = vstv %s1240
        %v1242 = vmul.f32 %v1149, %v1241
        %s1243 = sld [smem:[#allocation19 + $0x6]]
        %v1244 = vstv %s1243
        %v1245 = vmul.f32 %v885, %v1244
        %v1246 = vadd.f32 %v1242, %v1245
        %s1247 = sld [smem:[#allocation21 + $0x6]]
        %v1248 = vstv %s1247
        %v1249 = vadd.f32 %v1246, %v1248
        %v1250 = vmax.f32 %v1249, 0.0
        %s1251 = sld [smem:[#allocation22 + $0x6]]
        %v1252 = vstv %s1251
        %v1253 = vmul.f32 %v1250, %v1252
        %v1254 = vadd.f32 %v1239, %v1253
        %s1255 = sld [smem:[#allocation18 + $0x7]]
        %v1256 = vstv %s1255
        %v1257 = vmul.f32 %v1149, %v1256
        %s1258 = sld [smem:[#allocation19 + $0x7]]
        %v1259 = vstv %s1258
        %v1260 = vmul.f32 %v885, %v1259
        %v1261 = vadd.f32 %v1257, %v1260
        %s1262 = sld [smem:[#allocation21 + $0x7]]
        %v1263 = vstv %s1262
        %v1264 = vadd.f32 %v1261, %v1263
        %v1265 = vmax.f32 %v1264, 0.0
        %s1266 = sld [smem:[#allocation22 + $0x7]]
        %v1267 = vstv %s1266
        %v1268 = vmul.f32 %v1265, %v1267
        %v1269 = vadd.f32 %v1254, %v1268
        %s1270 = sld [smem:[#allocation18 + $0x8]]
        %v1271 = vstv %s1270
        %v1272 = vmul.f32 %v1149, %v1271
        %s1273 = sld [smem:[#allocation19 + $0x8]]
        %v1274 = vstv %s1273
        %v1275 = vmul.f32 %v885, %v1274
        %v1276 = vadd.f32 %v1272, %v1275
        %s1277 = sld [smem:[#allocation21 + $0x8]]
        %v1278 = vstv %s1277
        %v1279 = vadd.f32 %v1276, %v1278
        %v1280 = vmax.f32 %v1279, 0.0
        %s1281 = sld [smem:[#allocation22 + $0x8]]
        %v1282 = vstv %s1281
        %v1283 = vmul.f32 %v1280, %v1282
        %v1284 = vadd.f32 %v1269, %v1283
        %s1285 = sld [smem:[#allocation18 + $0x9]]
        %v1286 = vstv %s1285
        %v1287 = vmul.f32 %v1149, %v1286
        %s1288 = sld [smem:[#allocation19 + $0x9]]
        %v1289 = vstv %s1288
        %v1290 = vmul.f32 %v885, %v1289
        %v1291 = vadd.f32 %v1287, %v1290
        %s1292 = sld [smem:[#allocation21 + $0x9]]
        %v1293 = vstv %s1292
        %v1294 = vadd.f32 %v1291, %v1293
        %v1295 = vmax.f32 %v1294, 0.0
        %s1296 = sld [smem:[#allocation22 + $0x9]]
        %v1297 = vstv %s1296
        %v1298 = vmul.f32 %v1295, %v1297
        %v1299 = vadd.f32 %v1284, %v1298
        %s1300 = sld [smem:[#allocation18 + $0xa]]
        %v1301 = vstv %s1300
        %v1302 = vmul.f32 %v1149, %v1301
        %s1303 = sld [smem:[#allocation19 + $0xa]]
        %v1304 = vstv %s1303
        %v1305 = vmul.f32 %v885, %v1304
        %v1306 = vadd.f32 %v1302, %v1305
        %s1307 = sld [smem:[#allocation21 + $0xa]]
        %v1308 = vstv %s1307
        %v1309 = vadd.f32 %v1306, %v1308
        %v1310 = vmax.f32 %v1309, 0.0
        %s1311 = sld [smem:[#allocation22 + $0xa]]
        %v1312 = vstv %s1311
        %v1313 = vmul.f32 %v1310, %v1312
        %v1314 = vadd.f32 %v1299, %v1313
        %s1315 = sld [smem:[#allocation18 + $0xb]]
        %v1316 = vstv %s1315
        %v1317 = vmul.f32 %v1149, %v1316
        %s1318 = sld [smem:[#allocation19 + $0xb]]
        %v1319 = vstv %s1318
        %v1320 = vmul.f32 %v885, %v1319
        %v1321 = vadd.f32 %v1317, %v1320
        %s1322 = sld [smem:[#allocation21 + $0xb]]
        %v1323 = vstv %s1322
        %v1324 = vadd.f32 %v1321, %v1323
        %v1325 = vmax.f32 %v1324, 0.0
        %s1326 = sld [smem:[#allocation22 + $0xb]]
        %v1327 = vstv %s1326
        %v1328 = vmul.f32 %v1325, %v1327
        %v1329 = vadd.f32 %v1314, %v1328
        %s1330 = sld [smem:[#allocation18 + $0xc]]
        %v1331 = vstv %s1330
        %v1332 = vmul.f32 %v1149, %v1331
        %s1333 = sld [smem:[#allocation19 + $0xc]]
        %v1334 = vstv %s1333
        %v1335 = vmul.f32 %v885, %v1334
        %v1336 = vadd.f32 %v1332, %v1335
        %s1337 = sld [smem:[#allocation21 + $0xc]]
        %v1338 = vstv %s1337
        %v1339 = vadd.f32 %v1336, %v1338
        %v1340 = vmax.f32 %v1339, 0.0
        %s1341 = sld [smem:[#allocation22 + $0xc]]
        %v1342 = vstv %s1341
        %v1343 = vmul.f32 %v1340, %v1342
        %v1344 = vadd.f32 %v1329, %v1343
        %s1345 = sld [smem:[#allocation18 + $0xd]]
        %v1346 = vstv %s1345
        %v1347 = vmul.f32 %v1149, %v1346
        %s1348 = sld [smem:[#allocation19 + $0xd]]
        %v1349 = vstv %s1348
        %v1350 = vmul.f32 %v885, %v1349
        %v1351 = vadd.f32 %v1347, %v1350
        %s1352 = sld [smem:[#allocation21 + $0xd]]
        %v1353 = vstv %s1352
        %v1354 = vadd.f32 %v1351, %v1353
        %v1355 = vmax.f32 %v1354, 0.0
        %s1356 = sld [smem:[#allocation22 + $0xd]]
        %v1357 = vstv %s1356
        %v1358 = vmul.f32 %v1355, %v1357
        %v1359 = vadd.f32 %v1344, %v1358
        %s1360 = sld [smem:[#allocation18 + $0xe]]
        %v1361 = vstv %s1360
        %v1362 = vmul.f32 %v1149, %v1361
        %s1363 = sld [smem:[#allocation19 + $0xe]]
        %v1364 = vstv %s1363
        %v1365 = vmul.f32 %v885, %v1364
        %v1366 = vadd.f32 %v1362, %v1365
        %s1367 = sld [smem:[#allocation21 + $0xe]]
        %v1368 = vstv %s1367
        %v1369 = vadd.f32 %v1366, %v1368
        %v1370 = vmax.f32 %v1369, 0.0
        %s1371 = sld [smem:[#allocation22 + $0xe]]
        %v1372 = vstv %s1371
        %v1373 = vmul.f32 %v1370, %v1372
        %v1374 = vadd.f32 %v1359, %v1373
        %s1375 = sld [smem:[#allocation18 + $0xf]]
        %v1376 = vstv %s1375
        %v1377 = vmul.f32 %v1149, %v1376
        %s1378 = sld [smem:[#allocation19 + $0xf]]
        %v1379 = vstv %s1378
        %v1380 = vmul.f32 %v885, %v1379
        %v1381 = vadd.f32 %v1377, %v1380
        %s1382 = sld [smem:[#allocation21 + $0xf]]
        %v1383 = vstv %s1382
        %v1384 = vadd.f32 %v1381, %v1383
        %v1385 = vmax.f32 %v1384, 0.0
        %s1386 = sld [smem:[#allocation22 + $0xf]]
        %v1387 = vstv %s1386
        %v1388 = vmul.f32 %v1385, %v1387
        %v1389 = vadd.f32 %v1374, %v1388
        %s1390 = sld [smem:[#allocation24]]
        %v1391 = vstv %s1390
        %v1392 = vadd.f32 %v1389, %v1391
        %vm1393 = vcmask 130048
        %v1394 = vsel %vm1393, %v1392, -inf
        %1395 = vmax.xlane.f32.xlu0 %v1394
        %v1396 = vpop.xlane.xlu0 %1395
        %v1397 = vsub.f32 %v1392, %v1396
        %v1398 = vmul.f32 %v1397, 1.442695
        %v1399 = vpow.pop %v1398
        %v1400 = vsel %vm1393, %v1399, 0.0
        %1401 = vadd.xlane.f32.xlu0 %v1400
        %v1402 = vpop.xlane.xlu0 %1401
        %v1404 = vsel %vm1393, %v1399, 0
        %1406 = vmatprep.subr.mxu0 0.0
        %1407 = vmatpush1.msra.mxu0 %v1059
        %1408 = vmatprep.subr.mxu0 0.0
        %1409 = vmatpush1.msra.mxu0 %v1062
        %1410 = vmatprep.subr.mxu0 0.0
        %1411 = vmatpush1.msra.mxu0 0.0
        %1412 = vmatprep.subr.mxu0 0.0
        %1413 = vmatpush1.msra.mxu0 0.0
        %1414 = vmatprep.subr.mxu0 0.0
        %1415 = vmatpush1.msra.mxu0 0.0
        %1416 = vmatprep.subr.mxu0 0.0
        %1417 = vmatpush1.msra.mxu0 0.0
        %1418 = vmatprep.subr.mxu0 0.0
        %1419 = vmatpush1.msra.mxu0 0.0
        %1420 = vmatprep.subr.mxu0 0.0
        %1421 = vmatpush1.msra.mxu0 0.0
        %1422 = vmatprep.subr.mxu0 0.0
        %1423 = vmatpush1.msra.mxu0 0.0
        %1424 = vmatprep.subr.mxu0 0.0
        %1425 = vmatpush1.msra.mxu0 0.0
        %1426 = vmatprep.subr.mxu0 0.0
        %1427 = vmatpush1.msra.mxu0 0.0
        %1428 = vmatprep.subr.mxu0 0.0
        %1429 = vmatpush1.msra.mxu0 0.0
        %1430 = vmatprep.subr.mxu0 0.0
        %1431 = vmatpush1.msra.mxu0 0.0
        %1432 = vmatprep.subr.mxu0 0.0
        %1433 = vmatpush1.msra.mxu0 0.0
        %1434 = vmatprep.subr.mxu0 0.0
        %1435 = vmatpush1.msra.mxu0 0.0
        %1436 = vmatprep.subr.mxu0 0.0
        %1437 = vmatpush1.msra.mxu0 0.0
        %1438 = vmatprep.subr.mxu0 0.0
        %1439 = vmatpush1.msra.mxu0 0.0
        %1440 = vmatprep.subr.mxu0 0.0
        %1441 = vmatpush1.msra.mxu0 0.0
        %1442 = vmatprep.subr.mxu0 0.0
        %1443 = vmatpush1.msra.mxu0 0.0
        %1444 = vmatprep.subr.mxu0 0.0
        %1445 = vmatpush1.msra.mxu0 0.0
        %1446 = vmatprep.subr.mxu0 0.0
        %1447 = vmatpush1.msra.mxu0 0.0
        %1448 = vmatprep.subr.mxu0 0.0
        %1449 = vmatpush1.msra.mxu0 0.0
        %1450 = vmatprep.subr.mxu0 0.0
        %1451 = vmatpush1.msra.mxu0 0.0
        %1452 = vmatprep.subr.mxu0 0.0
        %1453 = vmatpush1.msra.mxu0 0.0
        %1454 = vmatprep.subr.mxu0 0.0
        %1455 = vmatpush1.msra.mxu0 0.0
        %1456 = vmatprep.subr.mxu0 0.0
        %1457 = vmatpush1.msra.mxu0 0.0
        %1458 = vmatprep.subr.mxu0 0.0
        %1459 = vmatpush1.msra.mxu0 0.0
        %1460 = vmatprep.subr.mxu0 0.0
        %1461 = vmatpush1.msra.mxu0 0.0
        %1462 = vmatprep.subr.mxu0 0.0
        %1463 = vmatpush1.msra.mxu0 0.0
        %1464 = vmatprep.subr.mxu0 0.0
        %1465 = vmatpush1.msra.mxu0 0.0
        %1466 = vmatprep.subr.mxu0 0.0
        %1467 = vmatpush1.msra.mxu0 0.0
        %1468 = vmatprep.subr.mxu0 0.0
        %1469 = vmatpush1.msra.mxu0 0.0
        %1470 = vmatprep.mubr.f32.mxu0 0.0
        %1471 = vmatmul.mubr.f32.gmra.mrb[0].mxu0 %v1404
        %v1472 = vpop.f32.mrb[0].mxu0
        %v1473 = vadd.f32 0.0, %v1472
        %v1474 = vpop.f32.mrb[0].mxu0
        %1475 = vdwg.mxu0
        %v1476 = vrcp.pop %v1402
        %v1477 = vmul.f32 %v1473, %v1476
        %v1478 = vpack.c.bf16 %v1477, %v1477
        %1479 = vrot.lane.b32.xlu0 %v943, 120
        %v1480 = vpop.permute.xlu0 %1479
        %1481 = vrot.lane.b32.xlu0 %v1002, 120
        %v1482 = vpop.permute.xlu0 %1481
        %1483 = vrot.lane.b32.xlu0 %v1005, 120
        %v1484 = vpop.permute.xlu0 %1483
        %v1485 = vsel %vm1069, %v1480, 0
        %v1487 = vsel %vm1069, %v1482, 0
        %v1489 = vsel %vm1069, %v1484, 0
        %1491 = vmatprep.subr.mxu0 0.0
        %1492 = vmatpush1.xpose.msra.mxu0 %v1487
        %1493 = vmatprep.subr.mxu0 0.0
        %1494 = vmatpush1.xpose.msra.mxu0 %v1489
        %1495 = vmatprep.subr.mxu0 0.0
        %1496 = vmatpush1.xpose.msra.mxu0 0.0
        %1497 = vmatprep.subr.mxu0 0.0
        %1498 = vmatpush1.xpose.msra.mxu0 0.0
        %1499 = vmatprep.subr.mxu0 0.0
        %1500 = vmatpush1.xpose.msra.mxu0 0.0
        %1501 = vmatprep.subr.mxu0 0.0
        %1502 = vmatpush1.xpose.msra.mxu0 0.0
        %1503 = vmatprep.subr.mxu0 0.0
        %1504 = vmatpush1.xpose.msra.mxu0 0.0
        %1505 = vmatprep.subr.mxu0 0.0
        %1506 = vmatpush1.xpose.msra.mxu0 0.0
        %1507 = vmatprep.subr.mxu0 0.0
        %1508 = vmatpush1.xpose.msra.mxu0 0.0
        %1509 = vmatprep.subr.mxu0 0.0
        %1510 = vmatpush1.xpose.msra.mxu0 0.0
        %1511 = vmatprep.subr.mxu0 0.0
        %1512 = vmatpush1.xpose.msra.mxu0 0.0
        %1513 = vmatprep.subr.mxu0 0.0
        %1514 = vmatpush1.xpose.msra.mxu0 0.0
        %1515 = vmatprep.subr.mxu0 0.0
        %1516 = vmatpush1.xpose.msra.mxu0 0.0
        %1517 = vmatprep.subr.mxu0 0.0
        %1518 = vmatpush1.xpose.msra.mxu0 0.0
        %1519 = vmatprep.subr.mxu0 0.0
        %1520 = vmatpush1.xpose.msra.mxu0 0.0
        %1521 = vmatprep.subr.mxu0 0.0
        %1522 = vmatpush1.xpose.msra.mxu0 0.0
        %1523 = vmatprep.subr.mxu0 0.0
        %1524 = vmatpush1.xpose.msra.mxu0 0.0
        %1525 = vmatprep.subr.mxu0 0.0
        %1526 = vmatpush1.xpose.msra.mxu0 0.0
        %1527 = vmatprep.subr.mxu0 0.0
        %1528 = vmatpush1.xpose.msra.mxu0 0.0
        %1529 = vmatprep.subr.mxu0 0.0
        %1530 = vmatpush1.xpose.msra.mxu0 0.0
        %1531 = vmatprep.subr.mxu0 0.0
        %1532 = vmatpush1.xpose.msra.mxu0 0.0
        %1533 = vmatprep.subr.mxu0 0.0
        %1534 = vmatpush1.xpose.msra.mxu0 0.0
        %1535 = vmatprep.subr.mxu0 0.0
        %1536 = vmatpush1.xpose.msra.mxu0 0.0
        %1537 = vmatprep.subr.mxu0 0.0
        %1538 = vmatpush1.xpose.msra.mxu0 0.0
        %1539 = vmatprep.subr.mxu0 0.0
        %1540 = vmatpush1.xpose.msra.mxu0 0.0
        %1541 = vmatprep.subr.mxu0 0.0
        %1542 = vmatpush1.xpose.msra.mxu0 0.0
        %1543 = vmatprep.subr.mxu0 0.0
        %1544 = vmatpush1.xpose.msra.mxu0 0.0
        %1545 = vmatprep.subr.mxu0 0.0
        %1546 = vmatpush1.xpose.msra.mxu0 0.0
        %1547 = vmatprep.subr.mxu0 0.0
        %1548 = vmatpush1.xpose.msra.mxu0 0.0
        %1549 = vmatprep.subr.mxu0 0.0
        %1550 = vmatpush1.xpose.msra.mxu0 0.0
        %1551 = vmatprep.subr.mxu0 0.0
        %1552 = vmatpush1.xpose.msra.mxu0 0.0
        %1553 = vmatprep.subr.mxu0 0.0
        %1554 = vmatpush1.xpose.msra.mxu0 0.0
        %1555 = vmatprep.mubr.f32.mxu0 0.0
        %1556 = vmatmul.mubr.f32.gmra.mrb[0].mxu0 %v1485
        %v1557 = vpop.f32.mrb[0].mxu0
        %v1558 = vadd.f32 0.0, %v1557
        %v1559 = vpop.f32.mrb[0].mxu0
        %1560 = vdwg.mxu0
        %v1561 = vmul.f32 %v1558, 0.35355338
        %s1562 = sld [smem:[#allocation18 + $0x80]]
        %v1563 = vstv %s1562
        %v1564 = vmul.f32 %v1561, %v1563
        %s1565 = sld [smem:[#allocation19 + $0x80]]
        %v1566 = vstv %s1565
        %v1567 = vmul.f32 %v885, %v1566
        %v1568 = vadd.f32 %v1564, %v1567
        %s1569 = sld [smem:[#allocation21 + $0x80]]
        %v1570 = vstv %s1569
        %v1571 = vadd.f32 %v1568, %v1570
        %v1572 = vmax.f32 %v1571, 0.0
        %s1573 = sld [smem:[#allocation22 + $0x80]]
        %v1574 = vstv %s1573
        %v1575 = vmul.f32 %v1572, %v1574
        %v1576 = vadd.f32 %v1575, 0.0
        %s1577 = sld [smem:[#allocation18 + $0x81]]
        %v1578 = vstv %s1577
        %v1579 = vmul.f32 %v1561, %v1578
        %s1580 = sld [smem:[#allocation19 + $0x81]]
        %v1581 = vstv %s1580
        %v1582 = vmul.f32 %v885, %v1581
        %v1583 = vadd.f32 %v1579, %v1582
        %s1584 = sld [smem:[#allocation21 + $0x81]]
        %v1585 = vstv %s1584
        %v1586 = vadd.f32 %v1583, %v1585
        %v1587 = vmax.f32 %v1586, 0.0
        %s1588 = sld [smem:[#allocation22 + $0x81]]
        %v1589 = vstv %s1588
        %v1590 = vmul.f32 %v1587, %v1589
        %v1591 = vadd.f32 %v1576, %v1590
        %s1592 = sld [smem:[#allocation18 + $0x82]]
        %v1593 = vstv %s1592
        %v1594 = vmul.f32 %v1561, %v1593
        %s1595 = sld [smem:[#allocation19 + $0x82]]
        %v1596 = vstv %s1595
        %v1597 = vmul.f32 %v885, %v1596
        %v1598 = vadd.f32 %v1594, %v1597
        %s1599 = sld [smem:[#allocation21 + $0x82]]
        %v1600 = vstv %s1599
        %v1601 = vadd.f32 %v1598, %v1600
        %v1602 = vmax.f32 %v1601, 0.0
        %s1603 = sld [smem:[#allocation22 + $0x82]]
        %v1604 = vstv %s1603
        %v1605 = vmul.f32 %v1602, %v1604
        %v1606 = vadd.f32 %v1591, %v1605
        %s1607 = sld [smem:[#allocation18 + $0x83]]
        %v1608 = vstv %s1607
        %v1609 = vmul.f32 %v1561, %v1608
        %s1610 = sld [smem:[#allocation19 + $0x83]]
        %v1611 = vstv %s1610
        %v1612 = vmul.f32 %v885, %v1611
        %v1613 = vadd.f32 %v1609, %v1612
        %s1614 = sld [smem:[#allocation21 + $0x83]]
        %v1615 = vstv %s1614
        %v1616 = vadd.f32 %v1613, %v1615
        %v1617 = vmax.f32 %v1616, 0.0
        %s1618 = sld [smem:[#allocation22 + $0x83]]
        %v1619 = vstv %s1618
        %v1620 = vmul.f32 %v1617, %v1619
        %v1621 = vadd.f32 %v1606, %v1620
        %s1622 = sld [smem:[#allocation18 + $0x84]]
        %v1623 = vstv %s1622
        %v1624 = vmul.f32 %v1561, %v1623
        %s1625 = sld [smem:[#allocation19 + $0x84]]
        %v1626 = vstv %s1625
        %v1627 = vmul.f32 %v885, %v1626
        %v1628 = vadd.f32 %v1624, %v1627
        %s1629 = sld [smem:[#allocation21 + $0x84]]
        %v1630 = vstv %s1629
        %v1631 = vadd.f32 %v1628, %v1630
        %v1632 = vmax.f32 %v1631, 0.0
        %s1633 = sld [smem:[#allocation22 + $0x84]]
        %v1634 = vstv %s1633
        %v1635 = vmul.f32 %v1632, %v1634
        %v1636 = vadd.f32 %v1621, %v1635
        %s1637 = sld [smem:[#allocation18 + $0x85]]
        %v1638 = vstv %s1637
        %v1639 = vmul.f32 %v1561, %v1638
        %s1640 = sld [smem:[#allocation19 + $0x85]]
        %v1641 = vstv %s1640
        %v1642 = vmul.f32 %v885, %v1641
        %v1643 = vadd.f32 %v1639, %v1642
        %s1644 = sld [smem:[#allocation21 + $0x85]]
        %v1645 = vstv %s1644
        %v1646 = vadd.f32 %v1643, %v1645
        %v1647 = vmax.f32 %v1646, 0.0
        %s1648 = sld [smem:[#allocation22 + $0x85]]
        %v1649 = vstv %s1648
        %v1650 = vmul.f32 %v1647, %v1649
        %v1651 = vadd.f32 %v1636, %v1650
        %s1652 = sld [smem:[#allocation18 + $0x86]]
        %v1653 = vstv %s1652
        %v1654 = vmul.f32 %v1561, %v1653
        %s1655 = sld [smem:[#allocation19 + $0x86]]
        %v1656 = vstv %s1655
        %v1657 = vmul.f32 %v885, %v1656
        %v1658 = vadd.f32 %v1654, %v1657
        %s1659 = sld [smem:[#allocation21 + $0x86]]
        %v1660 = vstv %s1659
        %v1661 = vadd.f32 %v1658, %v1660
        %v1662 = vmax.f32 %v1661, 0.0
        %s1663 = sld [smem:[#allocation22 + $0x86]]
        %v1664 = vstv %s1663
        %v1665 = vmul.f32 %v1662, %v1664
        %v1666 = vadd.f32 %v1651, %v1665
        %s1667 = sld [smem:[#allocation18 + $0x87]]
        %v1668 = vstv %s1667
        %v1669 = vmul.f32 %v1561, %v1668
        %s1670 = sld [smem:[#allocation19 + $0x87]]
        %v1671 = vstv %s1670
        %v1672 = vmul.f32 %v885, %v1671
        %v1673 = vadd.f32 %v1669, %v1672
        %s1674 = sld [smem:[#allocation21 + $0x87]]
        %v1675 = vstv %s1674
        %v1676 = vadd.f32 %v1673, %v1675
        %v1677 = vmax.f32 %v1676, 0.0
        %s1678 = sld [smem:[#allocation22 + $0x87]]
        %v1679 = vstv %s1678
        %v1680 = vmul.f32 %v1677, %v1679
        %v1681 = vadd.f32 %v1666, %v1680
        %s1682 = sld [smem:[#allocation18 + $0x88]]
        %v1683 = vstv %s1682
        %v1684 = vmul.f32 %v1561, %v1683
        %s1685 = sld [smem:[#allocation19 + $0x88]]
        %v1686 = vstv %s1685
        %v1687 = vmul.f32 %v885, %v1686
        %v1688 = vadd.f32 %v1684, %v1687
        %s1689 = sld [smem:[#allocation21 + $0x88]]
        %v1690 = vstv %s1689
        %v1691 = vadd.f32 %v1688, %v1690
        %v1692 = vmax.f32 %v1691, 0.0
        %s1693 = sld [smem:[#allocation22 + $0x88]]
        %v1694 = vstv %s1693
        %v1695 = vmul.f32 %v1692, %v1694
        %v1696 = vadd.f32 %v1681, %v1695
        %s1697 = sld [smem:[#allocation18 + $0x89]]
        %v1698 = vstv %s1697
        %v1699 = vmul.f32 %v1561, %v1698
        %s1700 = sld [smem:[#allocation19 + $0x89]]
        %v1701 = vstv %s1700
        %v1702 = vmul.f32 %v885, %v1701
        %v1703 = vadd.f32 %v1699, %v1702
        %s1704 = sld [smem:[#allocation21 + $0x89]]
        %v1705 = vstv %s1704
        %v1706 = vadd.f32 %v1703, %v1705
        %v1707 = vmax.f32 %v1706, 0.0
        %s1708 = sld [smem:[#allocation22 + $0x89]]
        %v1709 = vstv %s1708
        %v1710 = vmul.f32 %v1707, %v1709
        %v1711 = vadd.f32 %v1696, %v1710
        %s1712 = sld [smem:[#allocation18 + $0x8a]]
        %v1713 = vstv %s1712
        %v1714 = vmul.f32 %v1561, %v1713
        %s1715 = sld [smem:[#allocation19 + $0x8a]]
        %v1716 = vstv %s1715
        %v1717 = vmul.f32 %v885, %v1716
        %v1718 = vadd.f32 %v1714, %v1717
        %s1719 = sld [smem:[#allocation21 + $0x8a]]
        %v1720 = vstv %s1719
        %v1721 = vadd.f32 %v1718, %v1720
        %v1722 = vmax.f32 %v1721, 0.0
        %s1723 = sld [smem:[#allocation22 + $0x8a]]
        %v1724 = vstv %s1723
        %v1725 = vmul.f32 %v1722, %v1724
        %v1726 = vadd.f32 %v1711, %v1725
        %s1727 = sld [smem:[#allocation18 + $0x8b]]
        %v1728 = vstv %s1727
        %v1729 = vmul.f32 %v1561, %v1728
        %s1730 = sld [smem:[#allocation19 + $0x8b]]
        %v1731 = vstv %s1730
        %v1732 = vmul.f32 %v885, %v1731
        %v1733 = vadd.f32 %v1729, %v1732
        %s1734 = sld [smem:[#allocation21 + $0x8b]]
        %v1735 = vstv %s1734
        %v1736 = vadd.f32 %v1733, %v1735
        %v1737 = vmax.f32 %v1736, 0.0
        %s1738 = sld [smem:[#allocation22 + $0x8b]]
        %v1739 = vstv %s1738
        %v1740 = vmul.f32 %v1737, %v1739
        %v1741 = vadd.f32 %v1726, %v1740
        %s1742 = sld [smem:[#allocation18 + $0x8c]]
        %v1743 = vstv %s1742
        %v1744 = vmul.f32 %v1561, %v1743
        %s1745 = sld [smem:[#allocation19 + $0x8c]]
        %v1746 = vstv %s1745
        %v1747 = vmul.f32 %v885, %v1746
        %v1748 = vadd.f32 %v1744, %v1747
        %s1749 = sld [smem:[#allocation21 + $0x8c]]
        %v1750 = vstv %s1749
        %v1751 = vadd.f32 %v1748, %v1750
        %v1752 = vmax.f32 %v1751, 0.0
        %s1753 = sld [smem:[#allocation22 + $0x8c]]
        %v1754 = vstv %s1753
        %v1755 = vmul.f32 %v1752, %v1754
        %v1756 = vadd.f32 %v1741, %v1755
        %s1757 = sld [smem:[#allocation18 + $0x8d]]
        %v1758 = vstv %s1757
        %v1759 = vmul.f32 %v1561, %v1758
        %s1760 = sld [smem:[#allocation19 + $0x8d]]
        %v1761 = vstv %s1760
        %v1762 = vmul.f32 %v885, %v1761
        %v1763 = vadd.f32 %v1759, %v1762
        %s1764 = sld [smem:[#allocation21 + $0x8d]]
        %v1765 = vstv %s1764
        %v1766 = vadd.f32 %v1763, %v1765
        %v1767 = vmax.f32 %v1766, 0.0
        %s1768 = sld [smem:[#allocation22 + $0x8d]]
        %v1769 = vstv %s1768
        %v1770 = vmul.f32 %v1767, %v1769
        %v1771 = vadd.f32 %v1756, %v1770
        %s1772 = sld [smem:[#allocation18 + $0x8e]]
        %v1773 = vstv %s1772
        %v1774 = vmul.f32 %v1561, %v1773
        %s1775 = sld [smem:[#allocation19 + $0x8e]]
        %v1776 = vstv %s1775
        %v1777 = vmul.f32 %v885, %v1776
        %v1778 = vadd.f32 %v1774, %v1777
        %s1779 = sld [smem:[#allocation21 + $0x8e]]
        %v1780 = vstv %s1779
        %v1781 = vadd.f32 %v1778, %v1780
        %v1782 = vmax.f32 %v1781, 0.0
        %s1783 = sld [smem:[#allocation22 + $0x8e]]
        %v1784 = vstv %s1783
        %v1785 = vmul.f32 %v1782, %v1784
        %v1786 = vadd.f32 %v1771, %v1785
        %s1787 = sld [smem:[#allocation18 + $0x8f]]
        %v1788 = vstv %s1787
        %v1789 = vmul.f32 %v1561, %v1788
        %s1790 = sld [smem:[#allocation19 + $0x8f]]
        %v1791 = vstv %s1790
        %v1792 = vmul.f32 %v885, %v1791
        %v1793 = vadd.f32 %v1789, %v1792
        %s1794 = sld [smem:[#allocation21 + $0x8f]]
        %v1795 = vstv %s1794
        %v1796 = vadd.f32 %v1793, %v1795
        %v1797 = vmax.f32 %v1796, 0.0
        %s1798 = sld [smem:[#allocation22 + $0x8f]]
        %v1799 = vstv %s1798
        %v1800 = vmul.f32 %v1797, %v1799
        %v1801 = vadd.f32 %v1786, %v1800
        %s1802 = sld [smem:[#allocation24 + $0x1]]
        %v1803 = vstv %s1802
        %v1804 = vadd.f32 %v1801, %v1803
        %v1805 = vsel %vm1393, %v1804, -inf
        %1806 = vmax.xlane.f32.xlu0 %v1805
        %v1807 = vpop.xlane.xlu0 %1806
        %v1808 = vsub.f32 %v1804, %v1807
        %v1809 = vmul.f32 %v1808, 1.442695
        %v1810 = vpow.pop %v1809
        %v1811 = vsel %vm1393, %v1810, 0.0
        %1812 = vadd.xlane.f32.xlu0 %v1811
        %v1813 = vpop.xlane.xlu0 %1812
        %1816 = vrot.lane.b32.xlu0 %v1059, 120
        %v1817 = vpop.permute.xlu0 %1816
        %1818 = vrot.lane.b32.xlu0 %v1062, 120
        %v1819 = vpop.permute.xlu0 %1818
        %v1823 = vsel %vm1393, %v1810, 0
        %1825 = vmatprep.subr.mxu0 0.0
        %1826 = vmatpush1.msra.mxu0 %v1817
        %1827 = vmatprep.subr.mxu0 0.0
        %1828 = vmatpush1.msra.mxu0 %v1819
        %1829 = vmatprep.subr.mxu0 0.0
        %1830 = vmatpush1.msra.mxu0 0.0
        %1831 = vmatprep.subr.mxu0 0.0
        %1832 = vmatpush1.msra.mxu0 0.0
        %1833 = vmatprep.subr.mxu0 0.0
        %1834 = vmatpush1.msra.mxu0 0.0
        %1835 = vmatprep.subr.mxu0 0.0
        %1836 = vmatpush1.msra.mxu0 0.0
        %1837 = vmatprep.subr.mxu0 0.0
        %1838 = vmatpush1.msra.mxu0 0.0
        %1839 = vmatprep.subr.mxu0 0.0
        %1840 = vmatpush1.msra.mxu0 0.0
        %1841 = vmatprep.subr.mxu0 0.0
        %1842 = vmatpush1.msra.mxu0 0.0
        %1843 = vmatprep.subr.mxu0 0.0
        %1844 = vmatpush1.msra.mxu0 0.0
        %1845 = vmatprep.subr.mxu0 0.0
        %1846 = vmatpush1.msra.mxu0 0.0
        %1847 = vmatprep.subr.mxu0 0.0
        %1848 = vmatpush1.msra.mxu0 0.0
        %1849 = vmatprep.subr.mxu0 0.0
        %1850 = vmatpush1.msra.mxu0 0.0
        %1851 = vmatprep.subr.mxu0 0.0
        %1852 = vmatpush1.msra.mxu0 0.0
        %1853 = vmatprep.subr.mxu0 0.0
        %1854 = vmatpush1.msra.mxu0 0.0
        %1855 = vmatprep.subr.mxu0 0.0
        %1856 = vmatpush1.msra.mxu0 0.0
        %1857 = vmatprep.subr.mxu0 0.0
        %1858 = vmatpush1.msra.mxu0 0.0
        %1859 = vmatprep.subr.mxu0 0.0
        %1860 = vmatpush1.msra.mxu0 0.0
        %1861 = vmatprep.subr.mxu0 0.0
        %1862 = vmatpush1.msra.mxu0 0.0
        %1863 = vmatprep.subr.mxu0 0.0
        %1864 = vmatpush1.msra.mxu0 0.0
        %1865 = vmatprep.subr.mxu0 0.0
        %1866 = vmatpush1.msra.mxu0 0.0
        %1867 = vmatprep.subr.mxu0 0.0
        %1868 = vmatpush1.msra.mxu0 0.0
        %1869 = vmatprep.subr.mxu0 0.0
        %1870 = vmatpush1.msra.mxu0 0.0
        %1871 = vmatprep.subr.mxu0 0.0
        %1872 = vmatpush1.msra.mxu0 0.0
        %1873 = vmatprep.subr.mxu0 0.0
        %1874 = vmatpush1.msra.mxu0 0.0
        %1875 = vmatprep.subr.mxu0 0.0
        %1876 = vmatpush1.msra.mxu0 0.0
        %1877 = vmatprep.subr.mxu0 0.0
        %1878 = vmatpush1.msra.mxu0 0.0
        %1879 = vmatprep.subr.mxu0 0.0
        %1880 = vmatpush1.msra.mxu0 0.0
        %1881 = vmatprep.subr.mxu0 0.0
        %1882 = vmatpush1.msra.mxu0 0.0
        %1883 = vmatprep.subr.mxu0 0.0
        %1884 = vmatpush1.msra.mxu0 0.0
        %1885 = vmatprep.subr.mxu0 0.0
        %1886 = vmatpush1.msra.mxu0 0.0
        %1887 = vmatprep.subr.mxu0 0.0
        %1888 = vmatpush1.msra.mxu0 0.0
        %1889 = vmatprep.mubr.f32.mxu0 0.0
        %1890 = vmatmul.mubr.f32.gmra.mrb[0].mxu0 %v1823
        %v1891 = vpop.f32.mrb[0].mxu0
        %v1892 = vadd.f32 0.0, %v1891
        %v1893 = vpop.f32.mrb[0].mxu0
        %1894 = vdwg.mxu0
        %v1895 = vrcp.pop %v1813
        %v1896 = vmul.f32 %v1892, %v1895
        %v1897 = vpack.c.bf16 %v1896, %v1896
        %v1899 = vsel %vm1069, %v1897, 0
        %vm1901 = vcmask 1043456
        %v1903 = vsel %vm1901, %v1066, 0
        %1905 = vmatprep.subr.bf16.mxu0 0
        %1906 = vmatpush1.bf16.msra.mxu0 %v1903
        %1907 = vmatprep.subr.bf16.mxu0 0
        %1908 = vmatpush1.bf16.msra.mxu0 0
        %1909 = vmatprep.subr.bf16.mxu0 0
        %1910 = vmatpush1.bf16.msra.mxu0 0
        %1911 = vmatprep.subr.bf16.mxu0 0
        %1912 = vmatpush1.bf16.msra.mxu0 0
        %1913 = vmatprep.subr.bf16.mxu0 0
        %1914 = vmatpush1.bf16.msra.mxu0 0
        %1915 = vmatprep.subr.bf16.mxu0 0
        %1916 = vmatpush1.bf16.msra.mxu0 0
        %1917 = vmatprep.subr.bf16.mxu0 0
        %1918 = vmatpush1.bf16.msra.mxu0 0
        %1919 = vmatprep.subr.bf16.mxu0 0
        %1920 = vmatpush1.bf16.msra.mxu0 0
        %1921 = vmatprep.subr.bf16.mxu0 0
        %1922 = vmatpush1.bf16.msra.mxu0 0
        %1923 = vmatprep.subr.bf16.mxu0 0
        %1924 = vmatpush1.bf16.msra.mxu0 0
        %1925 = vmatprep.subr.bf16.mxu0 0
        %1926 = vmatpush1.bf16.msra.mxu0 0
        %1927 = vmatprep.subr.bf16.mxu0 0
        %1928 = vmatpush1.bf16.msra.mxu0 0
        %1929 = vmatprep.subr.bf16.mxu0 0
        %1930 = vmatpush1.bf16.msra.mxu0 0
        %1931 = vmatprep.subr.bf16.mxu0 0
        %1932 = vmatpush1.bf16.msra.mxu0 0
        %1933 = vmatprep.subr.bf16.mxu0 0
        %1934 = vmatpush1.bf16.msra.mxu0 0
        %1935 = vmatprep.subr.bf16.mxu0 0
        %1936 = vmatpush1.bf16.msra.mxu0 0
        %1937 = vmatprep.mubr.bf16.mxu0 0
        %1938 = vmatmul.mubr.bf16.gmra.mrb[0].mxu0 %v1899
        %v1939 = vpop.f32.mrb[0].mxu0
        %v1940 = vadd.f32 0.0, %v1939
        %v1941 = vpop.f32.mrb[0].mxu0
        %v1942 = vpop.f32.mrb[0].mxu0
        %v1943 = vpop.f32.mrb[0].mxu0
        %1944 = vdwg.mxu0
        %v1946 = vsel %vm1069, %v1478, 0
        %v1949 = vsel %vm1901, %v1065, 0
        %1951 = vmatprep.subr.bf16.mxu0 0
        %1952 = vmatpush1.bf16.msra.mxu0 %v1949
        %1953 = vmatprep.subr.bf16.mxu0 0
        %1954 = vmatpush1.bf16.msra.mxu0 0
        %1955 = vmatprep.subr.bf16.mxu0 0
        %1956 = vmatpush1.bf16.msra.mxu0 0
        %1957 = vmatprep.subr.bf16.mxu0 0
        %1958 = vmatpush1.bf16.msra.mxu0 0
        %1959 = vmatprep.subr.bf16.mxu0 0
        %1960 = vmatpush1.bf16.msra.mxu0 0
        %1961 = vmatprep.subr.bf16.mxu0 0
        %1962 = vmatpush1.bf16.msra.mxu0 0
        %1963 = vmatprep.subr.bf16.mxu0 0
        %1964 = vmatpush1.bf16.msra.mxu0 0
        %1965 = vmatprep.subr.bf16.mxu0 0
        %1966 = vmatpush1.bf16.msra.mxu0 0
        %1967 = vmatprep.subr.bf16.mxu0 0
        %1968 = vmatpush1.bf16.msra.mxu0 0
        %1969 = vmatprep.subr.bf16.mxu0 0
        %1970 = vmatpush1.bf16.msra.mxu0 0
        %1971 = vmatprep.subr.bf16.mxu0 0
        %1972 = vmatpush1.bf16.msra.mxu0 0
        %1973 = vmatprep.subr.bf16.mxu0 0
        %1974 = vmatpush1.bf16.msra.mxu0 0
        %1975 = vmatprep.subr.bf16.mxu0 0
        %1976 = vmatpush1.bf16.msra.mxu0 0
        %1977 = vmatprep.subr.bf16.mxu0 0
        %1978 = vmatpush1.bf16.msra.mxu0 0
        %1979 = vmatprep.subr.bf16.mxu0 0
        %1980 = vmatpush1.bf16.msra.mxu0 0
        %1981 = vmatprep.subr.bf16.mxu0 0
        %1982 = vmatpush1.bf16.msra.mxu0 0
        %1983 = vmatprep.mubr.bf16.mxu0 0
        %1984 = vmatmul.mubr.bf16.gmra.mrb[0].mxu0 %v1946
        %v1985 = vpop.f32.mrb[0].mxu0
        %v1986 = vadd.f32 %v1940, %v1985
        %v1987 = vpop.f32.mrb[0].mxu0
        %v1988 = vpop.f32.mrb[0].mxu0
        %v1989 = vpop.f32.mrb[0].mxu0
        %1990 = vdwg.mxu0
        %1991 = vrot.lane.b32.xlu0 %v943, 112
        %v1992 = vpop.permute.xlu0 %1991
        %1993 = vrot.lane.b32.xlu0 %v1002, 112
        %v1994 = vpop.permute.xlu0 %1993
        %1995 = vrot.lane.b32.xlu0 %v1005, 112
        %v1996 = vpop.permute.xlu0 %1995
        %v1997 = vsel %vm1069, %v1992, 0
        %v1999 = vsel %vm1069, %v1994, 0
        %v2001 = vsel %vm1069, %v1996, 0
        %2003 = vmatprep.subr.mxu0 0.0
        %2004 = vmatpush1.xpose.msra.mxu0 %v1999
        %2005 = vmatprep.subr.mxu0 0.0
        %2006 = vmatpush1.xpose.msra.mxu0 %v2001
        %2007 = vmatprep.subr.mxu0 0.0
        %2008 = vmatpush1.xpose.msra.mxu0 0.0
        %2009 = vmatprep.subr.mxu0 0.0
        %2010 = vmatpush1.xpose.msra.mxu0 0.0
        %2011 = vmatprep.subr.mxu0 0.0
        %2012 = vmatpush1.xpose.msra.mxu0 0.0
        %2013 = vmatprep.subr.mxu0 0.0
        %2014 = vmatpush1.xpose.msra.mxu0 0.0
        %2015 = vmatprep.subr.mxu0 0.0
        %2016 = vmatpush1.xpose.msra.mxu0 0.0
        %2017 = vmatprep.subr.mxu0 0.0
        %2018 = vmatpush1.xpose.msra.mxu0 0.0
        %2019 = vmatprep.subr.mxu0 0.0
        %2020 = vmatpush1.xpose.msra.mxu0 0.0
        %2021 = vmatprep.subr.mxu0 0.0
        %2022 = vmatpush1.xpose.msra.mxu0 0.0
        %2023 = vmatprep.subr.mxu0 0.0
        %2024 = vmatpush1.xpose.msra.mxu0 0.0
        %2025 = vmatprep.subr.mxu0 0.0
        %2026 = vmatpush1.xpose.msra.mxu0 0.0
        %2027 = vmatprep.subr.mxu0 0.0
        %2028 = vmatpush1.xpose.msra.mxu0 0.0
        %2029 = vmatprep.subr.mxu0 0.0
        %2030 = vmatpush1.xpose.msra.mxu0 0.0
        %2031 = vmatprep.subr.mxu0 0.0
        %2032 = vmatpush1.xpose.msra.mxu0 0.0
        %2033 = vmatprep.subr.mxu0 0.0
        %2034 = vmatpush1.xpose.msra.mxu0 0.0
        %2035 = vmatprep.subr.mxu0 0.0
        %2036 = vmatpush1.xpose.msra.mxu0 0.0
        %2037 = vmatprep.subr.mxu0 0.0
        %2038 = vmatpush1.xpose.msra.mxu0 0.0
        %2039 = vmatprep.subr.mxu0 0.0
        %2040 = vmatpush1.xpose.msra.mxu0 0.0
        %2041 = vmatprep.subr.mxu0 0.0
        %2042 = vmatpush1.xpose.msra.mxu0 0.0
        %2043 = vmatprep.subr.mxu0 0.0
        %2044 = vmatpush1.xpose.msra.mxu0 0.0
        %2045 = vmatprep.subr.mxu0 0.0
        %2046 = vmatpush1.xpose.msra.mxu0 0.0
        %2047 = vmatprep.subr.mxu0 0.0
        %2048 = vmatpush1.xpose.msra.mxu0 0.0
        %2049 = vmatprep.subr.mxu0 0.0
        %2050 = vmatpush1.xpose.msra.mxu0 0.0
        %2051 = vmatprep.subr.mxu0 0.0
        %2052 = vmatpush1.xpose.msra.mxu0 0.0
        %2053 = vmatprep.subr.mxu0 0.0
        %2054 = vmatpush1.xpose.msra.mxu0 0.0
        %2055 = vmatprep.subr.mxu0 0.0
        %2056 = vmatpush1.xpose.msra.mxu0 0.0
        %2057 = vmatprep.subr.mxu0 0.0
        %2058 = vmatpush1.xpose.msra.mxu0 0.0
        %2059 = vmatprep.subr.mxu0 0.0
        %2060 = vmatpush1.xpose.msra.mxu0 0.0
        %2061 = vmatprep.subr.mxu0 0.0
        %2062 = vmatpush1.xpose.msra.mxu0 0.0
        %2063 = vmatprep.subr.mxu0 0.0
        %2064 = vmatpush1.xpose.msra.mxu0 0.0
        %2065 = vmatprep.subr.mxu0 0.0
        %2066 = vmatpush1.xpose.msra.mxu0 0.0
        %2067 = vmatprep.mubr.f32.mxu0 0.0
        %2068 = vmatmul.mubr.f32.gmra.mrb[0].mxu0 %v1997
        %v2069 = vpop.f32.mrb[0].mxu0
        %v2070 = vadd.f32 0.0, %v2069
        %v2071 = vpop.f32.mrb[0].mxu0
        %2072 = vdwg.mxu0
        %v2073 = vmul.f32 %v2070, 0.35355338
        %s2074 = sld [smem:[#allocation18 + $0x100]]
        %v2075 = vstv %s2074
        %v2076 = vmul.f32 %v2073, %v2075
        %s2077 = sld [smem:[#allocation19 + $0x100]]
        %v2078 = vstv %s2077
        %v2079 = vmul.f32 %v885, %v2078
        %v2080 = vadd.f32 %v2076, %v2079
        %s2081 = sld [smem:[#allocation21 + $0x100]]
        %v2082 = vstv %s2081
        %v2083 = vadd.f32 %v2080, %v2082
        %v2084 = vmax.f32 %v2083, 0.0
        %s2085 = sld [smem:[#allocation22 + $0x100]]
        %v2086 = vstv %s2085
        %v2087 = vmul.f32 %v2084, %v2086
        %v2088 = vadd.f32 %v2087, 0.0
        %s2089 = sld [smem:[#allocation18 + $0x101]]
        %v2090 = vstv %s2089
        %v2091 = vmul.f32 %v2073, %v2090
        %s2092 = sld [smem:[#allocation19 + $0x101]]
        %v2093 = vstv %s2092
        %v2094 = vmul.f32 %v885, %v2093
        %v2095 = vadd.f32 %v2091, %v2094
        %s2096 = sld [smem:[#allocation21 + $0x101]]
        %v2097 = vstv %s2096
        %v2098 = vadd.f32 %v2095, %v2097
        %v2099 = vmax.f32 %v2098, 0.0
        %s2100 = sld [smem:[#allocation22 + $0x101]]
        %v2101 = vstv %s2100
        %v2102 = vmul.f32 %v2099, %v2101
        %v2103 = vadd.f32 %v2088, %v2102
        %s2104 = sld [smem:[#allocation18 + $0x102]]
        %v2105 = vstv %s2104
        %v2106 = vmul.f32 %v2073, %v2105
        %s2107 = sld [smem:[#allocation19 + $0x102]]
        %v2108 = vstv %s2107
        %v2109 = vmul.f32 %v885, %v2108
        %v2110 = vadd.f32 %v2106, %v2109
        %s2111 = sld [smem:[#allocation21 + $0x102]]
        %v2112 = vstv %s2111
        %v2113 = vadd.f32 %v2110, %v2112
        %v2114 = vmax.f32 %v2113, 0.0
        %s2115 = sld [smem:[#allocation22 + $0x102]]
        %v2116 = vstv %s2115
        %v2117 = vmul.f32 %v2114, %v2116
        %v2118 = vadd.f32 %v2103, %v2117
        %s2119 = sld [smem:[#allocation18 + $0x103]]
        %v2120 = vstv %s2119
        %v2121 = vmul.f32 %v2073, %v2120
        %s2122 = sld [smem:[#allocation19 + $0x103]]
        %v2123 = vstv %s2122
        %v2124 = vmul.f32 %v885, %v2123
        %v2125 = vadd.f32 %v2121, %v2124
        %s2126 = sld [smem:[#allocation21 + $0x103]]
        %v2127 = vstv %s2126
        %v2128 = vadd.f32 %v2125, %v2127
        %v2129 = vmax.f32 %v2128, 0.0
        %s2130 = sld [smem:[#allocation22 + $0x103]]
        %v2131 = vstv %s2130
        %v2132 = vmul.f32 %v2129, %v2131
        %v2133 = vadd.f32 %v2118, %v2132
        %s2134 = sld [smem:[#allocation18 + $0x104]]
        %v2135 = vstv %s2134
        %v2136 = vmul.f32 %v2073, %v2135
        %s2137 = sld [smem:[#allocation19 + $0x104]]
        %v2138 = vstv %s2137
        %v2139 = vmul.f32 %v885, %v2138
        %v2140 = vadd.f32 %v2136, %v2139
        %s2141 = sld [smem:[#allocation21 + $0x104]]
        %v2142 = vstv %s2141
        %v2143 = vadd.f32 %v2140, %v2142
        %v2144 = vmax.f32 %v2143, 0.0
        %s2145 = sld [smem:[#allocation22 + $0x104]]
        %v2146 = vstv %s2145
        %v2147 = vmul.f32 %v2144, %v2146
        %v2148 = vadd.f32 %v2133, %v2147
        %s2149 = sld [smem:[#allocation18 + $0x105]]
        %v2150 = vstv %s2149
        %v2151 = vmul.f32 %v2073, %v2150
        %s2152 = sld [smem:[#allocation19 + $0x105]]
        %v2153 = vstv %s2152
        %v2154 = vmul.f32 %v885, %v2153
        %v2155 = vadd.f32 %v2151, %v2154
        %s2156 = sld [smem:[#allocation21 + $0x105]]
        %v2157 = vstv %s2156
        %v2158 = vadd.f32 %v2155, %v2157
        %v2159 = vmax.f32 %v2158, 0.0
        %s2160 = sld [smem:[#allocation22 + $0x105]]
        %v2161 = vstv %s2160
        %v2162 = vmul.f32 %v2159, %v2161
        %v2163 = vadd.f32 %v2148, %v2162
        %s2164 = sld [smem:[#allocation18 + $0x106]]
        %v2165 = vstv %s2164
        %v2166 = vmul.f32 %v2073, %v2165
        %s2167 = sld [smem:[#allocation19 + $0x106]]
        %v2168 = vstv %s2167
        %v2169 = vmul.f32 %v885, %v2168
        %v2170 = vadd.f32 %v2166, %v2169
        %s2171 = sld [smem:[#allocation21 + $0x106]]
        %v2172 = vstv %s2171
        %v2173 = vadd.f32 %v2170, %v2172
        %v2174 = vmax.f32 %v2173, 0.0
        %s2175 = sld [smem:[#allocation22 + $0x106]]
        %v2176 = vstv %s2175
        %v2177 = vmul.f32 %v2174, %v2176
        %v2178 = vadd.f32 %v2163, %v2177
        %s2179 = sld [smem:[#allocation18 + $0x107]]
        %v2180 = vstv %s2179
        %v2181 = vmul.f32 %v2073, %v2180
        %s2182 = sld [smem:[#allocation19 + $0x107]]
        %v2183 = vstv %s2182
        %v2184 = vmul.f32 %v885, %v2183
        %v2185 = vadd.f32 %v2181, %v2184
        %s2186 = sld [smem:[#allocation21 + $0x107]]
        %v2187 = vstv %s2186
        %v2188 = vadd.f32 %v2185, %v2187
        %v2189 = vmax.f32 %v2188, 0.0
        %s2190 = sld [smem:[#allocation22 + $0x107]]
        %v2191 = vstv %s2190
        %v2192 = vmul.f32 %v2189, %v2191
        %v2193 = vadd.f32 %v2178, %v2192
        %s2194 = sld [smem:[#allocation18 + $0x108]]
        %v2195 = vstv %s2194
        %v2196 = vmul.f32 %v2073, %v2195
        %s2197 = sld [smem:[#allocation19 + $0x108]]
        %v2198 = vstv %s2197
        %v2199 = vmul.f32 %v885, %v2198
        %v2200 = vadd.f32 %v2196, %v2199
        %s2201 = sld [smem:[#allocation21 + $0x108]]
        %v2202 = vstv %s2201
        %v2203 = vadd.f32 %v2200, %v2202
        %v2204 = vmax.f32 %v2203, 0.0
        %s2205 = sld [smem:[#allocation22 + $0x108]]
        %v2206 = vstv %s2205
        %v2207 = vmul.f32 %v2204, %v2206
        %v2208 = vadd.f32 %v2193, %v2207
        %s2209 = sld [smem:[#allocation18 + $0x109]]
        %v2210 = vstv %s2209
        %v2211 = vmul.f32 %v2073, %v2210
        %s2212 = sld [smem:[#allocation19 + $0x109]]
        %v2213 = vstv %s2212
        %v2214 = vmul.f32 %v885, %v2213
        %v2215 = vadd.f32 %v2211, %v2214
        %s2216 = sld [smem:[#allocation21 + $0x109]]
        %v2217 = vstv %s2216
        %v2218 = vadd.f32 %v2215, %v2217
        %v2219 = vmax.f32 %v2218, 0.0
        %s2220 = sld [smem:[#allocation22 + $0x109]]
        %v2221 = vstv %s2220
        %v2222 = vmul.f32 %v2219, %v2221
        %v2223 = vadd.f32 %v2208, %v2222
        %s2224 = sld [smem:[#allocation18 + $0x10a]]
        %v2225 = vstv %s2224
        %v2226 = vmul.f32 %v2073, %v2225
        %s2227 = sld [smem:[#allocation19 + $0x10a]]
        %v2228 = vstv %s2227
        %v2229 = vmul.f32 %v885, %v2228
        %v2230 = vadd.f32 %v2226, %v2229
        %s2231 = sld [smem:[#allocation21 + $0x10a]]
        %v2232 = vstv %s2231
        %v2233 = vadd.f32 %v2230, %v2232
        %v2234 = vmax.f32 %v2233, 0.0
        %s2235 = sld [smem:[#allocation22 + $0x10a]]
        %v2236 = vstv %s2235
        %v2237 = vmul.f32 %v2234, %v2236
        %v2238 = vadd.f32 %v2223, %v2237
        %s2239 = sld [smem:[#allocation18 + $0x10b]]
        %v2240 = vstv %s2239
        %v2241 = vmul.f32 %v2073, %v2240
        %s2242 = sld [smem:[#allocation19 + $0x10b]]
        %v2243 = vstv %s2242
        %v2244 = vmul.f32 %v885, %v2243
        %v2245 = vadd.f32 %v2241, %v2244
        %s2246 = sld [smem:[#allocation21 + $0x10b]]
        %v2247 = vstv %s2246
        %v2248 = vadd.f32 %v2245, %v2247
        %v2249 = vmax.f32 %v2248, 0.0
        %s2250 = sld [smem:[#allocation22 + $0x10b]]
        %v2251 = vstv %s2250
        %v2252 = vmul.f32 %v2249, %v2251
        %v2253 = vadd.f32 %v2238, %v2252
        %s2254 = sld [smem:[#allocation18 + $0x10c]]
        %v2255 = vstv %s2254
        %v2256 = vmul.f32 %v2073, %v2255
        %s2257 = sld [smem:[#allocation19 + $0x10c]]
        %v2258 = vstv %s2257
        %v2259 = vmul.f32 %v885, %v2258
        %v2260 = vadd.f32 %v2256, %v2259
        %s2261 = sld [smem:[#allocation21 + $0x10c]]
        %v2262 = vstv %s2261
        %v2263 = vadd.f32 %v2260, %v2262
        %v2264 = vmax.f32 %v2263, 0.0
        %s2265 = sld [smem:[#allocation22 + $0x10c]]
        %v2266 = vstv %s2265
        %v2267 = vmul.f32 %v2264, %v2266
        %v2268 = vadd.f32 %v2253, %v2267
        %s2269 = sld [smem:[#allocation18 + $0x10d]]
        %v2270 = vstv %s2269
        %v2271 = vmul.f32 %v2073, %v2270
        %s2272 = sld [smem:[#allocation19 + $0x10d]]
        %v2273 = vstv %s2272
        %v2274 = vmul.f32 %v885, %v2273
        %v2275 = vadd.f32 %v2271, %v2274
        %s2276 = sld [smem:[#allocation21 + $0x10d]]
        %v2277 = vstv %s2276
        %v2278 = vadd.f32 %v2275, %v2277
        %v2279 = vmax.f32 %v2278, 0.0
        %s2280 = sld [smem:[#allocation22 + $0x10d]]
        %v2281 = vstv %s2280
        %v2282 = vmul.f32 %v2279, %v2281
        %v2283 = vadd.f32 %v2268, %v2282
        %s2284 = sld [smem:[#allocation18 + $0x10e]]
        %v2285 = vstv %s2284
        %v2286 = vmul.f32 %v2073, %v2285
        %s2287 = sld [smem:[#allocation19 + $0x10e]]
        %v2288 = vstv %s2287
        %v2289 = vmul.f32 %v885, %v2288
        %v2290 = vadd.f32 %v2286, %v2289
        %s2291 = sld [smem:[#allocation21 + $0x10e]]
        %v2292 = vstv %s2291
        %v2293 = vadd.f32 %v2290, %v2292
        %v2294 = vmax.f32 %v2293, 0.0
        %s2295 = sld [smem:[#allocation22 + $0x10e]]
        %v2296 = vstv %s2295
        %v2297 = vmul.f32 %v2294, %v2296
        %v2298 = vadd.f32 %v2283, %v2297
        %s2299 = sld [smem:[#allocation18 + $0x10f]]
        %v2300 = vstv %s2299
        %v2301 = vmul.f32 %v2073, %v2300
        %s2302 = sld [smem:[#allocation19 + $0x10f]]
        %v2303 = vstv %s2302
        %v2304 = vmul.f32 %v885, %v2303
        %v2305 = vadd.f32 %v2301, %v2304
        %s2306 = sld [smem:[#allocation21 + $0x10f]]
        %v2307 = vstv %s2306
        %v2308 = vadd.f32 %v2305, %v2307
        %v2309 = vmax.f32 %v2308, 0.0
        %s2310 = sld [smem:[#allocation22 + $0x10f]]
        %v2311 = vstv %s2310
        %v2312 = vmul.f32 %v2309, %v2311
        %v2313 = vadd.f32 %v2298, %v2312
        %s2314 = sld [smem:[#allocation24 + $0x2]]
        %v2315 = vstv %s2314
        %v2316 = vadd.f32 %v2313, %v2315
        %v2317 = vsel %vm1393, %v2316, -inf
        %2318 = vmax.xlane.f32.xlu0 %v2317
        %v2319 = vpop.xlane.xlu0 %2318
        %v2320 = vsub.f32 %v2316, %v2319
        %v2321 = vmul.f32 %v2320, 1.442695
        %v2322 = vpow.pop %v2321
        %v2323 = vsel %vm1393, %v2322, 0.0
        %2324 = vadd.xlane.f32.xlu0 %v2323
        %v2325 = vpop.xlane.xlu0 %2324
        %2326 = vrot.lane.b32.xlu0 %v1059, 112
        %v2327 = vpop.permute.xlu0 %2326
        %2328 = vrot.lane.b32.xlu0 %v1062, 112
        %v2329 = vpop.permute.xlu0 %2328
        %v2333 = vsel %vm1393, %v2322, 0
        %2335 = vmatprep.subr.mxu0 0.0
        %2336 = vmatpush1.msra.mxu0 %v2327
        %2337 = vmatprep.subr.mxu0 0.0
        %2338 = vmatpush1.msra.mxu0 %v2329
        %2339 = vmatprep.subr.mxu0 0.0
        %2340 = vmatpush1.msra.mxu0 0.0
        %2341 = vmatprep.subr.mxu0 0.0
        %2342 = vmatpush1.msra.mxu0 0.0
        %2343 = vmatprep.subr.mxu0 0.0
        %2344 = vmatpush1.msra.mxu0 0.0
        %2345 = vmatprep.subr.mxu0 0.0
        %2346 = vmatpush1.msra.mxu0 0.0
        %2347 = vmatprep.subr.mxu0 0.0
        %2348 = vmatpush1.msra.mxu0 0.0
        %2349 = vmatprep.subr.mxu0 0.0
        %2350 = vmatpush1.msra.mxu0 0.0
        %2351 = vmatprep.subr.mxu0 0.0
        %2352 = vmatpush1.msra.mxu0 0.0
        %2353 = vmatprep.subr.mxu0 0.0
        %2354 = vmatpush1.msra.mxu0 0.0
        %2355 = vmatprep.subr.mxu0 0.0
        %2356 = vmatpush1.msra.mxu0 0.0
        %2357 = vmatprep.subr.mxu0 0.0
        %2358 = vmatpush1.msra.mxu0 0.0
        %2359 = vmatprep.subr.mxu0 0.0
        %2360 = vmatpush1.msra.mxu0 0.0
        %2361 = vmatprep.subr.mxu0 0.0
        %2362 = vmatpush1.msra.mxu0 0.0
        %2363 = vmatprep.subr.mxu0 0.0
        %2364 = vmatpush1.msra.mxu0 0.0
        %2365 = vmatprep.subr.mxu0 0.0
        %2366 = vmatpush1.msra.mxu0 0.0
        %2367 = vmatprep.subr.mxu0 0.0
        %2368 = vmatpush1.msra.mxu0 0.0
        %2369 = vmatprep.subr.mxu0 0.0
        %2370 = vmatpush1.msra.mxu0 0.0
        %2371 = vmatprep.subr.mxu0 0.0
        %2372 = vmatpush1.msra.mxu0 0.0
        %2373 = vmatprep.subr.mxu0 0.0
        %2374 = vmatpush1.msra.mxu0 0.0
        %2375 = vmatprep.subr.mxu0 0.0
        %2376 = vmatpush1.msra.mxu0 0.0
        %2377 = vmatprep.subr.mxu0 0.0
        %2378 = vmatpush1.msra.mxu0 0.0
        %2379 = vmatprep.subr.mxu0 0.0
        %2380 = vmatpush1.msra.mxu0 0.0
        %2381 = vmatprep.subr.mxu0 0.0
        %2382 = vmatpush1.msra.mxu0 0.0
        %2383 = vmatprep.subr.mxu0 0.0
        %2384 = vmatpush1.msra.mxu0 0.0
        %2385 = vmatprep.subr.mxu0 0.0
        %2386 = vmatpush1.msra.mxu0 0.0
        %2387 = vmatprep.subr.mxu0 0.0
        %2388 = vmatpush1.msra.mxu0 0.0
        %2389 = vmatprep.subr.mxu0 0.0
        %2390 = vmatpush1.msra.mxu0 0.0
        %2391 = vmatprep.subr.mxu0 0.0
        %2392 = vmatpush1.msra.mxu0 0.0
        %2393 = vmatprep.subr.mxu0 0.0
        %2394 = vmatpush1.msra.mxu0 0.0
        %2395 = vmatprep.subr.mxu0 0.0
        %2396 = vmatpush1.msra.mxu0 0.0
        %2397 = vmatprep.subr.mxu0 0.0
        %2398 = vmatpush1.msra.mxu0 0.0
        %2399 = vmatprep.mubr.f32.mxu0 0.0
        %2400 = vmatmul.mubr.f32.gmra.mrb[0].mxu0 %v2333
        %v2401 = vpop.f32.mrb[0].mxu0
        %v2402 = vadd.f32 0.0, %v2401
        %v2403 = vpop.f32.mrb[0].mxu0
        %2404 = vdwg.mxu0
        %v2405 = vrcp.pop %v2325
        %v2406 = vmul.f32 %v2402, %v2405
        %v2407 = vpack.c.bf16 %v2406, %v2406
        %v2409 = vsel %vm1069, %v2407, 0
        %v2412 = vsel %vm1901, %v1067, 0
        %2414 = vmatprep.subr.bf16.mxu0 0
        %2415 = vmatpush1.bf16.msra.mxu0 %v2412
        %2416 = vmatprep.subr.bf16.mxu0 0
        %2417 = vmatpush1.bf16.msra.mxu0 0
        %2418 = vmatprep.subr.bf16.mxu0 0
        %2419 = vmatpush1.bf16.msra.mxu0 0
        %2420 = vmatprep.subr.bf16.mxu0 0
        %2421 = vmatpush1.bf16.msra.mxu0 0
        %2422 = vmatprep.subr.bf16.mxu0 0
        %2423 = vmatpush1.bf16.msra.mxu0 0
        %2424 = vmatprep.subr.bf16.mxu0 0
        %2425 = vmatpush1.bf16.msra.mxu0 0
        %2426 = vmatprep.subr.bf16.mxu0 0
        %2427 = vmatpush1.bf16.msra.mxu0 0
        %2428 = vmatprep.subr.bf16.mxu0 0
        %2429 = vmatpush1.bf16.msra.mxu0 0
        %2430 = vmatprep.subr.bf16.mxu0 0
        %2431 = vmatpush1.bf16.msra.mxu0 0
        %2432 = vmatprep.subr.bf16.mxu0 0
        %2433 = vmatpush1.bf16.msra.mxu0 0
        %2434 = vmatprep.subr.bf16.mxu0 0
        %2435 = vmatpush1.bf16.msra.mxu0 0
        %2436 = vmatprep.subr.bf16.mxu0 0
        %2437 = vmatpush1.bf16.msra.mxu0 0
        %2438 = vmatprep.subr.bf16.mxu0 0
        %2439 = vmatpush1.bf16.msra.mxu0 0
        %2440 = vmatprep.subr.bf16.mxu0 0
        %2441 = vmatpush1.bf16.msra.mxu0 0
        %2442 = vmatprep.subr.bf16.mxu0 0
        %2443 = vmatpush1.bf16.msra.mxu0 0
        %2444 = vmatprep.subr.bf16.mxu0 0
        %2445 = vmatpush1.bf16.msra.mxu0 0
        %2446 = vmatprep.mubr.bf16.mxu0 0
        %2447 = vmatmul.mubr.bf16.gmra.mrb[0].mxu0 %v2409
        %v2448 = vpop.f32.mrb[0].mxu0
        %v2449 = vadd.f32 0.0, %v2448
        %v2450 = vpop.f32.mrb[0].mxu0
        %v2451 = vpop.f32.mrb[0].mxu0
        %v2452 = vpop.f32.mrb[0].mxu0
        %2453 = vdwg.mxu0
        %v2454 = vadd.f32 %v1986, %v2449
        %2455 = vrot.lane.b32.xlu0 %v943, 104
        %v2456 = vpop.permute.xlu0 %2455
        %2457 = vrot.lane.b32.xlu0 %v1002, 104
        %v2458 = vpop.permute.xlu0 %2457
        %2459 = vrot.lane.b32.xlu0 %v1005, 104
        %v2460 = vpop.permute.xlu0 %2459
        %v2461 = vsel %vm1069, %v2456, 0
        %v2463 = vsel %vm1069, %v2458, 0
        %v2465 = vsel %vm1069, %v2460, 0
        %2467 = vmatprep.subr.mxu0 0.0
        %2468 = vmatpush1.xpose.msra.mxu0 %v2463
        %2469 = vmatprep.subr.mxu0 0.0
        %2470 = vmatpush1.xpose.msra.mxu0 %v2465
        %2471 = vmatprep.subr.mxu0 0.0
        %2472 = vmatpush1.xpose.msra.mxu0 0.0
        %2473 = vmatprep.subr.mxu0 0.0
        %2474 = vmatpush1.xpose.msra.mxu0 0.0
        %2475 = vmatprep.subr.mxu0 0.0
        %2476 = vmatpush1.xpose.msra.mxu0 0.0
        %2477 = vmatprep.subr.mxu0 0.0
        %2478 = vmatpush1.xpose.msra.mxu0 0.0
        %2479 = vmatprep.subr.mxu0 0.0
        %2480 = vmatpush1.xpose.msra.mxu0 0.0
        %2481 = vmatprep.subr.mxu0 0.0
        %2482 = vmatpush1.xpose.msra.mxu0 0.0
        %2483 = vmatprep.subr.mxu0 0.0
        %2484 = vmatpush1.xpose.msra.mxu0 0.0
        %2485 = vmatprep.subr.mxu0 0.0
        %2486 = vmatpush1.xpose.msra.mxu0 0.0
        %2487 = vmatprep.subr.mxu0 0.0
        %2488 = vmatpush1.xpose.msra.mxu0 0.0
        %2489 = vmatprep.subr.mxu0 0.0
        %2490 = vmatpush1.xpose.msra.mxu0 0.0
        %2491 = vmatprep.subr.mxu0 0.0
        %2492 = vmatpush1.xpose.msra.mxu0 0.0
        %2493 = vmatprep.subr.mxu0 0.0
        %2494 = vmatpush1.xpose.msra.mxu0 0.0
        %2495 = vmatprep.subr.mxu0 0.0
        %2496 = vmatpush1.xpose.msra.mxu0 0.0
        %2497 = vmatprep.subr.mxu0 0.0
        %2498 = vmatpush1.xpose.msra.mxu0 0.0
        %2499 = vmatprep.subr.mxu0 0.0
        %2500 = vmatpush1.xpose.msra.mxu0 0.0
        %2501 = vmatprep.subr.mxu0 0.0
        %2502 = vmatpush1.xpose.msra.mxu0 0.0
        %2503 = vmatprep.subr.mxu0 0.0
        %2504 = vmatpush1.xpose.msra.mxu0 0.0
        %2505 = vmatprep.subr.mxu0 0.0
        %2506 = vmatpush1.xpose.msra.mxu0 0.0
        %2507 = vmatprep.subr.mxu0 0.0
        %2508 = vmatpush1.xpose.msra.mxu0 0.0
        %2509 = vmatprep.subr.mxu0 0.0
        %2510 = vmatpush1.xpose.msra.mxu0 0.0
        %2511 = vmatprep.subr.mxu0 0.0
        %2512 = vmatpush1.xpose.msra.mxu0 0.0
        %2513 = vmatprep.subr.mxu0 0.0
        %2514 = vmatpush1.xpose.msra.mxu0 0.0
        %2515 = vmatprep.subr.mxu0 0.0
        %2516 = vmatpush1.xpose.msra.mxu0 0.0
        %2517 = vmatprep.subr.mxu0 0.0
        %2518 = vmatpush1.xpose.msra.mxu0 0.0
        %2519 = vmatprep.subr.mxu0 0.0
        %2520 = vmatpush1.xpose.msra.mxu0 0.0
        %2521 = vmatprep.subr.mxu0 0.0
        %2522 = vmatpush1.xpose.msra.mxu0 0.0
        %2523 = vmatprep.subr.mxu0 0.0
        %2524 = vmatpush1.xpose.msra.mxu0 0.0
        %2525 = vmatprep.subr.mxu0 0.0
        %2526 = vmatpush1.xpose.msra.mxu0 0.0
        %2527 = vmatprep.subr.mxu0 0.0
        %2528 = vmatpush1.xpose.msra.mxu0 0.0
        %2529 = vmatprep.subr.mxu0 0.0
        %2530 = vmatpush1.xpose.msra.mxu0 0.0
        %2531 = vmatprep.mubr.f32.mxu0 0.0
        %2532 = vmatmul.mubr.f32.gmra.mrb[0].mxu0 %v2461
        %v2533 = vpop.f32.mrb[0].mxu0
        %v2534 = vadd.f32 0.0, %v2533
        %v2535 = vpop.f32.mrb[0].mxu0
        %2536 = vdwg.mxu0
        %v2537 = vmul.f32 %v2534, 0.35355338
        %s2538 = sld [smem:[#allocation18 + $0x180]]
        %v2539 = vstv %s2538
        %v2540 = vmul.f32 %v2537, %v2539
        %s2541 = sld [smem:[#allocation19 + $0x180]]
        %v2542 = vstv %s2541
        %v2543 = vmul.f32 %v885, %v2542
        %v2544 = vadd.f32 %v2540, %v2543
        %s2545 = sld [smem:[#allocation21 + $0x180]]
        %v2546 = vstv %s2545
        %v2547 = vadd.f32 %v2544, %v2546
        %v2548 = vmax.f32 %v2547, 0.0
        %s2549 = sld [smem:[#allocation22 + $0x180]]
        %v2550 = vstv %s2549
        %v2551 = vmul.f32 %v2548, %v2550
        %v2552 = vadd.f32 %v2551, 0.0
        %s2553 = sld [smem:[#allocation18 + $0x181]]
        %v2554 = vstv %s2553
        %v2555 = vmul.f32 %v2537, %v2554
        %s2556 = sld [smem:[#allocation19 + $0x181]]
        %v2557 = vstv %s2556
        %v2558 = vmul.f32 %v885, %v2557
        %v2559 = vadd.f32 %v2555, %v2558
        %s2560 = sld [smem:[#allocation21 + $0x181]]
        %v2561 = vstv %s2560
        %v2562 = vadd.f32 %v2559, %v2561
        %v2563 = vmax.f32 %v2562, 0.0
        %s2564 = sld [smem:[#allocation22 + $0x181]]
        %v2565 = vstv %s2564
        %v2566 = vmul.f32 %v2563, %v2565
        %v2567 = vadd.f32 %v2552, %v2566
        %s2568 = sld [smem:[#allocation18 + $0x182]]
        %v2569 = vstv %s2568
        %v2570 = vmul.f32 %v2537, %v2569
        %s2571 = sld [smem:[#allocation19 + $0x182]]
        %v2572 = vstv %s2571
        %v2573 = vmul.f32 %v885, %v2572
        %v2574 = vadd.f32 %v2570, %v2573
        %s2575 = sld [smem:[#allocation21 + $0x182]]
        %v2576 = vstv %s2575
        %v2577 = vadd.f32 %v2574, %v2576
        %v2578 = vmax.f32 %v2577, 0.0
        %s2579 = sld [smem:[#allocation22 + $0x182]]
        %v2580 = vstv %s2579
        %v2581 = vmul.f32 %v2578, %v2580
        %v2582 = vadd.f32 %v2567, %v2581
        %s2583 = sld [smem:[#allocation18 + $0x183]]
        %v2584 = vstv %s2583
        %v2585 = vmul.f32 %v2537, %v2584
        %s2586 = sld [smem:[#allocation19 + $0x183]]
        %v2587 = vstv %s2586
        %v2588 = vmul.f32 %v885, %v2587
        %v2589 = vadd.f32 %v2585, %v2588
        %s2590 = sld [smem:[#allocation21 + $0x183]]
        %v2591 = vstv %s2590
        %v2592 = vadd.f32 %v2589, %v2591
        %v2593 = vmax.f32 %v2592, 0.0
        %s2594 = sld [smem:[#allocation22 + $0x183]]
        %v2595 = vstv %s2594
        %v2596 = vmul.f32 %v2593, %v2595
        %v2597 = vadd.f32 %v2582, %v2596
        %s2598 = sld [smem:[#allocation18 + $0x184]]
        %v2599 = vstv %s2598
        %v2600 = vmul.f32 %v2537, %v2599
        %s2601 = sld [smem:[#allocation19 + $0x184]]
        %v2602 = vstv %s2601
        %v2603 = vmul.f32 %v885, %v2602
        %v2604 = vadd.f32 %v2600, %v2603
        %s2605 = sld [smem:[#allocation21 + $0x184]]
        %v2606 = vstv %s2605
        %v2607 = vadd.f32 %v2604, %v2606
        %v2608 = vmax.f32 %v2607, 0.0
        %s2609 = sld [smem:[#allocation22 + $0x184]]
        %v2610 = vstv %s2609
        %v2611 = vmul.f32 %v2608, %v2610
        %v2612 = vadd.f32 %v2597, %v2611
        %s2613 = sld [smem:[#allocation18 + $0x185]]
        %v2614 = vstv %s2613
        %v2615 = vmul.f32 %v2537, %v2614
        %s2616 = sld [smem:[#allocation19 + $0x185]]
        %v2617 = vstv %s2616
        %v2618 = vmul.f32 %v885, %v2617
        %v2619 = vadd.f32 %v2615, %v2618
        %s2620 = sld [smem:[#allocation21 + $0x185]]
        %v2621 = vstv %s2620
        %v2622 = vadd.f32 %v2619, %v2621
        %v2623 = vmax.f32 %v2622, 0.0
        %s2624 = sld [smem:[#allocation22 + $0x185]]
        %v2625 = vstv %s2624
        %v2626 = vmul.f32 %v2623, %v2625
        %v2627 = vadd.f32 %v2612, %v2626
        %s2628 = sld [smem:[#allocation18 + $0x186]]
        %v2629 = vstv %s2628
        %v2630 = vmul.f32 %v2537, %v2629
        %s2631 = sld [smem:[#allocation19 + $0x186]]
        %v2632 = vstv %s2631
        %v2633 = vmul.f32 %v885, %v2632
        %v2634 = vadd.f32 %v2630, %v2633
        %s2635 = sld [smem:[#allocation21 + $0x186]]
        %v2636 = vstv %s2635
        %v2637 = vadd.f32 %v2634, %v2636
        %v2638 = vmax.f32 %v2637, 0.0
        %s2639 = sld [smem:[#allocation22 + $0x186]]
        %v2640 = vstv %s2639
        %v2641 = vmul.f32 %v2638, %v2640
        %v2642 = vadd.f32 %v2627, %v2641
        %s2643 = sld [smem:[#allocation18 + $0x187]]
        %v2644 = vstv %s2643
        %v2645 = vmul.f32 %v2537, %v2644
        %s2646 = sld [smem:[#allocation19 + $0x187]]
        %v2647 = vstv %s2646
        %v2648 = vmul.f32 %v885, %v2647
        %v2649 = vadd.f32 %v2645, %v2648
        %s2650 = sld [smem:[#allocation21 + $0x187]]
        %v2651 = vstv %s2650
        %v2652 = vadd.f32 %v2649, %v2651
        %v2653 = vmax.f32 %v2652, 0.0
        %s2654 = sld [smem:[#allocation22 + $0x187]]
        %v2655 = vstv %s2654
        %v2656 = vmul.f32 %v2653, %v2655
        %v2657 = vadd.f32 %v2642, %v2656
        %s2658 = sld [smem:[#allocation18 + $0x188]]
        %v2659 = vstv %s2658
        %v2660 = vmul.f32 %v2537, %v2659
        %s2661 = sld [smem:[#allocation19 + $0x188]]
        %v2662 = vstv %s2661
        %v2663 = vmul.f32 %v885, %v2662
        %v2664 = vadd.f32 %v2660, %v2663
        %s2665 = sld [smem:[#allocation21 + $0x188]]
        %v2666 = vstv %s2665
        %v2667 = vadd.f32 %v2664, %v2666
        %v2668 = vmax.f32 %v2667, 0.0
        %s2669 = sld [smem:[#allocation22 + $0x188]]
        %v2670 = vstv %s2669
        %v2671 = vmul.f32 %v2668, %v2670
        %v2672 = vadd.f32 %v2657, %v2671
        %s2673 = sld [smem:[#allocation18 + $0x189]]
        %v2674 = vstv %s2673
        %v2675 = vmul.f32 %v2537, %v2674
        %s2676 = sld [smem:[#allocation19 + $0x189]]
        %v2677 = vstv %s2676
        %v2678 = vmul.f32 %v885, %v2677
        %v2679 = vadd.f32 %v2675, %v2678
        %s2680 = sld [smem:[#allocation21 + $0x189]]
        %v2681 = vstv %s2680
        %v2682 = vadd.f32 %v2679, %v2681
        %v2683 = vmax.f32 %v2682, 0.0
        %s2684 = sld [smem:[#allocation22 + $0x189]]
        %v2685 = vstv %s2684
        %v2686 = vmul.f32 %v2683, %v2685
        %v2687 = vadd.f32 %v2672, %v2686
        %s2688 = sld [smem:[#allocation18 + $0x18a]]
        %v2689 = vstv %s2688
        %v2690 = vmul.f32 %v2537, %v2689
        %s2691 = sld [smem:[#allocation19 + $0x18a]]
        %v2692 = vstv %s2691
        %v2693 = vmul.f32 %v885, %v2692
        %v2694 = vadd.f32 %v2690, %v2693
        %s2695 = sld [smem:[#allocation21 + $0x18a]]
        %v2696 = vstv %s2695
        %v2697 = vadd.f32 %v2694, %v2696
        %v2698 = vmax.f32 %v2697, 0.0
        %s2699 = sld [smem:[#allocation22 + $0x18a]]
        %v2700 = vstv %s2699
        %v2701 = vmul.f32 %v2698, %v2700
        %v2702 = vadd.f32 %v2687, %v2701
        %s2703 = sld [smem:[#allocation18 + $0x18b]]
        %v2704 = vstv %s2703
        %v2705 = vmul.f32 %v2537, %v2704
        %s2706 = sld [smem:[#allocation19 + $0x18b]]
        %v2707 = vstv %s2706
        %v2708 = vmul.f32 %v885, %v2707
        %v2709 = vadd.f32 %v2705, %v2708
        %s2710 = sld [smem:[#allocation21 + $0x18b]]
        %v2711 = vstv %s2710
        %v2712 = vadd.f32 %v2709, %v2711
        %v2713 = vmax.f32 %v2712, 0.0
        %s2714 = sld [smem:[#allocation22 + $0x18b]]
        %v2715 = vstv %s2714
        %v2716 = vmul.f32 %v2713, %v2715
        %v2717 = vadd.f32 %v2702, %v2716
        %s2718 = sld [smem:[#allocation18 + $0x18c]]
        %v2719 = vstv %s2718
        %v2720 = vmul.f32 %v2537, %v2719
        %s2721 = sld [smem:[#allocation19 + $0x18c]]
        %v2722 = vstv %s2721
        %v2723 = vmul.f32 %v885, %v2722
        %v2724 = vadd.f32 %v2720, %v2723
        %s2725 = sld [smem:[#allocation21 + $0x18c]]
        %v2726 = vstv %s2725
        %v2727 = vadd.f32 %v2724, %v2726
        %v2728 = vmax.f32 %v2727, 0.0
        %s2729 = sld [smem:[#allocation22 + $0x18c]]
        %v2730 = vstv %s2729
        %v2731 = vmul.f32 %v2728, %v2730
        %v2732 = vadd.f32 %v2717, %v2731
        %s2733 = sld [smem:[#allocation18 + $0x18d]]
        %v2734 = vstv %s2733
        %v2735 = vmul.f32 %v2537, %v2734
        %s2736 = sld [smem:[#allocation19 + $0x18d]]
        %v2737 = vstv %s2736
        %v2738 = vmul.f32 %v885, %v2737
        %v2739 = vadd.f32 %v2735, %v2738
        %s2740 = sld [smem:[#allocation21 + $0x18d]]
        %v2741 = vstv %s2740
        %v2742 = vadd.f32 %v2739, %v2741
        %v2743 = vmax.f32 %v2742, 0.0
        %s2744 = sld [smem:[#allocation22 + $0x18d]]
        %v2745 = vstv %s2744
        %v2746 = vmul.f32 %v2743, %v2745
        %v2747 = vadd.f32 %v2732, %v2746
        %s2748 = sld [smem:[#allocation18 + $0x18e]]
        %v2749 = vstv %s2748
        %v2750 = vmul.f32 %v2537, %v2749
        %s2751 = sld [smem:[#allocation19 + $0x18e]]
        %v2752 = vstv %s2751
        %v2753 = vmul.f32 %v885, %v2752
        %v2754 = vadd.f32 %v2750, %v2753
        %s2755 = sld [smem:[#allocation21 + $0x18e]]
        %v2756 = vstv %s2755
        %v2757 = vadd.f32 %v2754, %v2756
        %v2758 = vmax.f32 %v2757, 0.0
        %s2759 = sld [smem:[#allocation22 + $0x18e]]
        %v2760 = vstv %s2759
        %v2761 = vmul.f32 %v2758, %v2760
        %v2762 = vadd.f32 %v2747, %v2761
        %s2763 = sld [smem:[#allocation18 + $0x18f]]
        %v2764 = vstv %s2763
        %v2765 = vmul.f32 %v2537, %v2764
        %s2766 = sld [smem:[#allocation19 + $0x18f]]
        %v2767 = vstv %s2766
        %v2768 = vmul.f32 %v885, %v2767
        %v2769 = vadd.f32 %v2765, %v2768
        %s2770 = sld [smem:[#allocation21 + $0x18f]]
        %v2771 = vstv %s2770
        %v2772 = vadd.f32 %v2769, %v2771
        %v2773 = vmax.f32 %v2772, 0.0
        %s2774 = sld [smem:[#allocation22 + $0x18f]]
        %v2775 = vstv %s2774
        %v2776 = vmul.f32 %v2773, %v2775
        %v2777 = vadd.f32 %v2762, %v2776
        %s2778 = sld [smem:[#allocation24 + $0x3]]
        %v2779 = vstv %s2778
        %v2780 = vadd.f32 %v2777, %v2779
        %v2781 = vsel %vm1393, %v2780, -inf
        %2782 = vmax.xlane.f32.xlu0 %v2781
        %v2783 = vpop.xlane.xlu0 %2782
        %v2784 = vsub.f32 %v2780, %v2783
        %v2785 = vmul.f32 %v2784, 1.442695
        %v2786 = vpow.pop %v2785
        %v2787 = vsel %vm1393, %v2786, 0.0
        %2788 = vadd.xlane.f32.xlu0 %v2787
        %v2789 = vpop.xlane.xlu0 %2788
        %2790 = vrot.lane.b32.xlu0 %v1059, 104
        %v2791 = vpop.permute.xlu0 %2790
        %2792 = vrot.lane.b32.xlu0 %v1062, 104
        %v2793 = vpop.permute.xlu0 %2792
        %v2797 = vsel %vm1393, %v2786, 0
        %2799 = vmatprep.subr.mxu0 0.0
        %2800 = vmatpush1.msra.mxu0 %v2791
        %2801 = vmatprep.subr.mxu0 0.0
        %2802 = vmatpush1.msra.mxu0 %v2793
        %2803 = vmatprep.subr.mxu0 0.0
        %2804 = vmatpush1.msra.mxu0 0.0
        %2805 = vmatprep.subr.mxu0 0.0
        %2806 = vmatpush1.msra.mxu0 0.0
        %2807 = vmatprep.subr.mxu0 0.0
        %2808 = vmatpush1.msra.mxu0 0.0
        %2809 = vmatprep.subr.mxu0 0.0
        %2810 = vmatpush1.msra.mxu0 0.0
        %2811 = vmatprep.subr.mxu0 0.0
        %2812 = vmatpush1.msra.mxu0 0.0
        %2813 = vmatprep.subr.mxu0 0.0
        %2814 = vmatpush1.msra.mxu0 0.0
        %2815 = vmatprep.subr.mxu0 0.0
        %2816 = vmatpush1.msra.mxu0 0.0
        %2817 = vmatprep.subr.mxu0 0.0
        %2818 = vmatpush1.msra.mxu0 0.0
        %2819 = vmatprep.subr.mxu0 0.0
        %2820 = vmatpush1.msra.mxu0 0.0
        %2821 = vmatprep.subr.mxu0 0.0
        %2822 = vmatpush1.msra.mxu0 0.0
        %2823 = vmatprep.subr.mxu0 0.0
        %2824 = vmatpush1.msra.mxu0 0.0
        %2825 = vmatprep.subr.mxu0 0.0
        %2826 = vmatpush1.msra.mxu0 0.0
        %2827 = vmatprep.subr.mxu0 0.0
        %2828 = vmatpush1.msra.mxu0 0.0
        %2829 = vmatprep.subr.mxu0 0.0
        %2830 = vmatpush1.msra.mxu0 0.0
        %2831 = vmatprep.subr.mxu0 0.0
        %2832 = vmatpush1.msra.mxu0 0.0
        %2833 = vmatprep.subr.mxu0 0.0
        %2834 = vmatpush1.msra.mxu0 0.0
        %2835 = vmatprep.subr.mxu0 0.0
        %2836 = vmatpush1.msra.mxu0 0.0
        %2837 = vmatprep.subr.mxu0 0.0
        %2838 = vmatpush1.msra.mxu0 0.0
        %2839 = vmatprep.subr.mxu0 0.0
        %2840 = vmatpush1.msra.mxu0 0.0
        %2841 = vmatprep.subr.mxu0 0.0
        %2842 = vmatpush1.msra.mxu0 0.0
        %2843 = vmatprep.subr.mxu0 0.0
        %2844 = vmatpush1.msra.mxu0 0.0
        %2845 = vmatprep.subr.mxu0 0.0
        %2846 = vmatpush1.msra.mxu0 0.0
        %2847 = vmatprep.subr.mxu0 0.0
        %2848 = vmatpush1.msra.mxu0 0.0
        %2849 = vmatprep.subr.mxu0 0.0
        %2850 = vmatpush1.msra.mxu0 0.0
        %2851 = vmatprep.subr.mxu0 0.0
        %2852 = vmatpush1.msra.mxu0 0.0
        %2853 = vmatprep.subr.mxu0 0.0
        %2854 = vmatpush1.msra.mxu0 0.0
        %2855 = vmatprep.subr.mxu0 0.0
        %2856 = vmatpush1.msra.mxu0 0.0
        %2857 = vmatprep.subr.mxu0 0.0
        %2858 = vmatpush1.msra.mxu0 0.0
        %2859 = vmatprep.subr.mxu0 0.0
        %2860 = vmatpush1.msra.mxu0 0.0
        %2861 = vmatprep.subr.mxu0 0.0
        %2862 = vmatpush1.msra.mxu0 0.0
        %2863 = vmatprep.mubr.f32.mxu0 0.0
        %2864 = vmatmul.mubr.f32.gmra.mrb[0].mxu0 %v2797
        %v2865 = vpop.f32.mrb[0].mxu0
        %v2866 = vadd.f32 0.0, %v2865
        %v2867 = vpop.f32.mrb[0].mxu0
        %2868 = vdwg.mxu0
        %v2869 = vrcp.pop %v2789
        %v2870 = vmul.f32 %v2866, %v2869
        %v2871 = vpack.c.bf16 %v2870, %v2870
        %v2873 = vsel %vm1069, %v2871, 0
        %v2876 = vsel %vm1901, %v1068, 0
        %2878 = vmatprep.subr.bf16.mxu0 0
        %2879 = vmatpush1.bf16.msra.mxu0 %v2876
        %2880 = vmatprep.subr.bf16.mxu0 0
        %2881 = vmatpush1.bf16.msra.mxu0 0
        %2882 = vmatprep.subr.bf16.mxu0 0
        %2883 = vmatpush1.bf16.msra.mxu0 0
        %2884 = vmatprep.subr.bf16.mxu0 0
        %2885 = vmatpush1.bf16.msra.mxu0 0
        %2886 = vmatprep.subr.bf16.mxu0 0
        %2887 = vmatpush1.bf16.msra.mxu0 0
        %2888 = vmatprep.subr.bf16.mxu0 0
        %2889 = vmatpush1.bf16.msra.mxu0 0
        %2890 = vmatprep.subr.bf16.mxu0 0
        %2891 = vmatpush1.bf16.msra.mxu0 0
        %2892 = vmatprep.subr.bf16.mxu0 0
        %2893 = vmatpush1.bf16.msra.mxu0 0
        %2894 = vmatprep.subr.bf16.mxu0 0
        %2895 = vmatpush1.bf16.msra.mxu0 0
        %2896 = vmatprep.subr.bf16.mxu0 0
        %2897 = vmatpush1.bf16.msra.mxu0 0
        %2898 = vmatprep.subr.bf16.mxu0 0
        %2899 = vmatpush1.bf16.msra.mxu0 0
        %2900 = vmatprep.subr.bf16.mxu0 0
        %2901 = vmatpush1.bf16.msra.mxu0 0
        %2902 = vmatprep.subr.bf16.mxu0 0
        %2903 = vmatpush1.bf16.msra.mxu0 0
        %2904 = vmatprep.subr.bf16.mxu0 0
        %2905 = vmatpush1.bf16.msra.mxu0 0
        %2906 = vmatprep.subr.bf16.mxu0 0
        %2907 = vmatpush1.bf16.msra.mxu0 0
        %2908 = vmatprep.subr.bf16.mxu0 0
        %2909 = vmatpush1.bf16.msra.mxu0 0
        %2910 = vmatprep.mubr.bf16.mxu0 0
        %2911 = vmatmul.mubr.bf16.gmra.mrb[0].mxu0 %v2873
        %v2912 = vpop.f32.mrb[0].mxu0
        %v2913 = vadd.f32 0.0, %v2912
        %v2914 = vpop.f32.mrb[0].mxu0
        %v2915 = vpop.f32.mrb[0].mxu0
        %v2916 = vpop.f32.mrb[0].mxu0
        %2917 = vdwg.mxu0
        %v2918 = vadd.f32 %v2454, %v2913
        %v2919 = vld [vmem:[%s7] sm:$0x1]
        %v2921 = vlaneseq
        %v2922 = vshrl.u32 %v2921, 7
        %v2923 = vsub.s32 0, %v2922
        %v2924 = vrot.slane %v2919, %v2923
        %v2926 = vadd.f32 %v2918, %v2924
        %v2927 = vadd.f32 %v882, %v2926
        %v2928 = vld [vmem:[#allocation12] sm:$0x1]
        %v2929 = vld [vmem:[#allocation14] sm:$0x1]
        %v2930 = vsel %vm904, %v2927, 0.0
        %v2931 = vrot.slane %v2930, 4
        %v2932 = vadd.f32 %v2930, %v2931
        %v2933 = vrot.slane %v2932, 2
        %v2934 = vadd.f32 %v2932, %v2933
        %v2935 = vrot.slane %v2934, 1
        %v2936 = vadd.f32 %v2934, %v2935
        %v2937 = vrcp.pop 8.0
        %v2938 = vmul.f32 %v2936, %v2937
        %v2939 = vsub.f32 %v2927, %v2938
        %v2940 = vmul.f32 %v2939, %v2939
        %v2941 = vsel %vm904, %v2940, 0.0
        %v2942 = vrot.slane %v2941, 4
        %v2943 = vadd.f32 %v2941, %v2942
        %v2944 = vrot.slane %v2943, 2
        %v2945 = vadd.f32 %v2943, %v2944
        %v2946 = vrot.slane %v2945, 1
        %v2947 = vadd.f32 %v2945, %v2946
        %v2948 = vmul.f32 %v2947, %v2937
        %v2949 = vadd.f32 %v2948, 1e-05
        %v2950 = vrsqrt.pop %v2949
        %v2951 = vmul.f32 %v2939, %v2950
        %v2953 = vlaneseq
        %v2954 = vshrl.u32 %v2953, 7
        %v2955 = vsub.s32 0, %v2954
        %v2956 = vrot.slane %v2928, %v2955
        %v2958 = vmul.f32 %v2951, %v2956
        %v2960 = vlaneseq
        %v2961 = vshrl.u32 %v2960, 7
        %v2962 = vsub.s32 0, %v2961
        %v2963 = vrot.slane %v2929, %v2962
        %v2965 = vadd.f32 %v2958, %v2963
        %v2966 = vpack.c.bf16 %v2965, %v2965
        %v2967 = vld [vmem:[%s10] sm:$0xf]
        %v2968 = vld [vmem:[%s10 + $0x4] sm:$0xf]
        %v2969 = vld [vmem:[%s10 + $0x8] sm:$0xf]
        %v2970 = vld [vmem:[%s10 + $0xc] sm:$0xf]
        %v2971 = vld [vmem:[#allocation15] sm:$0x1]
        %v2973 = vlaneseq
        %v2974 = vshrl.u32 %v2973, 7
        %v2975 = vsub.s32 0, %v2974
        %v2976 = vrot.slane %v2971, %v2975
        %v2982 = vunpack.c.l.b16 %v2967
        %v2983 = vunpack.c.l.b16 %v2968
        %v2984 = vunpack.c.l.b16 %v2969
        %v2985 = vunpack.c.l.b16 %v2970
        %v2986 = vpack.c.b16 %v2983, %v2982
        %v2987 = vpack.c.b16 %v2985, %v2984
        %v2991 = vsel %vm904, %v2966, 0
        %2993 = vmatprep.subr.bf16.mxu0 0
        %2994 = vmatpush1.bf16.msra.mxu0 %v2986
        %2995 = vmatprep.subr.bf16.mxu0 0
        %2996 = vmatpush1.bf16.msra.mxu0 %v2987
        %2997 = vmatprep.subr.bf16.mxu0 0
        %2998 = vmatpush1.bf16.msra.mxu0 0
        %2999 = vmatprep.subr.bf16.mxu0 0
        %3000 = vmatpush1.bf16.msra.mxu0 0
        %3001 = vmatprep.subr.bf16.mxu0 0
        %3002 = vmatpush1.bf16.msra.mxu0 0
        %3003 = vmatprep.subr.bf16.mxu0 0
        %3004 = vmatpush1.bf16.msra.mxu0 0
        %3005 = vmatprep.subr.bf16.mxu0 0
        %3006 = vmatpush1.bf16.msra.mxu0 0
        %3007 = vmatprep.subr.bf16.mxu0 0
        %3008 = vmatpush1.bf16.msra.mxu0 0
        %3009 = vmatprep.subr.bf16.mxu0 0
        %3010 = vmatpush1.bf16.msra.mxu0 0
        %3011 = vmatprep.subr.bf16.mxu0 0
        %3012 = vmatpush1.bf16.msra.mxu0 0
        %3013 = vmatprep.subr.bf16.mxu0 0
        %3014 = vmatpush1.bf16.msra.mxu0 0
        %3015 = vmatprep.subr.bf16.mxu0 0
        %3016 = vmatpush1.bf16.msra.mxu0 0
        %3017 = vmatprep.subr.bf16.mxu0 0
        %3018 = vmatpush1.bf16.msra.mxu0 0
        %3019 = vmatprep.subr.bf16.mxu0 0
        %3020 = vmatpush1.bf16.msra.mxu0 0
        %3021 = vmatprep.subr.bf16.mxu0 0
        %3022 = vmatpush1.bf16.msra.mxu0 0
        %3023 = vmatprep.subr.bf16.mxu0 0
        %3024 = vmatpush1.bf16.msra.mxu0 0
        %3025 = vmatprep.mubr.bf16.mxu0 0
        %3026 = vmatmul.mubr.bf16.gmra.mrb[0].mxu0 %v2991
        %v3027 = vpop.f32.mrb[0].mxu0
        %v3028 = vadd.f32 %v2976, %v3027
        %v3029 = vpop.f32.mrb[0].mxu0
        %v3030 = vpop.f32.mrb[0].mxu0
        %v3031 = vpop.f32.mrb[0].mxu0
        %3032 = vdwg.mxu0
        %v3033 = vmax.f32 %v3028, 0.0
        %v3034 = vpack.c.bf16 %v3033, %v3033
        %v3035 = vld [vmem:[%s12] sm:$0xf]
        %v3036 = vld [vmem:[%s12 + $0x4] sm:$0xf]
        %v3037 = vld [vmem:[%s12 + $0x8] sm:$0xf]
        %v3038 = vld [vmem:[%s12 + $0xc] sm:$0xf]
        %v3039 = vld [vmem:[%s12 + $0x10] sm:$0xf]
        %v3040 = vld [vmem:[%s12 + $0x14] sm:$0xf]
        %v3041 = vld [vmem:[%s12 + $0x18] sm:$0xf]
        %v3042 = vld [vmem:[%s12 + $0x1c] sm:$0xf]
        %v3043 = vld [vmem:[#allocation17] sm:$0x1]
        %v3045 = vlaneseq
        %v3046 = vshrl.u32 %v3045, 7
        %v3047 = vsub.s32 0, %v3046
        %v3048 = vrot.slane %v3043, %v3047
        %v3058 = vunpack.c.l.b16 %v3035
        %v3059 = vunpack.c.l.b16 %v3036
        %v3060 = vunpack.c.l.b16 %v3037
        %v3061 = vunpack.c.l.b16 %v3038
        %v3062 = vunpack.c.l.b16 %v3039
        %v3063 = vunpack.c.l.b16 %v3040
        %v3064 = vunpack.c.l.b16 %v3041
        %v3065 = vunpack.c.l.b16 %v3042
        %v3066 = vpack.c.b16 %v3059, %v3058
        %v3067 = vpack.c.b16 %v3061, %v3060
        %v3068 = vpack.c.b16 %v3063, %v3062
        %v3069 = vpack.c.b16 %v3065, %v3064
        %vm3074 = vcmask 523264
        %v3076 = vsel %vm3074, %v3034, 0
        %3078 = vmatprep.subr.bf16.mxu0 0
        %3079 = vmatpush1.bf16.msra.mxu0 %v3066
        %3080 = vmatprep.subr.bf16.mxu0 0
        %3081 = vmatpush1.bf16.msra.mxu0 %v3067
        %3082 = vmatprep.subr.bf16.mxu0 0
        %3083 = vmatpush1.bf16.msra.mxu0 %v3068
        %3084 = vmatprep.subr.bf16.mxu0 0
        %3085 = vmatpush1.bf16.msra.mxu0 %v3069
        %3086 = vmatprep.subr.bf16.mxu0 0
        %3087 = vmatpush1.bf16.msra.mxu0 0
        %3088 = vmatprep.subr.bf16.mxu0 0
        %3089 = vmatpush1.bf16.msra.mxu0 0
        %3090 = vmatprep.subr.bf16.mxu0 0
        %3091 = vmatpush1.bf16.msra.mxu0 0
        %3092 = vmatprep.subr.bf16.mxu0 0
        %3093 = vmatpush1.bf16.msra.mxu0 0
        %3094 = vmatprep.subr.bf16.mxu0 0
        %3095 = vmatpush1.bf16.msra.mxu0 0
        %3096 = vmatprep.subr.bf16.mxu0 0
        %3097 = vmatpush1.bf16.msra.mxu0 0
        %3098 = vmatprep.subr.bf16.mxu0 0
        %3099 = vmatpush1.bf16.msra.mxu0 0
        %3100 = vmatprep.subr.bf16.mxu0 0
        %3101 = vmatpush1.bf16.msra.mxu0 0
        %3102 = vmatprep.subr.bf16.mxu0 0
        %3103 = vmatpush1.bf16.msra.mxu0 0
        %3104 = vmatprep.subr.bf16.mxu0 0
        %3105 = vmatpush1.bf16.msra.mxu0 0
        %3106 = vmatprep.subr.bf16.mxu0 0
        %3107 = vmatpush1.bf16.msra.mxu0 0
        %3108 = vmatprep.subr.bf16.mxu0 0
        %3109 = vmatpush1.bf16.msra.mxu0 0
        %3110 = vmatprep.mubr.bf16.mxu0 0
        %3111 = vmatmul.mubr.bf16.gmra.mrb[0].mxu0 %v3076
        %v3112 = vpop.f32.mrb[0].mxu0
        %v3113 = vadd.f32 %v3048, %v3112
        %v3114 = vpop.f32.mrb[0].mxu0
        %v3115 = vpop.f32.mrb[0].mxu0
        %v3116 = vpop.f32.mrb[0].mxu0
        %3117 = vdwg.mxu0
        %v3118 = vadd.f32 %v2965, %v3113
        %v3119 = vld [vmem:[%s14] sm:$0x1]
        %v3120 = vld [vmem:[%s15] sm:$0x1]
        %v3121 = vsel %vm904, %v3118, 0.0
        %v3122 = vrot.slane %v3121, 4
        %v3123 = vadd.f32 %v3121, %v3122
        %v3124 = vrot.slane %v3123, 2
        %v3125 = vadd.f32 %v3123, %v3124
        %v3126 = vrot.slane %v3125, 1
        %v3127 = vadd.f32 %v3125, %v3126
        %v3128 = vmul.f32 %v3127, %v2937
        %v3129 = vsub.f32 %v3118, %v3128
        %v3130 = vmul.f32 %v3129, %v3129
        %v3131 = vsel %vm904, %v3130, 0.0
        %v3132 = vrot.slane %v3131, 4
        %v3133 = vadd.f32 %v3131, %v3132
        %v3134 = vrot.slane %v3133, 2
        %v3135 = vadd.f32 %v3133, %v3134
        %v3136 = vrot.slane %v3135, 1
        %v3137 = vadd.f32 %v3135, %v3136
        %v3138 = vmul.f32 %v3137, %v2937
        %v3139 = vadd.f32 %v3138, 1e-05
        %v3140 = vrsqrt.pop %v3139
        %v3141 = vmul.f32 %v3129, %v3140
        %v3143 = vlaneseq
        %v3144 = vshrl.u32 %v3143, 7
        %v3145 = vsub.s32 0, %v3144
        %v3146 = vrot.slane %v3119, %v3145
        %v3148 = vmul.f32 %v3141, %v3146
        %v3150 = vlaneseq
        %v3151 = vshrl.u32 %v3150, 7
        %v3152 = vsub.s32 0, %v3151
        %v3153 = vrot.slane %v3120, %v3152
        %v3155 = vadd.f32 %v3148, %v3153
        %3156 = vst.msk [vmem:[%s871] sm:$0xff] %vm904, %v3155
        %s3157 = sand.u32 %s509, 1
        %s3158 = scalar_lea.sflag [#allocation4], %s3157
        %s3159 = sand.u32 %s509, 1
        %s3160 = smul.addr %s3159, 8
        %s3161 = scalar_lea.vmem [#allocation25], %s3160
        // Predicated region
        $region161: #{tpu_custom_call.1} parent=103 // pred_check
          %p3162 = pneg %p519
        $region162: #{tpu_custom_call.1} parent=103 // pred_check_branch
          %3164 = sbr.rel (%p3162) target = $region164
        $region163: #{tpu_custom_call.1} parent=103 // pred_region
          %s3166 = ssub.s32 128, 128
          %3167 = vsyncadd %s3158, %s3166
          %s3168 = smul.addr %s45, 128
          %s3169 = scalar_lea.hbm %s21, %s3168
          %s3171 = sshll.u32 %s3161, 4
          %s3172 = int_to_ptr.vmem [resolvable:$true] %s3171
          %3174 = dma.vmem_to_hbm [thread:$0]  %s3172, 128, %s3169, %s3158
        $region164: #{tpu_custom_call.1} parent=103 // pred_fallthru
          _
      $region104: #{tpu_custom_call.1} parent=5 // pred_fallthru
        _
      %p3175 = scmp.le.s32.totalorder 2, %s40
      // Predicated region
      $region165: #{tpu_custom_call.1} parent=5 // pred_check
        %p3176 = pneg %p3175
      $region166: #{tpu_custom_call.1} parent=5 // pred_check_branch
        %3178 = sbr.rel (%p3176) target = $region168
      $region167: #{tpu_custom_call.1} parent=5 // pred_region
        %s3179 = ssub.s32 %s40, 2
        // Predicated region
        $region169: #{tpu_custom_call.1} parent=167 // pred_check
          %p3180 = pneg %p525
        $region170: #{tpu_custom_call.1} parent=167 // pred_check_branch
          %3182 = sbr.rel (%p3180) target = $region172
        $region171: #{tpu_custom_call.1} parent=167 // pred_region
          %s3183 = sand.u32 %s510, 1
          %s3184 = scalar_lea.sflag [#allocation4], %s3183
          %s3185 = sand.u32 %s510, 1
          %s3186 = smul.addr %s3185, 8
          %s3187 = scalar_lea.vmem [#allocation25], %s3186
          %3188 = dma.done %s3184, 128
        $region172: #{tpu_custom_call.1} parent=167 // pred_fallthru
          _
      $region168: #{tpu_custom_call.1} parent=5 // pred_fallthru
        _
    $region6: #{tpu_custom_call.1} parent=1 // loop_footer
      %s44 = sadd.s32 1, %s40
    $region7: #{tpu_custom_call.1} parent=1 // loop_footer_branch
      %39 = sbr.rel target = $region3
    $region8: #{tpu_custom_call.1} parent=1 // loop_exit
      _
    %3189 = vsyncpa [#allocation3], 1
    %s3190 = scalar_lea.sflag [#allocation3], 1
    %3191 = vsyncpa %s3190, 1
    %3192 = vsyncpa [#allocation7], 1
    %3193 = vsyncpa [#allocation10], 1
    %3194 = vsyncpa [#allocation13], 1
    %3195 = vsyncpa [#allocation16], 1
    %3196 = vsyncpa [#allocation4], 1
    %s3197 = scalar_lea.sflag [#allocation4], 1
    %3198 = vsyncpa %s3197, 1
    %3199 = vsyncpa [#allocation5], 1
    %s3200 = scalar_lea.sflag [#allocation5], 1
    %3201 = vsyncpa %s3200, 1
    %3202 = vsyncpa [#allocation20], 1
    %3203 = vsyncpa [#allocation23], 1

</llo_original>
